<compile_context>
chip_gen: v7x
topology: tpu7x:2x2x1
jax: 0.10.0
libtpu: 0.0.40
codegen_flags: <defaults>
</compile_context>

<pallas_src>
import math
import jax
import jax.numpy as jnp
import numpy as np
from jax.experimental import pallas as pl
from jax.experimental.pallas import tpu as pltpu

AUDIO_DIM = 32      # audio_dim (small synthetic size; PyTorch default was 512)
VISUAL_DIM = 48     # visual_dim (PyTorch default was 640)
NUM_HEADS = 4       # assumed head count of MultiHeadAttention
HEAD_DIM = AUDIO_DIM // NUM_HEADS
LN_EPS = 1e-5


def fusion_kernel(a_ref, v_ref, w1_ref, b1_ref, w2_ref, b2_ref, wo_ref, b3_ref,
                  out_ref):
    """Single grid step: the whole (small, static) batch is processed here.

    Inputs/outputs are channel-major (B, C, T); the time-major transposes live
    inside the kernel so the wrapper issues no standalone transpose ops.
    """
    B = out_ref.shape[0]
    Ca, Cv, H, D = AUDIO_DIM, VISUAL_DIM, NUM_HEADS, HEAD_DIM

    w1 = w1_ref[...]              # (3*Ca+3*Cv, 2*Ca) block-diag [conv_a|conv_v]
    b1 = b1_ref[...]              # (1, 2*Ca)
    w2 = w2_ref[...]              # (2*Ca, 3*Ca)  [Q|K|V]; 1/sqrt(D) folded in Q
    b2 = b2_ref[...]              # (1, 3*Ca)
    wo = wo_ref[...]              # (Ca, Ca)
    b3 = b3_ref[...]              # (3, Ca): [b_o; gamma; beta]
    bo, gamma, beta = b3[0:1, :], b3[1:2, :], b3[2:3, :]

    za = jnp.zeros((1, Ca), jnp.float32)
    zv = jnp.zeros((1, Cv), jnp.float32)

    # B is tiny & static -> fully unrolled Python loop; all ops stay small 2-D /
    # head-batched 3-D (the per-step grid overhead and duplicate weight DMAs of
    # the old grid=(B,) version are gone).
    for n in range(B):
        a = a_ref[n].T                               # (Ca,T) -> (T,Ca) in-kernel
        v = v_ref[n].T                               # (Cv,T) -> (T,Cv)

        # ---- k=3 / pad=1 im2col slab for BOTH convs (boundary rows zeroed) ----
        x_cat = jnp.concatenate([
            jnp.concatenate([za, a[:-1]], axis=0),   # a[t-1]
            a,                                       # a[t]
            jnp.concatenate([a[1:], za], axis=0),    # a[t+1]
            jnp.concatenate([zv, v[:-1]], axis=0),   # v[t-1]
            v,                                       # v[t]
            jnp.concatenate([v[1:], zv], axis=0),    # v[t+1]
        ], axis=1)                                   # (T, 3*Ca+3*Cv)

        # ---- both Conv1d's as ONE matmul (block-diagonal packed weight) ----
        av = jnp.dot(x_cat, w1, preferred_element_type=jnp.float32) + b1  # (T,2Ca)
        v_conv = av[:, Ca:2 * Ca]                    # conv_v output (residual)

        # ---- fused Q/K/V projection, lane-aligned [Q|K|V] column blocks ----
        qkv = jnp.dot(av, w2, preferred_element_type=jnp.float32) + b2    # (T,3Ca)
        q2 = qkv[:, 0:Ca]                            # already scaled by 1/sqrt(D)
        k2 = qkv[:, Ca:2 * Ca]
        v2 = qkv[:, 2 * Ca:3 * Ca]

        # ---- head-batched attention (no per-head compute loop) ----
        qh = jnp.stack([q2[:, h * D:(h + 1) * D] for h in range(H)], axis=0)
        kh = jnp.stack([k2[:, h * D:(h + 1) * D] for h in range(H)], axis=0)
        vh = jnp.stack([v2[:, h * D:(h + 1) * D] for h in range(H)], axis=0)

        s = jnp.einsum('htd,hsd->hts', qh, kh,
                       preferred_element_type=jnp.float32)       # (H,T,T)
        s = s - jnp.max(s, axis=-1, keepdims=True)
        p = jnp.exp(s)
        l = jnp.sum(p, axis=-1, keepdims=True)                   # (H,T,1)
        o = jnp.einsum('hts,hsd->htd', p, vh,
                       preferred_element_type=jnp.float32)       # (H,T,D)
        # deferred softmax normalization: divide (H,T,D), not (H,T,T); exact
        # division keeps the 1e-4 check (pl.reciprocal(approx=True) would move
        # it to the EUP once a looser tolerance is acceptable).
        o = o / l

        # ---- merge heads once, then single (T,Ca)@(Ca,Ca) output projection ----
        o_m = jnp.concatenate([o[h] for h in range(H)], axis=1)  # (T, Ca)
        attn = jnp.dot(o_m, wo, preferred_element_type=jnp.float32) + bo

        # ---- residual on conv_v branch + LayerNorm(audio_dim) ----
        y = v_conv + attn
        mean = jnp.mean(y, axis=-1, keepdims=True)
        var = jnp.mean((y - mean) ** 2, axis=-1, keepdims=True)
        yn = (y - mean) * jax.lax.rsqrt(var + LN_EPS)
        out = yn * gamma + beta                                   # (T, Ca)

        # store channel-major so the wrapper only does a free unsqueeze
        out_ref[n] = out.T.astype(out_ref.dtype)                  # (Ca, T)

    # TODO(synk): dropout inside MultiHeadAttention is an inference-mode no-op.
    # TODO(synk): at production dims/long T: tile queries flash-style (the full
    # (H,T,T) f32 scores break v7x's 64 MiB VMEM near T~2K), cast matmul
    # operands to bf16 (f32 accumulate), and mark the replicated weight
    # BlockSpecs pipeline_mode=pl.Buffered(1) so they are not double-buffered.


def pack_params(p):
    """One-time repack of the 14 torch-style tensors into 6 matmul-ready arrays.

    * w1: im2col conv weight, block-diagonal over the [conv_a | conv_v] outputs.
    * w2: fused Q/K/V projection with lane-aligned [Q | K | V] column blocks;
      Q, K read the audio half of [conv_a | conv_v], V the visual half.
      1/sqrt(head_dim) is folded into the Q weight/bias columns here (free —
      this runs once offline, not per call).
    * wo is kept as the original (Ca, Ca) matrix (heads are merged in-kernel).
    """
    Ca, Cv, D = AUDIO_DIM, VISUAL_DIM, HEAD_DIM
    scale = 1.0 / math.sqrt(D)

    w1 = jnp.zeros((3 * Ca + 3 * Cv, 2 * Ca), jnp.float32)
    for kk in range(3):
        w1 = w1.at[kk * Ca:(kk + 1) * Ca, 0:Ca].set(p["wa"][kk])
        w1 = w1.at[3 * Ca + kk * Cv:3 * Ca + (kk + 1) * Cv, Ca:2 * Ca].set(p["wv"][kk])
    b1 = jnp.concatenate([p["ba"], p["bv"]], axis=1)                # (1, 2*Ca)

    w2 = jnp.zeros((2 * Ca, 3 * Ca), jnp.float32)
    w2 = w2.at[0:Ca, 0:Ca].set(p["wq"] * scale)                     # Q (scaled)
    w2 = w2.at[0:Ca, Ca:2 * Ca].set(p["wk"])                        # K
    w2 = w2.at[Ca:2 * Ca, 2 * Ca:3 * Ca].set(p["wval"])             # V
    b2 = jnp.concatenate([p["bq"] * scale, p["bk"], p["bval"]], axis=1)

    b3 = jnp.concatenate([p["bo"], p["gamma"], p["beta"]], axis=0)  # (3, Ca)
    return {"w1": w1, "b1": b1, "w2": w2, "b2": b2, "wo": p["wo"], "b3": b3}


def fusion_forward(audio, visual, packed):
    B, Ca, _, T = audio.shape
    Cv = visual.shape[1]
    assert Ca == AUDIO_DIM and Cv == VISUAL_DIM

    # Wrapper glue is layout-free: only unit-dim squeeze / unsqueeze reshapes
    # (no transposes, no pads — everything else lives in the kernel).
    a_cm = audio.reshape(B, Ca, T)
    v_cm = visual.reshape(B, Cv, T)

    def full_spec(arr):  # whole array as one block
        nd = arr.ndim
        return pl.BlockSpec(arr.shape, lambda i, _nd=nd: (0,) * _nd)

    in_specs = [
        full_spec(a_cm), full_spec(v_cm),
        full_spec(packed["w1"]), full_spec(packed["b1"]),
        full_spec(packed["w2"]), full_spec(packed["b2"]),
        full_spec(packed["wo"]), full_spec(packed["b3"]),
    ]
    out_spec = pl.BlockSpec((B, Ca, T), lambda i: (0, 0, 0))

    out_cm = pl.pallas_call(
        fusion_kernel,
        out_shape=jax.ShapeDtypeStruct((B, Ca, T), jnp.float32),
        grid_spec=pltpu.PrefetchScalarGridSpec(
            num_scalar_prefetch=0,
            grid=(1,),                 # single step: whole batch fused in-kernel
            in_specs=in_specs,
            out_specs=out_spec,
        ),
        compiler_params=pltpu.CompilerParams(
            dimension_semantics=("arbitrary",)),
    )(a_cm, v_cm,
      packed["w1"], packed["b1"], packed["w2"], packed["b2"],
      packed["wo"], packed["b3"])

    # (B, Ca, T) -> torch's ... .unsqueeze(2) -> (B, Ca, 1, T): free expand.
    return out_cm[:, :, None, :]


def init_params(key):
    ks = jax.random.split(key, 14)
    w = lambda k, shape: (0.05 * jax.random.normal(k, shape)).astype(jnp.float32)
    return {
        "wa": w(ks[0], (3, AUDIO_DIM, AUDIO_DIM)),
        "ba": w(ks[1], (1, AUDIO_DIM)),
        "wv": w(ks[2], (3, VISUAL_DIM, AUDIO_DIM)),
        "bv": w(ks[3], (1, AUDIO_DIM)),
        "wq": w(ks[4], (AUDIO_DIM, AUDIO_DIM)),
        "bq": w(ks[5], (1, AUDIO_DIM)),
        "wk": w(ks[6], (AUDIO_DIM, AUDIO_DIM)),
        "bk": w(ks[7], (1, AUDIO_DIM)),
        "wval": w(ks[8], (AUDIO_DIM, AUDIO_DIM)),
        "bval": w(ks[9], (1, AUDIO_DIM)),
        "wo": w(ks[10], (AUDIO_DIM, AUDIO_DIM)),
        "bo": w(ks[11], (1, AUDIO_DIM)),
        "gamma": jnp.ones((1, AUDIO_DIM), jnp.float32),
        "beta": jnp.zeros((1, AUDIO_DIM), jnp.float32),
    }


def reference_forward(audio, visual, p):
    """Pure-JAX reference with identical semantics (uses the raw, unpacked params)."""
    B, Ca, _, T = audio.shape
    a_tc = jnp.transpose(audio[:, :, 0, :], (0, 2, 1))
    v_tc = jnp.transpose(visual[:, :, 0, :], (0, 2, 1))
    a_pad = jnp.pad(a_tc, ((0, 0), (1, 1), (0, 0)))
    v_pad = jnp.pad(v_tc, ((0, 0), (1, 1), (0, 0)))
    a = sum(jnp.einsum("btc,cd->btd", a_pad[:, k:k + T], p["wa"][k])
            for k in range(3)) + p["ba"][None]
    v = sum(jnp.einsum("btc,cd->btd", v_pad[:, k:k + T], p["wv"][k])
            for k in range(3)) + p["bv"][None]
    q = a @ p["wq"] + p["bq"]
    k_ = a @ p["wk"] + p["bk"]
    vv = v @ p["wval"] + p["bval"]
    split = lambda x: x.reshape(B, T, NUM_HEADS, HEAD_DIM).transpose(0, 2, 1, 3)
    qh, kh, vh = split(q), split(k_), split(vv)
    s = jnp.einsum("bhtd,bhsd->bhts", qh, kh) / math.sqrt(HEAD_DIM)
    pr = jax.nn.softmax(s, axis=-1)
    o = jnp.einsum("bhts,bhsd->bhtd", pr, vh).transpose(0, 2, 1, 3).reshape(B, T, Ca)
    attn_out = o @ p["wo"] + p["bo"]
    y = v + attn_out
    mean = y.mean(-1, keepdims=True)
    var = ((y - mean) ** 2).mean(-1, keepdims=True)
    out = (y - mean) / jnp.sqrt(var + LN_EPS) * p["gamma"] + p["beta"]
    return jnp.transpose(out, (0, 2, 1))[:, :, None, :]


if __name__ == "__main__":
    key = jax.random.PRNGKey(0)
    k_a, k_v, k_p = jax.random.split(key, 3)
    B, T = 2, 16
    audio = jax.random.normal(k_a, (B, AUDIO_DIM, 1, T), jnp.float32)
    visual = jax.random.normal(k_v, (B, VISUAL_DIM, 1, T), jnp.float32)
    params = init_params(k_p)
    packed = jax.tree_util.tree_map(jax.block_until_ready, pack_params(params))

    out = fusion_forward(audio, visual, packed)
    out = jax.block_until_ready(out)

    ref = jax.block_until_ready(reference_forward(audio, visual, params))
    assert out.shape == (B, AUDIO_DIM, 1, T), out.shape
    np.testing.assert_allclose(np.asarray(out), np.asarray(ref),
                               rtol=1e-4, atol=1e-4)
    print("KERNEL_OK")
</pallas_src>

<mosaic_0001>
module attributes {stable_mosaic.version = 11 : i64} {
  func.func @fusion_kernel(%arg0: i32, %arg1: memref<2x32x16xf32, #tpu.memory_space<vmem>>, %arg2: memref<2x48x16xf32, #tpu.memory_space<vmem>>, %arg3: memref<240x64xf32, #tpu.memory_space<vmem>>, %arg4: memref<1x64xf32, #tpu.memory_space<vmem>>, %arg5: memref<64x96xf32, #tpu.memory_space<vmem>>, %arg6: memref<1x96xf32, #tpu.memory_space<vmem>>, %arg7: memref<32x32xf32, #tpu.memory_space<vmem>>, %arg8: memref<3x32xf32, #tpu.memory_space<vmem>>, %arg9: memref<2x32x16xf32, #tpu.memory_space<vmem>>) attributes {dimension_semantics = [#tpu.dimension_semantics<arbitrary>], iteration_bounds = array<i64: 1>, scalar_prefetch = 0 : i64, scratch_operands = 0 : i64, tpu.core_type = #tpu.core_type<tc>, window_params = [{pipeline_mode = #tpu.pipeline_mode<synchronous>, transform_indices = @transform_0, window_bounds = array<i64: 2, 32, 16>}, {pipeline_mode = #tpu.pipeline_mode<synchronous>, transform_indices = @transform_1, window_bounds = array<i64: 2, 48, 16>}, {pipeline_mode = #tpu.pipeline_mode<synchronous>, transform_indices = @transform_2, window_bounds = array<i64: 240, 64>}, {pipeline_mode = #tpu.pipeline_mode<synchronous>, transform_indices = @transform_3, window_bounds = array<i64: 1, 64>}, {pipeline_mode = #tpu.pipeline_mode<synchronous>, transform_indices = @transform_4, window_bounds = array<i64: 64, 96>}, {pipeline_mode = #tpu.pipeline_mode<synchronous>, transform_indices = @transform_5, window_bounds = array<i64: 1, 96>}, {pipeline_mode = #tpu.pipeline_mode<synchronous>, transform_indices = @transform_6, window_bounds = array<i64: 32, 32>}, {pipeline_mode = #tpu.pipeline_mode<synchronous>, transform_indices = @transform_7, window_bounds = array<i64: 3, 32>}, {pipeline_mode = #tpu.pipeline_mode<synchronous>, transform_indices = @transform_8, window_bounds = array<i64: 2, 32, 16>}]} {
    %c0 = arith.constant 0 : index
    %c0_0 = arith.constant 0 : index
    %0 = vector.load %arg3[%c0, %c0_0] : memref<240x64xf32, #tpu.memory_space<vmem>>, vector<240x64xf32>
    %c0_1 = arith.constant 0 : index
    %c0_2 = arith.constant 0 : index
    %1 = vector.load %arg4[%c0_1, %c0_2] : memref<1x64xf32, #tpu.memory_space<vmem>>, vector<1x64xf32>
    %c0_3 = arith.constant 0 : index
    %c0_4 = arith.constant 0 : index
    %2 = vector.load %arg5[%c0_3, %c0_4] : memref<64x96xf32, #tpu.memory_space<vmem>>, vector<64x96xf32>
    %c0_5 = arith.constant 0 : index
    %c0_6 = arith.constant 0 : index
    %3 = vector.load %arg6[%c0_5, %c0_6] : memref<1x96xf32, #tpu.memory_space<vmem>>, vector<1x96xf32>
    %c0_7 = arith.constant 0 : index
    %c0_8 = arith.constant 0 : index
    %4 = vector.load %arg7[%c0_7, %c0_8] : memref<32x32xf32, #tpu.memory_space<vmem>>, vector<32x32xf32>
    %c0_9 = arith.constant 0 : index
    %c0_10 = arith.constant 0 : index
    %5 = vector.load %arg8[%c0_9, %c0_10] : memref<3x32xf32, #tpu.memory_space<vmem>>, vector<3x32xf32>
    %6 = vector.extract_strided_slice %5 {offsets = [0, 0], sizes = [1, 32], strides = [1, 1]} : vector<3x32xf32> to vector<1x32xf32>
    %7 = vector.extract_strided_slice %5 {offsets = [1, 0], sizes = [1, 32], strides = [1, 1]} : vector<3x32xf32> to vector<1x32xf32>
    %8 = vector.extract_strided_slice %5 {offsets = [2, 0], sizes = [1, 32], strides = [1, 1]} : vector<3x32xf32> to vector<1x32xf32>
    %cst = arith.constant 0.000000e+00 : f32
    %9 = vector.broadcast %cst : f32 to vector<1x32xf32>
    %cst_11 = arith.constant 0.000000e+00 : f32
    %10 = vector.broadcast %cst_11 : f32 to vector<1x48xf32>
    %c0_12 = arith.constant 0 : index
    %c0_13 = arith.constant 0 : index
    %c0_14 = arith.constant 0 : index
    %11 = vector.load %arg1[%c0_12, %c0_13, %c0_14] : memref<2x32x16xf32, #tpu.memory_space<vmem>>, vector<1x32x16xf32>
    %12 = vector.shape_cast %11 : vector<1x32x16xf32> to vector<32x16xf32>
    %13 = tpu.transpose %12, [1, 0] : vector<32x16xf32> -> vector<16x32xf32>
    %c0_15 = arith.constant 0 : index
    %c0_16 = arith.constant 0 : index
    %c0_17 = arith.constant 0 : index
    %14 = vector.load %arg2[%c0_15, %c0_16, %c0_17] : memref<2x48x16xf32, #tpu.memory_space<vmem>>, vector<1x48x16xf32>
    %15 = vector.shape_cast %14 : vector<1x48x16xf32> to vector<48x16xf32>
    %16 = tpu.transpose %15, [1, 0] : vector<48x16xf32> -> vector<16x48xf32>
    %17 = vector.extract_strided_slice %13 {offsets = [0, 0], sizes = [15, 32], strides = [1, 1]} : vector<16x32xf32> to vector<15x32xf32>
    %18 = tpu.concatenate %9, %17 in 0 : vector<1x32xf32>, vector<15x32xf32> -> vector<16x32xf32>
    %19 = vector.extract_strided_slice %13 {offsets = [1, 0], sizes = [15, 32], strides = [1, 1]} : vector<16x32xf32> to vector<15x32xf32>
    %20 = tpu.concatenate %19, %9 in 0 : vector<15x32xf32>, vector<1x32xf32> -> vector<16x32xf32>
    %21 = vector.extract_strided_slice %16 {offsets = [0, 0], sizes = [15, 48], strides = [1, 1]} : vector<16x48xf32> to vector<15x48xf32>
    %22 = tpu.concatenate %10, %21 in 0 : vector<1x48xf32>, vector<15x48xf32> -> vector<16x48xf32>
    %23 = vector.extract_strided_slice %16 {offsets = [1, 0], sizes = [15, 48], strides = [1, 1]} : vector<16x48xf32> to vector<15x48xf32>
    %24 = tpu.concatenate %23, %10 in 0 : vector<15x48xf32>, vector<1x48xf32> -> vector<16x48xf32>
    %25 = tpu.concatenate %18, %13, %20, %22, %16, %24 in 1 : vector<16x32xf32>, vector<16x32xf32>, vector<16x32xf32>, vector<16x48xf32>, vector<16x48xf32>, vector<16x48xf32> -> vector<16x240xf32>
    %cst_18 = arith.constant dense<0.000000e+00> : vector<16x64xf32>
    %26 = tpu.matmul %25, %0, %cst_18 {dimension_numbers = #tpu.dot_dimension_numbers<[1], [0], [0], [1], [0, 0, 1, 1], [], []>} : vector<16x240xf32>, vector<240x64xf32>, vector<16x64xf32> -> vector<16x64xf32>
    %27 = vector.broadcast %1 : vector<1x64xf32> to vector<16x64xf32>
    %28 = arith.addf %26, %27 : vector<16x64xf32>
    %29 = vector.extract_strided_slice %28 {offsets = [0, 32], sizes = [16, 32], strides = [1, 1]} : vector<16x64xf32> to vector<16x32xf32>
    %cst_19 = arith.constant dense<0.000000e+00> : vector<16x96xf32>
    %30 = tpu.matmul %28, %2, %cst_19 {dimension_numbers = #tpu.dot_dimension_numbers<[1], [0], [0], [1], [0, 0, 1, 1], [], []>} : vector<16x64xf32>, vector<64x96xf32>, vector<16x96xf32> -> vector<16x96xf32>
    %31 = vector.broadcast %3 : vector<1x96xf32> to vector<16x96xf32>
    %32 = arith.addf %30, %31 : vector<16x96xf32>
    %33 = vector.extract_strided_slice %32 {offsets = [0, 0], sizes = [16, 32], strides = [1, 1]} : vector<16x96xf32> to vector<16x32xf32>
    %34 = vector.extract_strided_slice %32 {offsets = [0, 32], sizes = [16, 32], strides = [1, 1]} : vector<16x96xf32> to vector<16x32xf32>
    %35 = vector.extract_strided_slice %32 {offsets = [0, 64], sizes = [16, 32], strides = [1, 1]} : vector<16x96xf32> to vector<16x32xf32>
    %36 = vector.extract_strided_slice %33 {offsets = [0, 0], sizes = [16, 8], strides = [1, 1]} : vector<16x32xf32> to vector<16x8xf32>
    %37 = vector.extract_strided_slice %33 {offsets = [0, 8], sizes = [16, 8], strides = [1, 1]} : vector<16x32xf32> to vector<16x8xf32>
    %38 = vector.extract_strided_slice %33 {offsets = [0, 16], sizes = [16, 8], strides = [1, 1]} : vector<16x32xf32> to vector<16x8xf32>
    %39 = vector.extract_strided_slice %33 {offsets = [0, 24], sizes = [16, 8], strides = [1, 1]} : vector<16x32xf32> to vector<16x8xf32>
    %40 = vector.shape_cast %36 : vector<16x8xf32> to vector<1x16x8xf32>
    %41 = vector.shape_cast %37 : vector<16x8xf32> to vector<1x16x8xf32>
    %42 = vector.shape_cast %38 : vector<16x8xf32> to vector<1x16x8xf32>
    %43 = vector.shape_cast %39 : vector<16x8xf32> to vector<1x16x8xf32>
    %44 = tpu.concatenate %40, %41, %42, %43 in 0 : vector<1x16x8xf32>, vector<1x16x8xf32>, vector<1x16x8xf32>, vector<1x16x8xf32> -> vector<4x16x8xf32>
    %45 = vector.extract_strided_slice %34 {offsets = [0, 0], sizes = [16, 8], strides = [1, 1]} : vector<16x32xf32> to vector<16x8xf32>
    %46 = vector.extract_strided_slice %34 {offsets = [0, 8], sizes = [16, 8], strides = [1, 1]} : vector<16x32xf32> to vector<16x8xf32>
    %47 = vector.extract_strided_slice %34 {offsets = [0, 16], sizes = [16, 8], strides = [1, 1]} : vector<16x32xf32> to vector<16x8xf32>
    %48 = vector.extract_strided_slice %34 {offsets = [0, 24], sizes = [16, 8], strides = [1, 1]} : vector<16x32xf32> to vector<16x8xf32>
    %49 = vector.shape_cast %45 : vector<16x8xf32> to vector<1x16x8xf32>
    %50 = vector.shape_cast %46 : vector<16x8xf32> to vector<1x16x8xf32>
    %51 = vector.shape_cast %47 : vector<16x8xf32> to vector<1x16x8xf32>
    %52 = vector.shape_cast %48 : vector<16x8xf32> to vector<1x16x8xf32>
    %53 = tpu.concatenate %49, %50, %51, %52 in 0 : vector<1x16x8xf32>, vector<1x16x8xf32>, vector<1x16x8xf32>, vector<1x16x8xf32> -> vector<4x16x8xf32>
    %54 = vector.extract_strided_slice %35 {offsets = [0, 0], sizes = [16, 8], strides = [1, 1]} : vector<16x32xf32> to vector<16x8xf32>
    %55 = vector.extract_strided_slice %35 {offsets = [0, 8], sizes = [16, 8], strides = [1, 1]} : vector<16x32xf32> to vector<16x8xf32>
    %56 = vector.extract_strided_slice %35 {offsets = [0, 16], sizes = [16, 8], strides = [1, 1]} : vector<16x32xf32> to vector<16x8xf32>
    %57 = vector.extract_strided_slice %35 {offsets = [0, 24], sizes = [16, 8], strides = [1, 1]} : vector<16x32xf32> to vector<16x8xf32>
    %58 = vector.shape_cast %54 : vector<16x8xf32> to vector<1x16x8xf32>
    %59 = vector.shape_cast %55 : vector<16x8xf32> to vector<1x16x8xf32>
    %60 = vector.shape_cast %56 : vector<16x8xf32> to vector<1x16x8xf32>
    %61 = vector.shape_cast %57 : vector<16x8xf32> to vector<1x16x8xf32>
    %62 = tpu.concatenate %58, %59, %60, %61 in 0 : vector<1x16x8xf32>, vector<1x16x8xf32>, vector<1x16x8xf32>, vector<1x16x8xf32> -> vector<4x16x8xf32>
    "tpu.trace_start"() <{level = 10 : i32, message = "htd,hsd->hts"}> : () -> ()
    %cst_20 = arith.constant dense<0.000000e+00> : vector<4x16x16xf32>
    %63 = tpu.matmul %44, %53, %cst_20 {dimension_numbers = #tpu.dot_dimension_numbers<[2], [2], [1], [1], [0, 0, 0, 1, 1, 1], [0], [0]>} : vector<4x16x8xf32>, vector<4x16x8xf32>, vector<4x16x16xf32> -> vector<4x16x16xf32>
    "tpu.trace_stop"() : () -> ()
    %cst_21 = arith.constant dense<0xFF800000> : vector<4x16xf32>
    %64 = vector.multi_reduction <maximumf>, %63, %cst_21 [2] : vector<4x16x16xf32> to vector<4x16xf32>
    %65 = vector.shape_cast %64 : vector<4x16xf32> to vector<4x16x1xf32>
    %66 = vector.broadcast %65 : vector<4x16x1xf32> to vector<4x16x16xf32>
    %67 = arith.subf %63, %66 : vector<4x16x16xf32>
    %68 = math.exp %67 : vector<4x16x16xf32>
    %cst_22 = arith.constant dense<0.000000e+00> : vector<4x16xf32>
    %69 = vector.multi_reduction <add>, %68, %cst_22 [2] : vector<4x16x16xf32> to vector<4x16xf32>
    %70 = vector.shape_cast %69 : vector<4x16xf32> to vector<4x16x1xf32>
    "tpu.trace_start"() <{level = 10 : i32, message = "hts,hsd->htd"}> : () -> ()
    %cst_23 = arith.constant dense<0.000000e+00> : vector<4x16x8xf32>
    %71 = tpu.matmul %68, %62, %cst_23 {dimension_numbers = #tpu.dot_dimension_numbers<[2], [1], [1], [2], [0, 0, 0, 1, 1, 2], [0], [0]>} : vector<4x16x16xf32>, vector<4x16x8xf32>, vector<4x16x8xf32> -> vector<4x16x8xf32>
    "tpu.trace_stop"() : () -> ()
    %72 = vector.broadcast %70 : vector<4x16x1xf32> to vector<4x16x8xf32>
    %73 = arith.divf %71, %72 : vector<4x16x8xf32>
    %74 = vector.extract_strided_slice %73 {offsets = [0, 0, 0], sizes = [1, 16, 8], strides = [1, 1, 1]} : vector<4x16x8xf32> to vector<1x16x8xf32>
    %75 = vector.shape_cast %74 : vector<1x16x8xf32> to vector<16x8xf32>
    %76 = vector.extract_strided_slice %73 {offsets = [1, 0, 0], sizes = [1, 16, 8], strides = [1, 1, 1]} : vector<4x16x8xf32> to vector<1x16x8xf32>
    %77 = vector.shape_cast %76 : vector<1x16x8xf32> to vector<16x8xf32>
    %78 = vector.extract_strided_slice %73 {offsets = [2, 0, 0], sizes = [1, 16, 8], strides = [1, 1, 1]} : vector<4x16x8xf32> to vector<1x16x8xf32>
    %79 = vector.shape_cast %78 : vector<1x16x8xf32> to vector<16x8xf32>
    %80 = vector.extract_strided_slice %73 {offsets = [3, 0, 0], sizes = [1, 16, 8], strides = [1, 1, 1]} : vector<4x16x8xf32> to vector<1x16x8xf32>
    %81 = vector.shape_cast %80 : vector<1x16x8xf32> to vector<16x8xf32>
    %82 = tpu.concatenate %75, %77, %79, %81 in 1 : vector<16x8xf32>, vector<16x8xf32>, vector<16x8xf32>, vector<16x8xf32> -> vector<16x32xf32>
    %cst_24 = arith.constant dense<0.000000e+00> : vector<16x32xf32>
    %83 = tpu.matmul %82, %4, %cst_24 {dimension_numbers = #tpu.dot_dimension_numbers<[1], [0], [0], [1], [0, 0, 1, 1], [], []>} : vector<16x32xf32>, vector<32x32xf32>, vector<16x32xf32> -> vector<16x32xf32>
    %84 = vector.broadcast %6 : vector<1x32xf32> to vector<16x32xf32>
    %85 = arith.addf %83, %84 : vector<16x32xf32>
    %86 = arith.addf %29, %85 : vector<16x32xf32>
    %cst_25 = arith.constant dense<0.000000e+00> : vector<16xf32>
    %87 = vector.multi_reduction <add>, %86, %cst_25 [1] : vector<16x32xf32> to vector<16xf32>
    %88 = vector.shape_cast %87 : vector<16xf32> to vector<16x1xf32>
    %cst_26 = arith.constant 3.200000e+01 : f32
    %89 = vector.broadcast %cst_26 : f32 to vector<16x1xf32>
    %90 = arith.divf %88, %89 : vector<16x1xf32>
    %91 = vector.broadcast %90 : vector<16x1xf32> to vector<16x32xf32>
    %92 = arith.subf %86, %91 : vector<16x32xf32>
    %93 = arith.mulf %92, %92 : vector<16x32xf32>
    %cst_27 = arith.constant dense<0.000000e+00> : vector<16xf32>
    %94 = vector.multi_reduction <add>, %93, %cst_27 [1] : vector<16x32xf32> to vector<16xf32>
    %95 = vector.shape_cast %94 : vector<16xf32> to vector<16x1xf32>
    %cst_28 = arith.constant 3.200000e+01 : f32
    %96 = vector.broadcast %cst_28 : f32 to vector<16x1xf32>
    %97 = arith.divf %95, %96 : vector<16x1xf32>
    %98 = vector.broadcast %90 : vector<16x1xf32> to vector<16x32xf32>
    %99 = arith.subf %86, %98 : vector<16x32xf32>
    %cst_29 = arith.constant 9.99999974E-6 : f32
    %100 = vector.broadcast %cst_29 : f32 to vector<16x1xf32>
    %101 = arith.addf %97, %100 : vector<16x1xf32>
    %102 = math.rsqrt %101 : vector<16x1xf32>
    %103 = vector.broadcast %102 : vector<16x1xf32> to vector<16x32xf32>
    %104 = arith.mulf %99, %103 : vector<16x32xf32>
    %105 = vector.broadcast %7 : vector<1x32xf32> to vector<16x32xf32>
    %106 = arith.mulf %104, %105 : vector<16x32xf32>
    %107 = vector.broadcast %8 : vector<1x32xf32> to vector<16x32xf32>
    %108 = arith.addf %106, %107 : vector<16x32xf32>
    %109 = tpu.transpose %108, [1, 0] : vector<16x32xf32> -> vector<32x16xf32>
    %c0_30 = arith.constant 0 : index
    %c0_31 = arith.constant 0 : index
    %c0_32 = arith.constant 0 : index
    %110 = vector.load %arg9[%c0_30, %c0_31, %c0_32] : memref<2x32x16xf32, #tpu.memory_space<vmem>>, vector<1x32x16xf32>
    %111 = vector.shape_cast %110 : vector<1x32x16xf32> to vector<32x16xf32>
    %112 = vector.shape_cast %109 : vector<32x16xf32> to vector<1x32x16xf32>
    tpu.vector_store %arg9[%c0_30, %c0_31, %c0_32], %112 {strides = array<i32>} : memref<2x32x16xf32, #tpu.memory_space<vmem>>, vector<1x32x16xf32>,
    %c1 = arith.constant 1 : index
    %c0_33 = arith.constant 0 : index
    %c0_34 = arith.constant 0 : index
    %113 = vector.load %arg1[%c1, %c0_33, %c0_34] : memref<2x32x16xf32, #tpu.memory_space<vmem>>, vector<1x32x16xf32>
    %114 = vector.shape_cast %113 : vector<1x32x16xf32> to vector<32x16xf32>
    %115 = tpu.transpose %114, [1, 0] : vector<32x16xf32> -> vector<16x32xf32>
    %c1_35 = arith.constant 1 : index
    %c0_36 = arith.constant 0 : index
    %c0_37 = arith.constant 0 : index
    %116 = vector.load %arg2[%c1_35, %c0_36, %c0_37] : memref<2x48x16xf32, #tpu.memory_space<vmem>>, vector<1x48x16xf32>
    %117 = vector.shape_cast %116 : vector<1x48x16xf32> to vector<48x16xf32>
    %118 = tpu.transpose %117, [1, 0] : vector<48x16xf32> -> vector<16x48xf32>
    %119 = vector.extract_strided_slice %115 {offsets = [0, 0], sizes = [15, 32], strides = [1, 1]} : vector<16x32xf32> to vector<15x32xf32>
    %120 = tpu.concatenate %9, %119 in 0 : vector<1x32xf32>, vector<15x32xf32> -> vector<16x32xf32>
    %121 = vector.extract_strided_slice %115 {offsets = [1, 0], sizes = [15, 32], strides = [1, 1]} : vector<16x32xf32> to vector<15x32xf32>
    %122 = tpu.concatenate %121, %9 in 0 : vector<15x32xf32>, vector<1x32xf32> -> vector<16x32xf32>
    %123 = vector.extract_strided_slice %118 {offsets = [0, 0], sizes = [15, 48], strides = [1, 1]} : vector<16x48xf32> to vector<15x48xf32>
    %124 = tpu.concatenate %10, %123 in 0 : vector<1x48xf32>, vector<15x48xf32> -> vector<16x48xf32>
    %125 = vector.extract_strided_slice %118 {offsets = [1, 0], sizes = [15, 48], strides = [1, 1]} : vector<16x48xf32> to vector<15x48xf32>
    %126 = tpu.concatenate %125, %10 in 0 : vector<15x48xf32>, vector<1x48xf32> -> vector<16x48xf32>
    %127 = tpu.concatenate %120, %115, %122, %124, %118, %126 in 1 : vector<16x32xf32>, vector<16x32xf32>, vector<16x32xf32>, vector<16x48xf32>, vector<16x48xf32>, vector<16x48xf32> -> vector<16x240xf32>
    %cst_38 = arith.constant dense<0.000000e+00> : vector<16x64xf32>
    %128 = tpu.matmul %127, %0, %cst_38 {dimension_numbers = #tpu.dot_dimension_numbers<[1], [0], [0], [1], [0, 0, 1, 1], [], []>} : vector<16x240xf32>, vector<240x64xf32>, vector<16x64xf32> -> vector<16x64xf32>
    %129 = vector.broadcast %1 : vector<1x64xf32> to vector<16x64xf32>
    %130 = arith.addf %128, %129 : vector<16x64xf32>
    %131 = vector.extract_strided_slice %130 {offsets = [0, 32], sizes = [16, 32], strides = [1, 1]} : vector<16x64xf32> to vector<16x32xf32>
    %cst_39 = arith.constant dense<0.000000e+00> : vector<16x96xf32>
    %132 = tpu.matmul %130, %2, %cst_39 {dimension_numbers = #tpu.dot_dimension_numbers<[1], [0], [0], [1], [0, 0, 1, 1], [], []>} : vector<16x64xf32>, vector<64x96xf32>, vector<16x96xf32> -> vector<16x96xf32>
    %133 = vector.broadcast %3 : vector<1x96xf32> to vector<16x96xf32>
    %134 = arith.addf %132, %133 : vector<16x96xf32>
    %135 = vector.extract_strided_slice %134 {offsets = [0, 0], sizes = [16, 32], strides = [1, 1]} : vector<16x96xf32> to vector<16x32xf32>
    %136 = vector.extract_strided_slice %134 {offsets = [0, 32], sizes = [16, 32], strides = [1, 1]} : vector<16x96xf32> to vector<16x32xf32>
    %137 = vector.extract_strided_slice %134 {offsets = [0, 64], sizes = [16, 32], strides = [1, 1]} : vector<16x96xf32> to vector<16x32xf32>
    %138 = vector.extract_strided_slice %135 {offsets = [0, 0], sizes = [16, 8], strides = [1, 1]} : vector<16x32xf32> to vector<16x8xf32>
    %139 = vector.extract_strided_slice %135 {offsets = [0, 8], sizes = [16, 8], strides = [1, 1]} : vector<16x32xf32> to vector<16x8xf32>
    %140 = vector.extract_strided_slice %135 {offsets = [0, 16], sizes = [16, 8], strides = [1, 1]} : vector<16x32xf32> to vector<16x8xf32>
    %141 = vector.extract_strided_slice %135 {offsets = [0, 24], sizes = [16, 8], strides = [1, 1]} : vector<16x32xf32> to vector<16x8xf32>
    %142 = vector.shape_cast %138 : vector<16x8xf32> to vector<1x16x8xf32>
    %143 = vector.shape_cast %139 : vector<16x8xf32> to vector<1x16x8xf32>
    %144 = vector.shape_cast %140 : vector<16x8xf32> to vector<1x16x8xf32>
    %145 = vector.shape_cast %141 : vector<16x8xf32> to vector<1x16x8xf32>
    %146 = tpu.concatenate %142, %143, %144, %145 in 0 : vector<1x16x8xf32>, vector<1x16x8xf32>, vector<1x16x8xf32>, vector<1x16x8xf32> -> vector<4x16x8xf32>
    %147 = vector.extract_strided_slice %136 {offsets = [0, 0], sizes = [16, 8], strides = [1, 1]} : vector<16x32xf32> to vector<16x8xf32>
    %148 = vector.extract_strided_slice %136 {offsets = [0, 8], sizes = [16, 8], strides = [1, 1]} : vector<16x32xf32> to vector<16x8xf32>
    %149 = vector.extract_strided_slice %136 {offsets = [0, 16], sizes = [16, 8], strides = [1, 1]} : vector<16x32xf32> to vector<16x8xf32>
    %150 = vector.extract_strided_slice %136 {offsets = [0, 24], sizes = [16, 8], strides = [1, 1]} : vector<16x32xf32> to vector<16x8xf32>
    %151 = vector.shape_cast %147 : vector<16x8xf32> to vector<1x16x8xf32>
    %152 = vector.shape_cast %148 : vector<16x8xf32> to vector<1x16x8xf32>
    %153 = vector.shape_cast %149 : vector<16x8xf32> to vector<1x16x8xf32>
    %154 = vector.shape_cast %150 : vector<16x8xf32> to vector<1x16x8xf32>
    %155 = tpu.concatenate %151, %152, %153, %154 in 0 : vector<1x16x8xf32>, vector<1x16x8xf32>, vector<1x16x8xf32>, vector<1x16x8xf32> -> vector<4x16x8xf32>
    %156 = vector.extract_strided_slice %137 {offsets = [0, 0], sizes = [16, 8], strides = [1, 1]} : vector<16x32xf32> to vector<16x8xf32>
    %157 = vector.extract_strided_slice %137 {offsets = [0, 8], sizes = [16, 8], strides = [1, 1]} : vector<16x32xf32> to vector<16x8xf32>
    %158 = vector.extract_strided_slice %137 {offsets = [0, 16], sizes = [16, 8], strides = [1, 1]} : vector<16x32xf32> to vector<16x8xf32>
    %159 = vector.extract_strided_slice %137 {offsets = [0, 24], sizes = [16, 8], strides = [1, 1]} : vector<16x32xf32> to vector<16x8xf32>
    %160 = vector.shape_cast %156 : vector<16x8xf32> to vector<1x16x8xf32>
    %161 = vector.shape_cast %157 : vector<16x8xf32> to vector<1x16x8xf32>
    %162 = vector.shape_cast %158 : vector<16x8xf32> to vector<1x16x8xf32>
    %163 = vector.shape_cast %159 : vector<16x8xf32> to vector<1x16x8xf32>
    %164 = tpu.concatenate %160, %161, %162, %163 in 0 : vector<1x16x8xf32>, vector<1x16x8xf32>, vector<1x16x8xf32>, vector<1x16x8xf32> -> vector<4x16x8xf32>
    "tpu.trace_start"() <{level = 10 : i32, message = "htd,hsd->hts"}> : () -> ()
    %cst_40 = arith.constant dense<0.000000e+00> : vector<4x16x16xf32>
    %165 = tpu.matmul %146, %155, %cst_40 {dimension_numbers = #tpu.dot_dimension_numbers<[2], [2], [1], [1], [0, 0, 0, 1, 1, 1], [0], [0]>} : vector<4x16x8xf32>, vector<4x16x8xf32>, vector<4x16x16xf32> -> vector<4x16x16xf32>
    "tpu.trace_stop"() : () -> ()
    %cst_41 = arith.constant dense<0xFF800000> : vector<4x16xf32>
    %166 = vector.multi_reduction <maximumf>, %165, %cst_41 [2] : vector<4x16x16xf32> to vector<4x16xf32>
    %167 = vector.shape_cast %166 : vector<4x16xf32> to vector<4x16x1xf32>
    %168 = vector.broadcast %167 : vector<4x16x1xf32> to vector<4x16x16xf32>
    %169 = arith.subf %165, %168 : vector<4x16x16xf32>
    %170 = math.exp %169 : vector<4x16x16xf32>
    %cst_42 = arith.constant dense<0.000000e+00> : vector<4x16xf32>
    %171 = vector.multi_reduction <add>, %170, %cst_42 [2] : vector<4x16x16xf32> to vector<4x16xf32>
    %172 = vector.shape_cast %171 : vector<4x16xf32> to vector<4x16x1xf32>
    "tpu.trace_start"() <{level = 10 : i32, message = "hts,hsd->htd"}> : () -> ()
    %cst_43 = arith.constant dense<0.000000e+00> : vector<4x16x8xf32>
    %173 = tpu.matmul %170, %164, %cst_43 {dimension_numbers = #tpu.dot_dimension_numbers<[2], [1], [1], [2], [0, 0, 0, 1, 1, 2], [0], [0]>} : vector<4x16x16xf32>, vector<4x16x8xf32>, vector<4x16x8xf32> -> vector<4x16x8xf32>
    "tpu.trace_stop"() : () -> ()
    %174 = vector.broadcast %172 : vector<4x16x1xf32> to vector<4x16x8xf32>
    %175 = arith.divf %173, %174 : vector<4x16x8xf32>
    %176 = vector.extract_strided_slice %175 {offsets = [0, 0, 0], sizes = [1, 16, 8], strides = [1, 1, 1]} : vector<4x16x8xf32> to vector<1x16x8xf32>
    %177 = vector.shape_cast %176 : vector<1x16x8xf32> to vector<16x8xf32>
    %178 = vector.extract_strided_slice %175 {offsets = [1, 0, 0], sizes = [1, 16, 8], strides = [1, 1, 1]} : vector<4x16x8xf32> to vector<1x16x8xf32>
    %179 = vector.shape_cast %178 : vector<1x16x8xf32> to vector<16x8xf32>
    %180 = vector.extract_strided_slice %175 {offsets = [2, 0, 0], sizes = [1, 16, 8], strides = [1, 1, 1]} : vector<4x16x8xf32> to vector<1x16x8xf32>
    %181 = vector.shape_cast %180 : vector<1x16x8xf32> to vector<16x8xf32>
    %182 = vector.extract_strided_slice %175 {offsets = [3, 0, 0], sizes = [1, 16, 8], strides = [1, 1, 1]} : vector<4x16x8xf32> to vector<1x16x8xf32>
    %183 = vector.shape_cast %182 : vector<1x16x8xf32> to vector<16x8xf32>
    %184 = tpu.concatenate %177, %179, %181, %183 in 1 : vector<16x8xf32>, vector<16x8xf32>, vector<16x8xf32>, vector<16x8xf32> -> vector<16x32xf32>
    %cst_44 = arith.constant dense<0.000000e+00> : vector<16x32xf32>
    %185 = tpu.matmul %184, %4, %cst_44 {dimension_numbers = #tpu.dot_dimension_numbers<[1], [0], [0], [1], [0, 0, 1, 1], [], []>} : vector<16x32xf32>, vector<32x32xf32>, vector<16x32xf32> -> vector<16x32xf32>
    %186 = vector.broadcast %6 : vector<1x32xf32> to vector<16x32xf32>
    %187 = arith.addf %185, %186 : vector<16x32xf32>
    %188 = arith.addf %131, %187 : vector<16x32xf32>
    %cst_45 = arith.constant dense<0.000000e+00> : vector<16xf32>
    %189 = vector.multi_reduction <add>, %188, %cst_45 [1] : vector<16x32xf32> to vector<16xf32>
    %190 = vector.shape_cast %189 : vector<16xf32> to vector<16x1xf32>
    %cst_46 = arith.constant 3.200000e+01 : f32
    %191 = vector.broadcast %cst_46 : f32 to vector<16x1xf32>
    %192 = arith.divf %190, %191 : vector<16x1xf32>
    %193 = vector.broadcast %192 : vector<16x1xf32> to vector<16x32xf32>
    %194 = arith.subf %188, %193 : vector<16x32xf32>
    %195 = arith.mulf %194, %194 : vector<16x32xf32>
    %cst_47 = arith.constant dense<0.000000e+00> : vector<16xf32>
    %196 = vector.multi_reduction <add>, %195, %cst_47 [1] : vector<16x32xf32> to vector<16xf32>
    %197 = vector.shape_cast %196 : vector<16xf32> to vector<16x1xf32>
    %cst_48 = arith.constant 3.200000e+01 : f32
    %198 = vector.broadcast %cst_48 : f32 to vector<16x1xf32>
    %199 = arith.divf %197, %198 : vector<16x1xf32>
    %200 = vector.broadcast %192 : vector<16x1xf32> to vector<16x32xf32>
    %201 = arith.subf %188, %200 : vector<16x32xf32>
    %cst_49 = arith.constant 9.99999974E-6 : f32
    %202 = vector.broadcast %cst_49 : f32 to vector<16x1xf32>
    %203 = arith.addf %199, %202 : vector<16x1xf32>
    %204 = math.rsqrt %203 : vector<16x1xf32>
    %205 = vector.broadcast %204 : vector<16x1xf32> to vector<16x32xf32>
    %206 = arith.mulf %201, %205 : vector<16x32xf32>
    %207 = vector.broadcast %7 : vector<1x32xf32> to vector<16x32xf32>
    %208 = arith.mulf %206, %207 : vector<16x32xf32>
    %209 = vector.broadcast %8 : vector<1x32xf32> to vector<16x32xf32>
    %210 = arith.addf %208, %209 : vector<16x32xf32>
    %211 = tpu.transpose %210, [1, 0] : vector<16x32xf32> -> vector<32x16xf32>
    %c1_50 = arith.constant 1 : index
    %c0_51 = arith.constant 0 : index
    %c0_52 = arith.constant 0 : index
    %212 = vector.load %arg9[%c1_50, %c0_51, %c0_52] : memref<2x32x16xf32, #tpu.memory_space<vmem>>, vector<1x32x16xf32>
    %213 = vector.shape_cast %212 : vector<1x32x16xf32> to vector<32x16xf32>
    %214 = vector.shape_cast %211 : vector<32x16xf32> to vector<1x32x16xf32>
    tpu.vector_store %arg9[%c1_50, %c0_51, %c0_52], %214 {strides = array<i32>} : memref<2x32x16xf32, #tpu.memory_space<vmem>>, vector<1x32x16xf32>,
    return
  }
  func.func @transform_0(%arg0: i32) -> (i32, i32, i32) {
    %c0_i32 = arith.constant 0 : i32
    %c0_i32_0 = arith.constant 0 : i32
    %c0_i32_1 = arith.constant 0 : i32
    %c0_i32_2 = arith.constant 0 : i32
    return %c0_i32, %c0_i32_0, %c0_i32_1 : i32, i32, i32
  }
  func.func @transform_1(%arg0: i32) -> (i32, i32, i32) {
    %c0_i32 = arith.constant 0 : i32
    %c0_i32_0 = arith.constant 0 : i32
    %c0_i32_1 = arith.constant 0 : i32
    %c0_i32_2 = arith.constant 0 : i32
    return %c0_i32, %c0_i32_0, %c0_i32_1 : i32, i32, i32
  }
  func.func @transform_2(%arg0: i32) -> (i32, i32) {
    %c0_i32 = arith.constant 0 : i32
    %c0_i32_0 = arith.constant 0 : i32
    %c0_i32_1 = arith.constant 0 : i32
    return %c0_i32, %c0_i32_0 : i32, i32
  }
  func.func @transform_3(%arg0: i32) -> (i32, i32) {
    %c0_i32 = arith.constant 0 : i32
    %c0_i32_0 = arith.constant 0 : i32
    %c0_i32_1 = arith.constant 0 : i32
    return %c0_i32, %c0_i32_0 : i32, i32
  }
  func.func @transform_4(%arg0: i32) -> (i32, i32) {
    %c0_i32 = arith.constant 0 : i32
    %c0_i32_0 = arith.constant 0 : i32
    %c0_i32_1 = arith.constant 0 : i32
    return %c0_i32, %c0_i32_0 : i32, i32
  }
  func.func @transform_5(%arg0: i32) -> (i32, i32) {
    %c0_i32 = arith.constant 0 : i32
    %c0_i32_0 = arith.constant 0 : i32
    %c0_i32_1 = arith.constant 0 : i32
    return %c0_i32, %c0_i32_0 : i32, i32
  }
  func.func @transform_6(%arg0: i32) -> (i32, i32) {
    %c0_i32 = arith.constant 0 : i32
    %c0_i32_0 = arith.constant 0 : i32
    %c0_i32_1 = arith.constant 0 : i32
    return %c0_i32, %c0_i32_0 : i32, i32
  }
  func.func @transform_7(%arg0: i32) -> (i32, i32) {
    %c0_i32 = arith.constant 0 : i32
    %c0_i32_0 = arith.constant 0 : i32
    %c0_i32_1 = arith.constant 0 : i32
    return %c0_i32, %c0_i32_0 : i32, i32
  }
  func.func @transform_8(%arg0: i32) -> (i32, i32, i32) {
    %c0_i32 = arith.constant 0 : i32
    %c0_i32_0 = arith.constant 0 : i32
    %c0_i32_1 = arith.constant 0 : i32
    %c0_i32_2 = arith.constant 0 : i32
    return %c0_i32, %c0_i32_0, %c0_i32_1 : i32, i32, i32
  }
}

</mosaic_0001>

<llo_original>
// kernel: tpu_custom_call.1
$region0: #{tpu_custom_call.1}
  #allocation0 [shape = 'u32[]', space=smem, size = 0x4, offset = 0x4, fixed_abs, tag = 'smem constant byte address 0x4 - core index']
  #allocation1 [shape = 'u32[144,128]{1,0:T(1,128)}', space=vmem, size = 0x12000, scoped, tag = 'internal scratch']
  %s0 = inlined_call_operand.vmem [shape: f32[2,32,16], index: 0, kind: input, shape index: {}]
  %s1 = inlined_call_operand.vmem [shape: f32[2,48,16], index: 1, kind: input, shape index: {}]
  %s2 = inlined_call_operand.vmem [shape: f32[240,64], index: 2, kind: input, shape index: {}]
  %s3 = inlined_call_operand.vmem [shape: f32[1,64], index: 3, kind: input, shape index: {}]
  %s4 = inlined_call_operand.vmem [shape: f32[64,96], index: 4, kind: input, shape index: {}]
  %s5 = inlined_call_operand.vmem [shape: f32[1,96], index: 5, kind: input, shape index: {}]
  %s6 = inlined_call_operand.vmem [shape: f32[32,32], index: 6, kind: input, shape index: {}]
  %s7 = inlined_call_operand.vmem [shape: f32[3,32], index: 7, kind: input, shape index: {}]
  %s8 = inlined_call_operand.vmem [shape: f32[2,32,16], index: 8, kind: output, shape index: {}]
  %s9 = sld [smem:[#allocation0]]
  $region42: #{tpu_custom_call.1} parent=0
    _
  %s11 = ssub.s32 1, %s9
  %s12 = scalar_select 0, %s11, %s9
  // Predicated region
  $region2: #{tpu_custom_call.1} parent=0 // pred_check
    _
  $region3: #{tpu_custom_call.1} parent=0 // pred_check_branch
    %14 = sbr.rel (0) target = $region5
  $region4: #{tpu_custom_call.1} parent=0 // pred_region
    _
  $region5: #{tpu_custom_call.1} parent=0 // pred_fallthru
    _
  // Predicated region
  $region6: #{tpu_custom_call.1} parent=0 // pred_check
    _
  $region7: #{tpu_custom_call.1} parent=0 // pred_check_branch
    %16 = sbr.rel (0) target = $region9
  $region8: #{tpu_custom_call.1} parent=0 // pred_region
    _
  $region9: #{tpu_custom_call.1} parent=0 // pred_fallthru
    _
  // Predicated region
  $region10: #{tpu_custom_call.1} parent=0 // pred_check
    _
  $region11: #{tpu_custom_call.1} parent=0 // pred_check_branch
    %18 = sbr.rel (0) target = $region13
  $region12: #{tpu_custom_call.1} parent=0 // pred_region
    _
  $region13: #{tpu_custom_call.1} parent=0 // pred_fallthru
    _
  // Predicated region
  $region14: #{tpu_custom_call.1} parent=0 // pred_check
    _
  $region15: #{tpu_custom_call.1} parent=0 // pred_check_branch
    %20 = sbr.rel (0) target = $region17
  $region16: #{tpu_custom_call.1} parent=0 // pred_region
    _
  $region17: #{tpu_custom_call.1} parent=0 // pred_fallthru
    _
  // Predicated region
  $region18: #{tpu_custom_call.1} parent=0 // pred_check
    _
  $region19: #{tpu_custom_call.1} parent=0 // pred_check_branch
    %22 = sbr.rel (0) target = $region21
  $region20: #{tpu_custom_call.1} parent=0 // pred_region
    _
  $region21: #{tpu_custom_call.1} parent=0 // pred_fallthru
    _
  // Predicated region
  $region22: #{tpu_custom_call.1} parent=0 // pred_check
    _
  $region23: #{tpu_custom_call.1} parent=0 // pred_check_branch
    %24 = sbr.rel (0) target = $region25
  $region24: #{tpu_custom_call.1} parent=0 // pred_region
    _
  $region25: #{tpu_custom_call.1} parent=0 // pred_fallthru
    _
  // Predicated region
  $region26: #{tpu_custom_call.1} parent=0 // pred_check
    _
  $region27: #{tpu_custom_call.1} parent=0 // pred_check_branch
    %26 = sbr.rel (0) target = $region29
  $region28: #{tpu_custom_call.1} parent=0 // pred_region
    _
  $region29: #{tpu_custom_call.1} parent=0 // pred_fallthru
    _
  // Predicated region
  $region30: #{tpu_custom_call.1} parent=0 // pred_check
    _
  $region31: #{tpu_custom_call.1} parent=0 // pred_check_branch
    %28 = sbr.rel (0) target = $region33
  $region32: #{tpu_custom_call.1} parent=0 // pred_region
    _
  $region33: #{tpu_custom_call.1} parent=0 // pred_fallthru
    _
  %v29 = vld [vmem:[%s2] sm:$0xff]
  %v30 = vld [vmem:[%s2 + $0x8] sm:$0xff]
  %v31 = vld [vmem:[%s2 + $0x10] sm:$0xff]
  %v32 = vld [vmem:[%s2 + $0x18] sm:$0xff]
  %v33 = vld [vmem:[%s2 + $0x20] sm:$0xff]
  %v34 = vld [vmem:[%s2 + $0x28] sm:$0xff]
  %v35 = vld [vmem:[%s2 + $0x30] sm:$0xff]
  %v36 = vld [vmem:[%s2 + $0x38] sm:$0xff]
  %v37 = vld [vmem:[%s2 + $0x40] sm:$0xff]
  %v38 = vld [vmem:[%s2 + $0x48] sm:$0xff]
  %v39 = vld [vmem:[%s2 + $0x50] sm:$0xff]
  %v40 = vld [vmem:[%s2 + $0x58] sm:$0xff]
  %v41 = vld [vmem:[%s2 + $0x60] sm:$0xff]
  %v42 = vld [vmem:[%s2 + $0x68] sm:$0xff]
  %v43 = vld [vmem:[%s2 + $0x70] sm:$0xff]
  %v44 = vld [vmem:[%s2 + $0x78] sm:$0xff]
  %v45 = vld [vmem:[%s2 + $0x80] sm:$0xff]
  %v46 = vld [vmem:[%s2 + $0x88] sm:$0xff]
  %v47 = vld [vmem:[%s2 + $0x90] sm:$0xff]
  %v48 = vld [vmem:[%s2 + $0x98] sm:$0xff]
  %v49 = vld [vmem:[%s2 + $0xa0] sm:$0xff]
  %v50 = vld [vmem:[%s2 + $0xa8] sm:$0xff]
  %v51 = vld [vmem:[%s2 + $0xb0] sm:$0xff]
  %v52 = vld [vmem:[%s2 + $0xb8] sm:$0xff]
  %v53 = vld [vmem:[%s2 + $0xc0] sm:$0xff]
  %v54 = vld [vmem:[%s2 + $0xc8] sm:$0xff]
  %v55 = vld [vmem:[%s2 + $0xd0] sm:$0xff]
  %v56 = vld [vmem:[%s2 + $0xd8] sm:$0xff]
  %v57 = vld [vmem:[%s2 + $0xe0] sm:$0xff]
  %v58 = vld [vmem:[%s2 + $0xe8] sm:$0xff]
  %v59 = vld [vmem:[%s3] sm:$0x1]
  %v60 = vld [vmem:[%s4] sm:$0xff]
  %v61 = vld [vmem:[%s4 + $0x8] sm:$0xff]
  %v62 = vld [vmem:[%s4 + $0x10] sm:$0xff]
  %v63 = vld [vmem:[%s4 + $0x18] sm:$0xff]
  %v64 = vld [vmem:[%s4 + $0x20] sm:$0xff]
  %v65 = vld [vmem:[%s4 + $0x28] sm:$0xff]
  %v66 = vld [vmem:[%s4 + $0x30] sm:$0xff]
  %v67 = vld [vmem:[%s4 + $0x38] sm:$0xff]
  %v68 = vld [vmem:[%s5] sm:$0x1]
  %v69 = vld [vmem:[%s6] sm:$0xff]
  %v70 = vld [vmem:[%s6 + $0x8] sm:$0xff]
  %v71 = vld [vmem:[%s6 + $0x10] sm:$0xff]
  %v72 = vld [vmem:[%s6 + $0x18] sm:$0xff]
  %v73 = vld [vmem:[%s7] sm:$0x7]
  %v74 = vld [vmem:[%s0] sm:$0xff]
  %v75 = vld [vmem:[%s0 + $0x8] sm:$0xff]
  %v76 = vld [vmem:[%s0 + $0x10] sm:$0xff]
  %v77 = vld [vmem:[%s0 + $0x18] sm:$0xff]
  %78 = vxpose.xlu0.b32.start [1/16] %v74, 128
  %79 = vxpose.xlu0.b32.cont [2/16] %v75, 128
  %80 = vxpose.xlu0.b32.cont [3/16] %v76, 128
  %81 = vxpose.xlu0.b32.cont [4/16] %v77, 128
  %82 = vxpose.xlu0.b32.cont [5/16] 0.0, 128
  %83 = vxpose.xlu0.b32.cont [6/16] 0.0, 128
  %84 = vxpose.xlu0.b32.cont [7/16] 0.0, 128
  %85 = vxpose.xlu0.b32.cont [8/16] 0.0, 128
  %86 = vxpose.xlu0.b32.cont [9/16] 0.0, 128
  %87 = vxpose.xlu0.b32.cont [10/16] 0.0, 128
  %88 = vxpose.xlu0.b32.cont [11/16] 0.0, 128
  %89 = vxpose.xlu0.b32.cont [12/16] 0.0, 128
  %90 = vxpose.xlu0.b32.cont [13/16] 0.0, 128
  %91 = vxpose.xlu0.b32.cont [14/16] 0.0, 128
  %92 = vxpose.xlu0.b32.cont [15/16] 0.0, 128
  %93 = vxpose.xlu0.b32.end [16/16] 0.0, 128
  %v94 = vpop.trf.xlu0
  %v95 = vpop.trf.xlu0
  %v96 = vpop.trf.xlu0
  %v97 = vpop.trf.xlu0
  %v98 = vpop.trf.xlu0
  %v99 = vpop.trf.xlu0
  %v100 = vpop.trf.xlu0
  %v101 = vpop.trf.xlu0
  %v102 = vpop.trf.xlu0
  %v103 = vpop.trf.xlu0
  %v104 = vpop.trf.xlu0
  %v105 = vpop.trf.xlu0
  %v106 = vpop.trf.xlu0
  %v107 = vpop.trf.xlu0
  %v108 = vpop.trf.xlu0
  %v109 = vpop.trf.xlu0
  %v110 = vld [vmem:[%s1] sm:$0xff]
  %v111 = vld [vmem:[%s1 + $0x8] sm:$0xff]
  %v112 = vld [vmem:[%s1 + $0x10] sm:$0xff]
  %v113 = vld [vmem:[%s1 + $0x18] sm:$0xff]
  %v114 = vld [vmem:[%s1 + $0x20] sm:$0xff]
  %v115 = vld [vmem:[%s1 + $0x28] sm:$0xff]
  %116 = vxpose.xlu0.b32.start [1/16] %v110, 128
  %117 = vxpose.xlu0.b32.cont [2/16] %v111, 128
  %118 = vxpose.xlu0.b32.cont [3/16] %v112, 128
  %119 = vxpose.xlu0.b32.cont [4/16] %v113, 128
  %120 = vxpose.xlu0.b32.cont [5/16] %v114, 128
  %121 = vxpose.xlu0.b32.cont [6/16] %v115, 128
  %122 = vxpose.xlu0.b32.cont [7/16] 0.0, 128
  %123 = vxpose.xlu0.b32.cont [8/16] 0.0, 128
  %124 = vxpose.xlu0.b32.cont [9/16] 0.0, 128
  %125 = vxpose.xlu0.b32.cont [10/16] 0.0, 128
  %126 = vxpose.xlu0.b32.cont [11/16] 0.0, 128
  %127 = vxpose.xlu0.b32.cont [12/16] 0.0, 128
  %128 = vxpose.xlu0.b32.cont [13/16] 0.0, 128
  %129 = vxpose.xlu0.b32.cont [14/16] 0.0, 128
  %130 = vxpose.xlu0.b32.cont [15/16] 0.0, 128
  %131 = vxpose.xlu0.b32.end [16/16] 0.0, 128
  %v132 = vpop.trf.xlu0
  %v133 = vpop.trf.xlu0
  %v134 = vpop.trf.xlu0
  %v135 = vpop.trf.xlu0
  %v136 = vpop.trf.xlu0
  %v137 = vpop.trf.xlu0
  %v138 = vpop.trf.xlu0
  %v139 = vpop.trf.xlu0
  %v140 = vpop.trf.xlu0
  %v141 = vpop.trf.xlu0
  %v142 = vpop.trf.xlu0
  %v143 = vpop.trf.xlu0
  %v144 = vpop.trf.xlu0
  %v145 = vpop.trf.xlu0
  %v146 = vpop.trf.xlu0
  %v147 = vpop.trf.xlu0
  %vm150 = vcmask 1040384
  %v151 = vrot.slane %v94, 7
  %v152 = vrot.slane %v95, 7
  %v153 = vsel %vm150, %v151, %v152
  %v156 = vsel %vm150, 0.0, %v151
  %vm157 = vcmask 1046528
  %v158 = vrot.slane %v94, 1
  %v159 = vrot.slane %v95, 1
  %v160 = vsel %vm157, %v158, %v159
  %v162 = vsel %vm157, %v159, 0.0
  %v165 = vrot.slane %v132, 7
  %v166 = vrot.slane %v133, 7
  %v167 = vsel %vm150, %v165, %v166
  %v169 = vsel %vm150, 0.0, %v165
  %v170 = vrot.slane %v132, 1
  %v171 = vrot.slane %v133, 1
  %v172 = vsel %vm157, %v170, %v171
  %v174 = vsel %vm157, %v171, 0.0
  %175 = vrot.lane.b32.xlu0 %v94, 32
  %v176 = vpop.permute.xlu0 %175
  %177 = vrot.lane.b32.xlu0 %v95, 32
  %v178 = vpop.permute.xlu0 %177
  %182 = vrot.lane.b32.xlu0 %v160, 64
  %v183 = vpop.permute.xlu0 %182
  %184 = vrot.lane.b32.xlu0 %v162, 64
  %v185 = vpop.permute.xlu0 %184
  %189 = vrot.lane.b32.xlu0 %v169, 96
  %v190 = vpop.permute.xlu0 %189
  %191 = vrot.lane.b32.xlu0 %v167, 96
  %v192 = vpop.permute.xlu0 %191
  %195 = vrot.lane.b32.xlu0 %v132, 16
  %v196 = vpop.permute.xlu0 %195
  %197 = vrot.lane.b32.xlu0 %v133, 16
  %v198 = vpop.permute.xlu0 %197
  %202 = vrot.lane.b32.xlu0 %v172, 64
  %v203 = vpop.permute.xlu0 %202
  %204 = vrot.lane.b32.xlu0 %v174, 64
  %v205 = vpop.permute.xlu0 %204
  %vm208 = vcmask 261120
  %v209 = vsel %vm208, %v156, %v176
  %v210 = vsel %vm208, %v153, %v178
  %vm211 = vcmask 523264
  %v212 = vsel %vm211, %v209, %v183
  %v213 = vsel %vm211, %v210, %v185
  %vm214 = vcmask 785408
  %v215 = vsel %vm214, %v212, %v190
  %v216 = vsel %vm214, %v213, %v192
  %vm217 = vcmask 130048
  %v218 = vsel %vm217, %v190, %v196
  %v219 = vsel %vm217, %v192, %v198
  %v220 = vsel %vm211, %v218, %v203
  %v221 = vsel %vm211, %v219, %v205
  %v223 = vlaneseq
  %v224 = vshrl.u32 %v223, 7
  %v225 = vsub.s32 0, %v224
  %v226 = vrot.slane %v59, %v225
  %vm228 = vcmask 916480
  %v230 = vsel %vm228, %v220, 0
  %v233 = vsel %vm228, %v221, 0
  %235 = vmatprep.subr.mxu0 0.0
  %236 = vmatpush1.msra.mxu0 %v29
  %237 = vmatprep.subr.mxu0 0.0
  %238 = vmatpush1.msra.mxu0 %v30
  %239 = vmatprep.subr.mxu0 0.0
  %240 = vmatpush1.msra.mxu0 %v31
  %241 = vmatprep.subr.mxu0 0.0
  %242 = vmatpush1.msra.mxu0 %v32
  %243 = vmatprep.subr.mxu0 0.0
  %244 = vmatpush1.msra.mxu0 %v33
  %245 = vmatprep.subr.mxu0 0.0
  %246 = vmatpush1.msra.mxu0 %v34
  %247 = vmatprep.subr.mxu0 0.0
  %248 = vmatpush1.msra.mxu0 %v35
  %249 = vmatprep.subr.mxu0 0.0
  %250 = vmatpush1.msra.mxu0 %v36
  %251 = vmatprep.subr.mxu0 0.0
  %252 = vmatpush1.msra.mxu0 %v37
  %253 = vmatprep.subr.mxu0 0.0
  %254 = vmatpush1.msra.mxu0 %v38
  %255 = vmatprep.subr.mxu0 0.0
  %256 = vmatpush1.msra.mxu0 %v39
  %257 = vmatprep.subr.mxu0 0.0
  %258 = vmatpush1.msra.mxu0 %v40
  %259 = vmatprep.subr.mxu0 0.0
  %260 = vmatpush1.msra.mxu0 %v41
  %261 = vmatprep.subr.mxu0 0.0
  %262 = vmatpush1.msra.mxu0 %v42
  %263 = vmatprep.subr.mxu0 0.0
  %264 = vmatpush1.msra.mxu0 %v43
  %265 = vmatprep.subr.mxu0 0.0
  %266 = vmatpush1.msra.mxu0 %v44
  %267 = vmatprep.subr.mxu0 0.0
  %268 = vmatpush1.msra.mxu0 %v45
  %269 = vmatprep.subr.mxu0 0.0
  %270 = vmatpush1.msra.mxu0 %v46
  %271 = vmatprep.subr.mxu0 0.0
  %272 = vmatpush1.msra.mxu0 %v47
  %273 = vmatprep.subr.mxu0 0.0
  %274 = vmatpush1.msra.mxu0 %v48
  %275 = vmatprep.subr.mxu0 0.0
  %276 = vmatpush1.msra.mxu0 %v49
  %277 = vmatprep.subr.mxu0 0.0
  %278 = vmatpush1.msra.mxu0 %v50
  %279 = vmatprep.subr.mxu0 0.0
  %280 = vmatpush1.msra.mxu0 %v51
  %281 = vmatprep.subr.mxu0 0.0
  %282 = vmatpush1.msra.mxu0 %v52
  %283 = vmatprep.subr.mxu0 0.0
  %284 = vmatpush1.msra.mxu0 %v53
  %285 = vmatprep.subr.mxu0 0.0
  %286 = vmatpush1.msra.mxu0 %v54
  %287 = vmatprep.subr.mxu0 0.0
  %288 = vmatpush1.msra.mxu0 %v55
  %289 = vmatprep.subr.mxu0 0.0
  %290 = vmatpush1.msra.mxu0 %v56
  %291 = vmatprep.subr.mxu0 0.0
  %292 = vmatpush1.msra.mxu0 %v57
  %293 = vmatprep.subr.mxu0 0.0
  %294 = vmatpush1.msra.mxu0 %v58
  %295 = vmatprep.subr.mxu0 0.0
  %296 = vmatpush1.msra.mxu0 0.0
  %297 = vmatprep.subr.mxu0 0.0
  %298 = vmatpush1.msra.mxu0 0.0
  %299 = vmatprep.mubr.f32.mxu0 %v230
  %300 = vmatmul.mubr.f32.gmra.mrb[0].mxu0 %v215
  %v301 = vpop.f32.mrb[0].mxu0
  %v302 = vadd.f32 %v226, %v301
  %v303 = vpop.f32.mrb[0].mxu0
  %304 = vmatprep.mubr.f32.mxu0 %v233
  %305 = vmatmul.mubr.f32.gmra.mrb[0].mxu0 %v216
  %v306 = vpop.f32.mrb[0].mxu0
  %v307 = vadd.f32 %v226, %v306
  %v308 = vpop.f32.mrb[0].mxu0
  %309 = vdwg.mxu0
  %v311 = vlaneseq
  %v312 = vshrl.u32 %v311, 7
  %v313 = vsub.s32 0, %v312
  %v314 = vrot.slane %v68, %v313
  %v317 = vsel %vm211, %v302, 0
  %v320 = vsel %vm211, %v307, 0
  %322 = vmatprep.subr.mxu0 0.0
  %323 = vmatpush1.msra.mxu0 %v60
  %324 = vmatprep.subr.mxu0 0.0
  %325 = vmatpush1.msra.mxu0 %v61
  %326 = vmatprep.subr.mxu0 0.0
  %327 = vmatpush1.msra.mxu0 %v62
  %328 = vmatprep.subr.mxu0 0.0
  %329 = vmatpush1.msra.mxu0 %v63
  %330 = vmatprep.subr.mxu0 0.0
  %331 = vmatpush1.msra.mxu0 %v64
  %332 = vmatprep.subr.mxu0 0.0
  %333 = vmatpush1.msra.mxu0 %v65
  %334 = vmatprep.subr.mxu0 0.0
  %335 = vmatpush1.msra.mxu0 %v66
  %336 = vmatprep.subr.mxu0 0.0
  %337 = vmatpush1.msra.mxu0 %v67
  %338 = vmatprep.subr.mxu0 0.0
  %339 = vmatpush1.msra.mxu0 0.0
  %340 = vmatprep.subr.mxu0 0.0
  %341 = vmatpush1.msra.mxu0 0.0
  %342 = vmatprep.subr.mxu0 0.0
  %343 = vmatpush1.msra.mxu0 0.0
  %344 = vmatprep.subr.mxu0 0.0
  %345 = vmatpush1.msra.mxu0 0.0
  %346 = vmatprep.subr.mxu0 0.0
  %347 = vmatpush1.msra.mxu0 0.0
  %348 = vmatprep.subr.mxu0 0.0
  %349 = vmatpush1.msra.mxu0 0.0
  %350 = vmatprep.subr.mxu0 0.0
  %351 = vmatpush1.msra.mxu0 0.0
  %352 = vmatprep.subr.mxu0 0.0
  %353 = vmatpush1.msra.mxu0 0.0
  %354 = vmatprep.subr.mxu0 0.0
  %355 = vmatpush1.msra.mxu0 0.0
  %356 = vmatprep.subr.mxu0 0.0
  %357 = vmatpush1.msra.mxu0 0.0
  %358 = vmatprep.subr.mxu0 0.0
  %359 = vmatpush1.msra.mxu0 0.0
  %360 = vmatprep.subr.mxu0 0.0
  %361 = vmatpush1.msra.mxu0 0.0
  %362 = vmatprep.subr.mxu0 0.0
  %363 = vmatpush1.msra.mxu0 0.0
  %364 = vmatprep.subr.mxu0 0.0
  %365 = vmatpush1.msra.mxu0 0.0
  %366 = vmatprep.subr.mxu0 0.0
  %367 = vmatpush1.msra.mxu0 0.0
  %368 = vmatprep.subr.mxu0 0.0
  %369 = vmatpush1.msra.mxu0 0.0
  %370 = vmatprep.subr.mxu0 0.0
  %371 = vmatpush1.msra.mxu0 0.0
  %372 = vmatprep.subr.mxu0 0.0
  %373 = vmatpush1.msra.mxu0 0.0
  %374 = vmatprep.subr.mxu0 0.0
  %375 = vmatpush1.msra.mxu0 0.0
  %376 = vmatprep.subr.mxu0 0.0
  %377 = vmatpush1.msra.mxu0 0.0
  %378 = vmatprep.subr.mxu0 0.0
  %379 = vmatpush1.msra.mxu0 0.0
  %380 = vmatprep.subr.mxu0 0.0
  %381 = vmatpush1.msra.mxu0 0.0
  %382 = vmatprep.subr.mxu0 0.0
  %383 = vmatpush1.msra.mxu0 0.0
  %384 = vmatprep.subr.mxu0 0.0
  %385 = vmatpush1.msra.mxu0 0.0
  %386 = vmatprep.mubr.f32.mxu0 0.0
  %387 = vmatmul.mubr.f32.gmra.mrb[0].mxu0 %v317
  %v388 = vpop.f32.mrb[0].mxu0
  %v389 = vadd.f32 %v314, %v388
  %v390 = vpop.f32.mrb[0].mxu0
  %391 = vmatprep.mubr.f32.mxu0 0.0
  %392 = vmatmul.mubr.f32.gmra.mrb[0].mxu0 %v320
  %v393 = vpop.f32.mrb[0].mxu0
  %v394 = vadd.f32 %v314, %v393
  %v395 = vpop.f32.mrb[0].mxu0
  %396 = vdwg.mxu0
  %399 = vrot.lane.b32.xlu0 %v389, 120
  %v400 = vpop.permute.xlu0 %399
  %401 = vrot.lane.b32.xlu0 %v394, 120
  %v402 = vpop.permute.xlu0 %401
  %403 = vrot.lane.b32.xlu0 %v389, 112
  %v404 = vpop.permute.xlu0 %403
  %405 = vrot.lane.b32.xlu0 %v394, 112
  %v406 = vpop.permute.xlu0 %405
  %407 = vrot.lane.b32.xlu0 %v389, 104
  %v408 = vpop.permute.xlu0 %407
  %409 = vrot.lane.b32.xlu0 %v394, 104
  %v410 = vpop.permute.xlu0 %409
  %411 = vrot.lane.b32.xlu0 %v389, 96
  %v412 = vpop.permute.xlu0 %411
  %413 = vrot.lane.b32.xlu0 %v394, 96
  %v414 = vpop.permute.xlu0 %413
  %vm415 = vcmask 64512
  %v416 = vsel %vm415, %v389, 0
  %v418 = vsel %vm415, %v394, 0
  %v420 = vsel %vm415, %v412, 0
  %v422 = vsel %vm415, %v414, 0
  %424 = vmatprep.subr.mxu0 0.0
  %425 = vmatpush1.xpose.msra.mxu0 %v420
  %426 = vmatprep.subr.mxu0 0.0
  %427 = vmatpush1.xpose.msra.mxu0 %v422
  %428 = vmatprep.subr.mxu0 0.0
  %429 = vmatpush1.xpose.msra.mxu0 0.0
  %430 = vmatprep.subr.mxu0 0.0
  %431 = vmatpush1.xpose.msra.mxu0 0.0
  %432 = vmatprep.subr.mxu0 0.0
  %433 = vmatpush1.xpose.msra.mxu0 0.0
  %434 = vmatprep.subr.mxu0 0.0
  %435 = vmatpush1.xpose.msra.mxu0 0.0
  %436 = vmatprep.subr.mxu0 0.0
  %437 = vmatpush1.xpose.msra.mxu0 0.0
  %438 = vmatprep.subr.mxu0 0.0
  %439 = vmatpush1.xpose.msra.mxu0 0.0
  %440 = vmatprep.subr.mxu0 0.0
  %441 = vmatpush1.xpose.msra.mxu0 0.0
  %442 = vmatprep.subr.mxu0 0.0
  %443 = vmatpush1.xpose.msra.mxu0 0.0
  %444 = vmatprep.subr.mxu0 0.0
  %445 = vmatpush1.xpose.msra.mxu0 0.0
  %446 = vmatprep.subr.mxu0 0.0
  %447 = vmatpush1.xpose.msra.mxu0 0.0
  %448 = vmatprep.subr.mxu0 0.0
  %449 = vmatpush1.xpose.msra.mxu0 0.0
  %450 = vmatprep.subr.mxu0 0.0
  %451 = vmatpush1.xpose.msra.mxu0 0.0
  %452 = vmatprep.subr.mxu0 0.0
  %453 = vmatpush1.xpose.msra.mxu0 0.0
  %454 = vmatprep.subr.mxu0 0.0
  %455 = vmatpush1.xpose.msra.mxu0 0.0
  %456 = vmatprep.subr.mxu0 0.0
  %457 = vmatpush1.xpose.msra.mxu0 0.0
  %458 = vmatprep.subr.mxu0 0.0
  %459 = vmatpush1.xpose.msra.mxu0 0.0
  %460 = vmatprep.subr.mxu0 0.0
  %461 = vmatpush1.xpose.msra.mxu0 0.0
  %462 = vmatprep.subr.mxu0 0.0
  %463 = vmatpush1.xpose.msra.mxu0 0.0
  %464 = vmatprep.subr.mxu0 0.0
  %465 = vmatpush1.xpose.msra.mxu0 0.0
  %466 = vmatprep.subr.mxu0 0.0
  %467 = vmatpush1.xpose.msra.mxu0 0.0
  %468 = vmatprep.subr.mxu0 0.0
  %469 = vmatpush1.xpose.msra.mxu0 0.0
  %470 = vmatprep.subr.mxu0 0.0
  %471 = vmatpush1.xpose.msra.mxu0 0.0
  %472 = vmatprep.subr.mxu0 0.0
  %473 = vmatpush1.xpose.msra.mxu0 0.0
  %474 = vmatprep.subr.mxu0 0.0
  %475 = vmatpush1.xpose.msra.mxu0 0.0
  %476 = vmatprep.subr.mxu0 0.0
  %477 = vmatpush1.xpose.msra.mxu0 0.0
  %478 = vmatprep.subr.mxu0 0.0
  %479 = vmatpush1.xpose.msra.mxu0 0.0
  %480 = vmatprep.subr.mxu0 0.0
  %481 = vmatpush1.xpose.msra.mxu0 0.0
  %482 = vmatprep.subr.mxu0 0.0
  %483 = vmatpush1.xpose.msra.mxu0 0.0
  %484 = vmatprep.subr.mxu0 0.0
  %485 = vmatpush1.xpose.msra.mxu0 0.0
  %486 = vmatprep.subr.mxu0 0.0
  %487 = vmatpush1.xpose.msra.mxu0 0.0
  %488 = vmatprep.mubr.f32.mxu0 0.0
  %489 = vmatmul.mubr.f32.gmra.mrb[0].mxu0 %v416
  %v490 = vpop.f32.mrb[0].mxu0
  %v491 = vadd.f32 0.0, %v490
  %v492 = vpop.f32.mrb[0].mxu0
  %493 = vmatprep.mubr.f32.mxu0 0.0
  %494 = vmatmul.mubr.f32.gmra.mrb[0].mxu0 %v418
  %v495 = vpop.f32.mrb[0].mxu0
  %v496 = vadd.f32 0.0, %v495
  %v497 = vpop.f32.mrb[0].mxu0
  %498 = vdwg.mxu0
  %499 = vrot.lane.b32.xlu0 %v400, 96
  %v500 = vpop.permute.xlu0 %499
  %501 = vrot.lane.b32.xlu0 %v402, 96
  %v502 = vpop.permute.xlu0 %501
  %v503 = vsel %vm415, %v400, 0
  %v505 = vsel %vm415, %v402, 0
  %v507 = vsel %vm415, %v500, 0
  %v509 = vsel %vm415, %v502, 0
  %511 = vmatprep.subr.mxu0 0.0
  %512 = vmatpush1.xpose.msra.mxu0 %v507
  %513 = vmatprep.subr.mxu0 0.0
  %514 = vmatpush1.xpose.msra.mxu0 %v509
  %515 = vmatprep.subr.mxu0 0.0
  %516 = vmatpush1.xpose.msra.mxu0 0.0
  %517 = vmatprep.subr.mxu0 0.0
  %518 = vmatpush1.xpose.msra.mxu0 0.0
  %519 = vmatprep.subr.mxu0 0.0
  %520 = vmatpush1.xpose.msra.mxu0 0.0
  %521 = vmatprep.subr.mxu0 0.0
  %522 = vmatpush1.xpose.msra.mxu0 0.0
  %523 = vmatprep.subr.mxu0 0.0
  %524 = vmatpush1.xpose.msra.mxu0 0.0
  %525 = vmatprep.subr.mxu0 0.0
  %526 = vmatpush1.xpose.msra.mxu0 0.0
  %527 = vmatprep.subr.mxu0 0.0
  %528 = vmatpush1.xpose.msra.mxu0 0.0
  %529 = vmatprep.subr.mxu0 0.0
  %530 = vmatpush1.xpose.msra.mxu0 0.0
  %531 = vmatprep.subr.mxu0 0.0
  %532 = vmatpush1.xpose.msra.mxu0 0.0
  %533 = vmatprep.subr.mxu0 0.0
  %534 = vmatpush1.xpose.msra.mxu0 0.0
  %535 = vmatprep.subr.mxu0 0.0
  %536 = vmatpush1.xpose.msra.mxu0 0.0
  %537 = vmatprep.subr.mxu0 0.0
  %538 = vmatpush1.xpose.msra.mxu0 0.0
  %539 = vmatprep.subr.mxu0 0.0
  %540 = vmatpush1.xpose.msra.mxu0 0.0
  %541 = vmatprep.subr.mxu0 0.0
  %542 = vmatpush1.xpose.msra.mxu0 0.0
  %543 = vmatprep.subr.mxu0 0.0
  %544 = vmatpush1.xpose.msra.mxu0 0.0
  %545 = vmatprep.subr.mxu0 0.0
  %546 = vmatpush1.xpose.msra.mxu0 0.0
  %547 = vmatprep.subr.mxu0 0.0
  %548 = vmatpush1.xpose.msra.mxu0 0.0
  %549 = vmatprep.subr.mxu0 0.0
  %550 = vmatpush1.xpose.msra.mxu0 0.0
  %551 = vmatprep.subr.mxu0 0.0
  %552 = vmatpush1.xpose.msra.mxu0 0.0
  %553 = vmatprep.subr.mxu0 0.0
  %554 = vmatpush1.xpose.msra.mxu0 0.0
  %555 = vmatprep.subr.mxu0 0.0
  %556 = vmatpush1.xpose.msra.mxu0 0.0
  %557 = vmatprep.subr.mxu0 0.0
  %558 = vmatpush1.xpose.msra.mxu0 0.0
  %559 = vmatprep.subr.mxu0 0.0
  %560 = vmatpush1.xpose.msra.mxu0 0.0
  %561 = vmatprep.subr.mxu0 0.0
  %562 = vmatpush1.xpose.msra.mxu0 0.0
  %563 = vmatprep.subr.mxu0 0.0
  %564 = vmatpush1.xpose.msra.mxu0 0.0
  %565 = vmatprep.subr.mxu0 0.0
  %566 = vmatpush1.xpose.msra.mxu0 0.0
  %567 = vmatprep.subr.mxu0 0.0
  %568 = vmatpush1.xpose.msra.mxu0 0.0
  %569 = vmatprep.subr.mxu0 0.0
  %570 = vmatpush1.xpose.msra.mxu0 0.0
  %571 = vmatprep.subr.mxu0 0.0
  %572 = vmatpush1.xpose.msra.mxu0 0.0
  %573 = vmatprep.subr.mxu0 0.0
  %574 = vmatpush1.xpose.msra.mxu0 0.0
  %575 = vmatprep.mubr.f32.mxu0 0.0
  %576 = vmatmul.mubr.f32.gmra.mrb[0].mxu0 %v503
  %v577 = vpop.f32.mrb[0].mxu0
  %v578 = vadd.f32 0.0, %v577
  %v579 = vpop.f32.mrb[0].mxu0
  %580 = vmatprep.mubr.f32.mxu0 0.0
  %581 = vmatmul.mubr.f32.gmra.mrb[0].mxu0 %v505
  %v582 = vpop.f32.mrb[0].mxu0
  %v583 = vadd.f32 0.0, %v582
  %v584 = vpop.f32.mrb[0].mxu0
  %585 = vdwg.mxu0
  %586 = vrot.lane.b32.xlu0 %v404, 96
  %v587 = vpop.permute.xlu0 %586
  %588 = vrot.lane.b32.xlu0 %v406, 96
  %v589 = vpop.permute.xlu0 %588
  %v590 = vsel %vm415, %v404, 0
  %v592 = vsel %vm415, %v406, 0
  %v594 = vsel %vm415, %v587, 0
  %v596 = vsel %vm415, %v589, 0
  %598 = vmatprep.subr.mxu0 0.0
  %599 = vmatpush1.xpose.msra.mxu0 %v594
  %600 = vmatprep.subr.mxu0 0.0
  %601 = vmatpush1.xpose.msra.mxu0 %v596
  %602 = vmatprep.subr.mxu0 0.0
  %603 = vmatpush1.xpose.msra.mxu0 0.0
  %604 = vmatprep.subr.mxu0 0.0
  %605 = vmatpush1.xpose.msra.mxu0 0.0
  %606 = vmatprep.subr.mxu0 0.0
  %607 = vmatpush1.xpose.msra.mxu0 0.0
  %608 = vmatprep.subr.mxu0 0.0
  %609 = vmatpush1.xpose.msra.mxu0 0.0
  %610 = vmatprep.subr.mxu0 0.0
  %611 = vmatpush1.xpose.msra.mxu0 0.0
  %612 = vmatprep.subr.mxu0 0.0
  %613 = vmatpush1.xpose.msra.mxu0 0.0
  %614 = vmatprep.subr.mxu0 0.0
  %615 = vmatpush1.xpose.msra.mxu0 0.0
  %616 = vmatprep.subr.mxu0 0.0
  %617 = vmatpush1.xpose.msra.mxu0 0.0
  %618 = vmatprep.subr.mxu0 0.0
  %619 = vmatpush1.xpose.msra.mxu0 0.0
  %620 = vmatprep.subr.mxu0 0.0
  %621 = vmatpush1.xpose.msra.mxu0 0.0
  %622 = vmatprep.subr.mxu0 0.0
  %623 = vmatpush1.xpose.msra.mxu0 0.0
  %624 = vmatprep.subr.mxu0 0.0
  %625 = vmatpush1.xpose.msra.mxu0 0.0
  %626 = vmatprep.subr.mxu0 0.0
  %627 = vmatpush1.xpose.msra.mxu0 0.0
  %628 = vmatprep.subr.mxu0 0.0
  %629 = vmatpush1.xpose.msra.mxu0 0.0
  %630 = vmatprep.subr.mxu0 0.0
  %631 = vmatpush1.xpose.msra.mxu0 0.0
  %632 = vmatprep.subr.mxu0 0.0
  %633 = vmatpush1.xpose.msra.mxu0 0.0
  %634 = vmatprep.subr.mxu0 0.0
  %635 = vmatpush1.xpose.msra.mxu0 0.0
  %636 = vmatprep.subr.mxu0 0.0
  %637 = vmatpush1.xpose.msra.mxu0 0.0
  %638 = vmatprep.subr.mxu0 0.0
  %639 = vmatpush1.xpose.msra.mxu0 0.0
  %640 = vmatprep.subr.mxu0 0.0
  %641 = vmatpush1.xpose.msra.mxu0 0.0
  %642 = vmatprep.subr.mxu0 0.0
  %643 = vmatpush1.xpose.msra.mxu0 0.0
  %644 = vmatprep.subr.mxu0 0.0
  %645 = vmatpush1.xpose.msra.mxu0 0.0
  %646 = vmatprep.subr.mxu0 0.0
  %647 = vmatpush1.xpose.msra.mxu0 0.0
  %648 = vmatprep.subr.mxu0 0.0
  %649 = vmatpush1.xpose.msra.mxu0 0.0
  %650 = vmatprep.subr.mxu0 0.0
  %651 = vmatpush1.xpose.msra.mxu0 0.0
  %652 = vmatprep.subr.mxu0 0.0
  %653 = vmatpush1.xpose.msra.mxu0 0.0
  %654 = vmatprep.subr.mxu0 0.0
  %655 = vmatpush1.xpose.msra.mxu0 0.0
  %656 = vmatprep.subr.mxu0 0.0
  %657 = vmatpush1.xpose.msra.mxu0 0.0
  %658 = vmatprep.subr.mxu0 0.0
  %659 = vmatpush1.xpose.msra.mxu0 0.0
  %660 = vmatprep.subr.mxu0 0.0
  %661 = vmatpush1.xpose.msra.mxu0 0.0
  %662 = vmatprep.mubr.f32.mxu0 0.0
  %663 = vmatmul.mubr.f32.gmra.mrb[0].mxu0 %v590
  %v664 = vpop.f32.mrb[0].mxu0
  %v665 = vadd.f32 0.0, %v664
  %v666 = vpop.f32.mrb[0].mxu0
  %667 = vmatprep.mubr.f32.mxu0 0.0
  %668 = vmatmul.mubr.f32.gmra.mrb[0].mxu0 %v592
  %v669 = vpop.f32.mrb[0].mxu0
  %v670 = vadd.f32 0.0, %v669
  %v671 = vpop.f32.mrb[0].mxu0
  %672 = vdwg.mxu0
  %673 = vrot.lane.b32.xlu0 %v408, 96
  %v674 = vpop.permute.xlu0 %673
  %675 = vrot.lane.b32.xlu0 %v410, 96
  %v676 = vpop.permute.xlu0 %675
  %v677 = vsel %vm415, %v408, 0
  %v679 = vsel %vm415, %v410, 0
  %v681 = vsel %vm415, %v674, 0
  %v683 = vsel %vm415, %v676, 0
  %685 = vmatprep.subr.mxu0 0.0
  %686 = vmatpush1.xpose.msra.mxu0 %v681
  %687 = vmatprep.subr.mxu0 0.0
  %688 = vmatpush1.xpose.msra.mxu0 %v683
  %689 = vmatprep.subr.mxu0 0.0
  %690 = vmatpush1.xpose.msra.mxu0 0.0
  %691 = vmatprep.subr.mxu0 0.0
  %692 = vmatpush1.xpose.msra.mxu0 0.0
  %693 = vmatprep.subr.mxu0 0.0
  %694 = vmatpush1.xpose.msra.mxu0 0.0
  %695 = vmatprep.subr.mxu0 0.0
  %696 = vmatpush1.xpose.msra.mxu0 0.0
  %697 = vmatprep.subr.mxu0 0.0
  %698 = vmatpush1.xpose.msra.mxu0 0.0
  %699 = vmatprep.subr.mxu0 0.0
  %700 = vmatpush1.xpose.msra.mxu0 0.0
  %701 = vmatprep.subr.mxu0 0.0
  %702 = vmatpush1.xpose.msra.mxu0 0.0
  %703 = vmatprep.subr.mxu0 0.0
  %704 = vmatpush1.xpose.msra.mxu0 0.0
  %705 = vmatprep.subr.mxu0 0.0
  %706 = vmatpush1.xpose.msra.mxu0 0.0
  %707 = vmatprep.subr.mxu0 0.0
  %708 = vmatpush1.xpose.msra.mxu0 0.0
  %709 = vmatprep.subr.mxu0 0.0
  %710 = vmatpush1.xpose.msra.mxu0 0.0
  %711 = vmatprep.subr.mxu0 0.0
  %712 = vmatpush1.xpose.msra.mxu0 0.0
  %713 = vmatprep.subr.mxu0 0.0
  %714 = vmatpush1.xpose.msra.mxu0 0.0
  %715 = vmatprep.subr.mxu0 0.0
  %716 = vmatpush1.xpose.msra.mxu0 0.0
  %717 = vmatprep.subr.mxu0 0.0
  %718 = vmatpush1.xpose.msra.mxu0 0.0
  %719 = vmatprep.subr.mxu0 0.0
  %720 = vmatpush1.xpose.msra.mxu0 0.0
  %721 = vmatprep.subr.mxu0 0.0
  %722 = vmatpush1.xpose.msra.mxu0 0.0
  %723 = vmatprep.subr.mxu0 0.0
  %724 = vmatpush1.xpose.msra.mxu0 0.0
  %725 = vmatprep.subr.mxu0 0.0
  %726 = vmatpush1.xpose.msra.mxu0 0.0
  %727 = vmatprep.subr.mxu0 0.0
  %728 = vmatpush1.xpose.msra.mxu0 0.0
  %729 = vmatprep.subr.mxu0 0.0
  %730 = vmatpush1.xpose.msra.mxu0 0.0
  %731 = vmatprep.subr.mxu0 0.0
  %732 = vmatpush1.xpose.msra.mxu0 0.0
  %733 = vmatprep.subr.mxu0 0.0
  %734 = vmatpush1.xpose.msra.mxu0 0.0
  %735 = vmatprep.subr.mxu0 0.0
  %736 = vmatpush1.xpose.msra.mxu0 0.0
  %737 = vmatprep.subr.mxu0 0.0
  %738 = vmatpush1.xpose.msra.mxu0 0.0
  %739 = vmatprep.subr.mxu0 0.0
  %740 = vmatpush1.xpose.msra.mxu0 0.0
  %741 = vmatprep.subr.mxu0 0.0
  %742 = vmatpush1.xpose.msra.mxu0 0.0
  %743 = vmatprep.subr.mxu0 0.0
  %744 = vmatpush1.xpose.msra.mxu0 0.0
  %745 = vmatprep.subr.mxu0 0.0
  %746 = vmatpush1.xpose.msra.mxu0 0.0
  %747 = vmatprep.subr.mxu0 0.0
  %748 = vmatpush1.xpose.msra.mxu0 0.0
  %749 = vmatprep.mubr.f32.mxu0 0.0
  %750 = vmatmul.mubr.f32.gmra.mrb[0].mxu0 %v677
  %v751 = vpop.f32.mrb[0].mxu0
  %v752 = vadd.f32 0.0, %v751
  %v753 = vpop.f32.mrb[0].mxu0
  %754 = vmatprep.mubr.f32.mxu0 0.0
  %755 = vmatmul.mubr.f32.gmra.mrb[0].mxu0 %v679
  %v756 = vpop.f32.mrb[0].mxu0
  %v757 = vadd.f32 0.0, %v756
  %v758 = vpop.f32.mrb[0].mxu0
  %759 = vdwg.mxu0
  %v760 = vsel %vm217, %v491, -inf
  %761 = vmax.xlane.f32.xlu0 %v760
  %v762 = vpop.xlane.xlu0 %761
  %v763 = vsel %vm217, %v496, -inf
  %764 = vmax.xlane.f32.xlu0 %v763
  %v765 = vpop.xlane.xlu0 %764
  %v766 = vsel %vm217, %v578, -inf
  %767 = vmax.xlane.f32.xlu0 %v766
  %v768 = vpop.xlane.xlu0 %767
  %v769 = vsel %vm217, %v583, -inf
  %770 = vmax.xlane.f32.xlu0 %v769
  %v771 = vpop.xlane.xlu0 %770
  %v772 = vsel %vm217, %v665, -inf
  %773 = vmax.xlane.f32.xlu0 %v772
  %v774 = vpop.xlane.xlu0 %773
  %v775 = vsel %vm217, %v670, -inf
  %776 = vmax.xlane.f32.xlu0 %v775
  %v777 = vpop.xlane.xlu0 %776
  %v778 = vsel %vm217, %v752, -inf
  %779 = vmax.xlane.f32.xlu0 %v778
  %v780 = vpop.xlane.xlu0 %779
  %v781 = vsel %vm217, %v757, -inf
  %782 = vmax.xlane.f32.xlu0 %v781
  %v783 = vpop.xlane.xlu0 %782
  %v784 = vsub.f32 %v491, %v762
  %v785 = vsub.f32 %v496, %v765
  %v786 = vsub.f32 %v578, %v768
  %v787 = vsub.f32 %v583, %v771
  %v788 = vsub.f32 %v665, %v774
  %v789 = vsub.f32 %v670, %v777
  %v790 = vsub.f32 %v752, %v780
  %v791 = vsub.f32 %v757, %v783
  %v792 = vmul.f32 %v784, 1.442695
  %v793 = vpow.pop %v792
  %v794 = vmul.f32 %v785, 1.442695
  %v795 = vpow.pop %v794
  %v796 = vmul.f32 %v786, 1.442695
  %v797 = vpow.pop %v796
  %v798 = vmul.f32 %v787, 1.442695
  %v799 = vpow.pop %v798
  %v800 = vmul.f32 %v788, 1.442695
  %v801 = vpow.pop %v800
  %v802 = vmul.f32 %v789, 1.442695
  %v803 = vpow.pop %v802
  %v804 = vmul.f32 %v790, 1.442695
  %v805 = vpow.pop %v804
  %v806 = vmul.f32 %v791, 1.442695
  %v807 = vpow.pop %v806
  %v808 = vsel %vm217, %v793, 0.0
  %809 = vadd.xlane.f32.xlu0 %v808
  %v810 = vpop.xlane.xlu0 %809
  %v811 = vsel %vm217, %v795, 0.0
  %812 = vadd.xlane.f32.xlu0 %v811
  %v813 = vpop.xlane.xlu0 %812
  %v814 = vsel %vm217, %v797, 0.0
  %815 = vadd.xlane.f32.xlu0 %v814
  %v816 = vpop.xlane.xlu0 %815
  %v817 = vsel %vm217, %v799, 0.0
  %818 = vadd.xlane.f32.xlu0 %v817
  %v819 = vpop.xlane.xlu0 %818
  %v820 = vsel %vm217, %v801, 0.0
  %821 = vadd.xlane.f32.xlu0 %v820
  %v822 = vpop.xlane.xlu0 %821
  %v823 = vsel %vm217, %v803, 0.0
  %824 = vadd.xlane.f32.xlu0 %v823
  %v825 = vpop.xlane.xlu0 %824
  %v826 = vsel %vm217, %v805, 0.0
  %827 = vadd.xlane.f32.xlu0 %v826
  %v828 = vpop.xlane.xlu0 %827
  %v829 = vsel %vm217, %v807, 0.0
  %830 = vadd.xlane.f32.xlu0 %v829
  %v831 = vpop.xlane.xlu0 %830
  %832 = vrot.lane.b32.xlu0 %v389, 64
  %v833 = vpop.permute.xlu0 %832
  %834 = vrot.lane.b32.xlu0 %v394, 64
  %v835 = vpop.permute.xlu0 %834
  %v839 = vsel %vm217, %v793, 0
  %v842 = vsel %vm217, %v795, 0
  %844 = vmatprep.subr.mxu0 0.0
  %845 = vmatpush1.msra.mxu0 %v833
  %846 = vmatprep.subr.mxu0 0.0
  %847 = vmatpush1.msra.mxu0 %v835
  %848 = vmatprep.subr.mxu0 0.0
  %849 = vmatpush1.msra.mxu0 0.0
  %850 = vmatprep.subr.mxu0 0.0
  %851 = vmatpush1.msra.mxu0 0.0
  %852 = vmatprep.subr.mxu0 0.0
  %853 = vmatpush1.msra.mxu0 0.0
  %854 = vmatprep.subr.mxu0 0.0
  %855 = vmatpush1.msra.mxu0 0.0
  %856 = vmatprep.subr.mxu0 0.0
  %857 = vmatpush1.msra.mxu0 0.0
  %858 = vmatprep.subr.mxu0 0.0
  %859 = vmatpush1.msra.mxu0 0.0
  %860 = vmatprep.subr.mxu0 0.0
  %861 = vmatpush1.msra.mxu0 0.0
  %862 = vmatprep.subr.mxu0 0.0
  %863 = vmatpush1.msra.mxu0 0.0
  %864 = vmatprep.subr.mxu0 0.0
  %865 = vmatpush1.msra.mxu0 0.0
  %866 = vmatprep.subr.mxu0 0.0
  %867 = vmatpush1.msra.mxu0 0.0
  %868 = vmatprep.subr.mxu0 0.0
  %869 = vmatpush1.msra.mxu0 0.0
  %870 = vmatprep.subr.mxu0 0.0
  %871 = vmatpush1.msra.mxu0 0.0
  %872 = vmatprep.subr.mxu0 0.0
  %873 = vmatpush1.msra.mxu0 0.0
  %874 = vmatprep.subr.mxu0 0.0
  %875 = vmatpush1.msra.mxu0 0.0
  %876 = vmatprep.subr.mxu0 0.0
  %877 = vmatpush1.msra.mxu0 0.0
  %878 = vmatprep.subr.mxu0 0.0
  %879 = vmatpush1.msra.mxu0 0.0
  %880 = vmatprep.subr.mxu0 0.0
  %881 = vmatpush1.msra.mxu0 0.0
  %882 = vmatprep.subr.mxu0 0.0
  %883 = vmatpush1.msra.mxu0 0.0
  %884 = vmatprep.subr.mxu0 0.0
  %885 = vmatpush1.msra.mxu0 0.0
  %886 = vmatprep.subr.mxu0 0.0
  %887 = vmatpush1.msra.mxu0 0.0
  %888 = vmatprep.subr.mxu0 0.0
  %889 = vmatpush1.msra.mxu0 0.0
  %890 = vmatprep.subr.mxu0 0.0
  %891 = vmatpush1.msra.mxu0 0.0
  %892 = vmatprep.subr.mxu0 0.0
  %893 = vmatpush1.msra.mxu0 0.0
  %894 = vmatprep.subr.mxu0 0.0
  %895 = vmatpush1.msra.mxu0 0.0
  %896 = vmatprep.subr.mxu0 0.0
  %897 = vmatpush1.msra.mxu0 0.0
  %898 = vmatprep.subr.mxu0 0.0
  %899 = vmatpush1.msra.mxu0 0.0
  %900 = vmatprep.subr.mxu0 0.0
  %901 = vmatpush1.msra.mxu0 0.0
  %902 = vmatprep.subr.mxu0 0.0
  %903 = vmatpush1.msra.mxu0 0.0
  %904 = vmatprep.subr.mxu0 0.0
  %905 = vmatpush1.msra.mxu0 0.0
  %906 = vmatprep.subr.mxu0 0.0
  %907 = vmatpush1.msra.mxu0 0.0
  %908 = vmatprep.mubr.f32.mxu0 0.0
  %909 = vmatmul.mubr.f32.gmra.mrb[0].mxu0 %v839
  %v910 = vpop.f32.mrb[0].mxu0
  %v911 = vadd.f32 0.0, %v910
  %v912 = vpop.f32.mrb[0].mxu0
  %913 = vmatprep.mubr.f32.mxu0 0.0
  %914 = vmatmul.mubr.f32.gmra.mrb[0].mxu0 %v842
  %v915 = vpop.f32.mrb[0].mxu0
  %v916 = vadd.f32 0.0, %v915
  %v917 = vpop.f32.mrb[0].mxu0
  %918 = vdwg.mxu0
  %919 = vrot.lane.b32.xlu0 %v400, 64
  %v920 = vpop.permute.xlu0 %919
  %921 = vrot.lane.b32.xlu0 %v402, 64
  %v922 = vpop.permute.xlu0 %921
  %v926 = vsel %vm217, %v797, 0
  %v929 = vsel %vm217, %v799, 0
  %931 = vmatprep.subr.mxu0 0.0
  %932 = vmatpush1.msra.mxu0 %v920
  %933 = vmatprep.subr.mxu0 0.0
  %934 = vmatpush1.msra.mxu0 %v922
  %935 = vmatprep.subr.mxu0 0.0
  %936 = vmatpush1.msra.mxu0 0.0
  %937 = vmatprep.subr.mxu0 0.0
  %938 = vmatpush1.msra.mxu0 0.0
  %939 = vmatprep.subr.mxu0 0.0
  %940 = vmatpush1.msra.mxu0 0.0
  %941 = vmatprep.subr.mxu0 0.0
  %942 = vmatpush1.msra.mxu0 0.0
  %943 = vmatprep.subr.mxu0 0.0
  %944 = vmatpush1.msra.mxu0 0.0
  %945 = vmatprep.subr.mxu0 0.0
  %946 = vmatpush1.msra.mxu0 0.0
  %947 = vmatprep.subr.mxu0 0.0
  %948 = vmatpush1.msra.mxu0 0.0
  %949 = vmatprep.subr.mxu0 0.0
  %950 = vmatpush1.msra.mxu0 0.0
  %951 = vmatprep.subr.mxu0 0.0
  %952 = vmatpush1.msra.mxu0 0.0
  %953 = vmatprep.subr.mxu0 0.0
  %954 = vmatpush1.msra.mxu0 0.0
  %955 = vmatprep.subr.mxu0 0.0
  %956 = vmatpush1.msra.mxu0 0.0
  %957 = vmatprep.subr.mxu0 0.0
  %958 = vmatpush1.msra.mxu0 0.0
  %959 = vmatprep.subr.mxu0 0.0
  %960 = vmatpush1.msra.mxu0 0.0
  %961 = vmatprep.subr.mxu0 0.0
  %962 = vmatpush1.msra.mxu0 0.0
  %963 = vmatprep.subr.mxu0 0.0
  %964 = vmatpush1.msra.mxu0 0.0
  %965 = vmatprep.subr.mxu0 0.0
  %966 = vmatpush1.msra.mxu0 0.0
  %967 = vmatprep.subr.mxu0 0.0
  %968 = vmatpush1.msra.mxu0 0.0
  %969 = vmatprep.subr.mxu0 0.0
  %970 = vmatpush1.msra.mxu0 0.0
  %971 = vmatprep.subr.mxu0 0.0
  %972 = vmatpush1.msra.mxu0 0.0
  %973 = vmatprep.subr.mxu0 0.0
  %974 = vmatpush1.msra.mxu0 0.0
  %975 = vmatprep.subr.mxu0 0.0
  %976 = vmatpush1.msra.mxu0 0.0
  %977 = vmatprep.subr.mxu0 0.0
  %978 = vmatpush1.msra.mxu0 0.0
  %979 = vmatprep.subr.mxu0 0.0
  %980 = vmatpush1.msra.mxu0 0.0
  %981 = vmatprep.subr.mxu0 0.0
  %982 = vmatpush1.msra.mxu0 0.0
  %983 = vmatprep.subr.mxu0 0.0
  %984 = vmatpush1.msra.mxu0 0.0
  %985 = vmatprep.subr.mxu0 0.0
  %986 = vmatpush1.msra.mxu0 0.0
  %987 = vmatprep.subr.mxu0 0.0
  %988 = vmatpush1.msra.mxu0 0.0
  %989 = vmatprep.subr.mxu0 0.0
  %990 = vmatpush1.msra.mxu0 0.0
  %991 = vmatprep.subr.mxu0 0.0
  %992 = vmatpush1.msra.mxu0 0.0
  %993 = vmatprep.subr.mxu0 0.0
  %994 = vmatpush1.msra.mxu0 0.0
  %995 = vmatprep.mubr.f32.mxu0 0.0
  %996 = vmatmul.mubr.f32.gmra.mrb[0].mxu0 %v926
  %v997 = vpop.f32.mrb[0].mxu0
  %v998 = vadd.f32 0.0, %v997
  %v999 = vpop.f32.mrb[0].mxu0
  %1000 = vmatprep.mubr.f32.mxu0 0.0
  %1001 = vmatmul.mubr.f32.gmra.mrb[0].mxu0 %v929
  %v1002 = vpop.f32.mrb[0].mxu0
  %v1003 = vadd.f32 0.0, %v1002
  %v1004 = vpop.f32.mrb[0].mxu0
  %1005 = vdwg.mxu0
  %1006 = vrot.lane.b32.xlu0 %v404, 64
  %v1007 = vpop.permute.xlu0 %1006
  %1008 = vrot.lane.b32.xlu0 %v406, 64
  %v1009 = vpop.permute.xlu0 %1008
  %v1013 = vsel %vm217, %v801, 0
  %v1016 = vsel %vm217, %v803, 0
  %1018 = vmatprep.subr.mxu0 0.0
  %1019 = vmatpush1.msra.mxu0 %v1007
  %1020 = vmatprep.subr.mxu0 0.0
  %1021 = vmatpush1.msra.mxu0 %v1009
  %1022 = vmatprep.subr.mxu0 0.0
  %1023 = vmatpush1.msra.mxu0 0.0
  %1024 = vmatprep.subr.mxu0 0.0
  %1025 = vmatpush1.msra.mxu0 0.0
  %1026 = vmatprep.subr.mxu0 0.0
  %1027 = vmatpush1.msra.mxu0 0.0
  %1028 = vmatprep.subr.mxu0 0.0
  %1029 = vmatpush1.msra.mxu0 0.0
  %1030 = vmatprep.subr.mxu0 0.0
  %1031 = vmatpush1.msra.mxu0 0.0
  %1032 = vmatprep.subr.mxu0 0.0
  %1033 = vmatpush1.msra.mxu0 0.0
  %1034 = vmatprep.subr.mxu0 0.0
  %1035 = vmatpush1.msra.mxu0 0.0
  %1036 = vmatprep.subr.mxu0 0.0
  %1037 = vmatpush1.msra.mxu0 0.0
  %1038 = vmatprep.subr.mxu0 0.0
  %1039 = vmatpush1.msra.mxu0 0.0
  %1040 = vmatprep.subr.mxu0 0.0
  %1041 = vmatpush1.msra.mxu0 0.0
  %1042 = vmatprep.subr.mxu0 0.0
  %1043 = vmatpush1.msra.mxu0 0.0
  %1044 = vmatprep.subr.mxu0 0.0
  %1045 = vmatpush1.msra.mxu0 0.0
  %1046 = vmatprep.subr.mxu0 0.0
  %1047 = vmatpush1.msra.mxu0 0.0
  %1048 = vmatprep.subr.mxu0 0.0
  %1049 = vmatpush1.msra.mxu0 0.0
  %1050 = vmatprep.subr.mxu0 0.0
  %1051 = vmatpush1.msra.mxu0 0.0
  %1052 = vmatprep.subr.mxu0 0.0
  %1053 = vmatpush1.msra.mxu0 0.0
  %1054 = vmatprep.subr.mxu0 0.0
  %1055 = vmatpush1.msra.mxu0 0.0
  %1056 = vmatprep.subr.mxu0 0.0
  %1057 = vmatpush1.msra.mxu0 0.0
  %1058 = vmatprep.subr.mxu0 0.0
  %1059 = vmatpush1.msra.mxu0 0.0
  %1060 = vmatprep.subr.mxu0 0.0
  %1061 = vmatpush1.msra.mxu0 0.0
  %1062 = vmatprep.subr.mxu0 0.0
  %1063 = vmatpush1.msra.mxu0 0.0
  %1064 = vmatprep.subr.mxu0 0.0
  %1065 = vmatpush1.msra.mxu0 0.0
  %1066 = vmatprep.subr.mxu0 0.0
  %1067 = vmatpush1.msra.mxu0 0.0
  %1068 = vmatprep.subr.mxu0 0.0
  %1069 = vmatpush1.msra.mxu0 0.0
  %1070 = vmatprep.subr.mxu0 0.0
  %1071 = vmatpush1.msra.mxu0 0.0
  %1072 = vmatprep.subr.mxu0 0.0
  %1073 = vmatpush1.msra.mxu0 0.0
  %1074 = vmatprep.subr.mxu0 0.0
  %1075 = vmatpush1.msra.mxu0 0.0
  %1076 = vmatprep.subr.mxu0 0.0
  %1077 = vmatpush1.msra.mxu0 0.0
  %1078 = vmatprep.subr.mxu0 0.0
  %1079 = vmatpush1.msra.mxu0 0.0
  %1080 = vmatprep.subr.mxu0 0.0
  %1081 = vmatpush1.msra.mxu0 0.0
  %1082 = vmatprep.mubr.f32.mxu0 0.0
  %1083 = vmatmul.mubr.f32.gmra.mrb[0].mxu0 %v1013
  %v1084 = vpop.f32.mrb[0].mxu0
  %v1085 = vadd.f32 0.0, %v1084
  %v1086 = vpop.f32.mrb[0].mxu0
  %1087 = vmatprep.mubr.f32.mxu0 0.0
  %1088 = vmatmul.mubr.f32.gmra.mrb[0].mxu0 %v1016
  %v1089 = vpop.f32.mrb[0].mxu0
  %v1090 = vadd.f32 0.0, %v1089
  %v1091 = vpop.f32.mrb[0].mxu0
  %1092 = vdwg.mxu0
  %1093 = vrot.lane.b32.xlu0 %v408, 64
  %v1094 = vpop.permute.xlu0 %1093
  %1095 = vrot.lane.b32.xlu0 %v410, 64
  %v1096 = vpop.permute.xlu0 %1095
  %v1100 = vsel %vm217, %v805, 0
  %v1103 = vsel %vm217, %v807, 0
  %1105 = vmatprep.subr.mxu0 0.0
  %1106 = vmatpush1.msra.mxu0 %v1094
  %1107 = vmatprep.subr.mxu0 0.0
  %1108 = vmatpush1.msra.mxu0 %v1096
  %1109 = vmatprep.subr.mxu0 0.0
  %1110 = vmatpush1.msra.mxu0 0.0
  %1111 = vmatprep.subr.mxu0 0.0
  %1112 = vmatpush1.msra.mxu0 0.0
  %1113 = vmatprep.subr.mxu0 0.0
  %1114 = vmatpush1.msra.mxu0 0.0
  %1115 = vmatprep.subr.mxu0 0.0
  %1116 = vmatpush1.msra.mxu0 0.0
  %1117 = vmatprep.subr.mxu0 0.0
  %1118 = vmatpush1.msra.mxu0 0.0
  %1119 = vmatprep.subr.mxu0 0.0
  %1120 = vmatpush1.msra.mxu0 0.0
  %1121 = vmatprep.subr.mxu0 0.0
  %1122 = vmatpush1.msra.mxu0 0.0
  %1123 = vmatprep.subr.mxu0 0.0
  %1124 = vmatpush1.msra.mxu0 0.0
  %1125 = vmatprep.subr.mxu0 0.0
  %1126 = vmatpush1.msra.mxu0 0.0
  %1127 = vmatprep.subr.mxu0 0.0
  %1128 = vmatpush1.msra.mxu0 0.0
  %1129 = vmatprep.subr.mxu0 0.0
  %1130 = vmatpush1.msra.mxu0 0.0
  %1131 = vmatprep.subr.mxu0 0.0
  %1132 = vmatpush1.msra.mxu0 0.0
  %1133 = vmatprep.subr.mxu0 0.0
  %1134 = vmatpush1.msra.mxu0 0.0
  %1135 = vmatprep.subr.mxu0 0.0
  %1136 = vmatpush1.msra.mxu0 0.0
  %1137 = vmatprep.subr.mxu0 0.0
  %1138 = vmatpush1.msra.mxu0 0.0
  %1139 = vmatprep.subr.mxu0 0.0
  %1140 = vmatpush1.msra.mxu0 0.0
  %1141 = vmatprep.subr.mxu0 0.0
  %1142 = vmatpush1.msra.mxu0 0.0
  %1143 = vmatprep.subr.mxu0 0.0
  %1144 = vmatpush1.msra.mxu0 0.0
  %1145 = vmatprep.subr.mxu0 0.0
  %1146 = vmatpush1.msra.mxu0 0.0
  %1147 = vmatprep.subr.mxu0 0.0
  %1148 = vmatpush1.msra.mxu0 0.0
  %1149 = vmatprep.subr.mxu0 0.0
  %1150 = vmatpush1.msra.mxu0 0.0
  %1151 = vmatprep.subr.mxu0 0.0
  %1152 = vmatpush1.msra.mxu0 0.0
  %1153 = vmatprep.subr.mxu0 0.0
  %1154 = vmatpush1.msra.mxu0 0.0
  %1155 = vmatprep.subr.mxu0 0.0
  %1156 = vmatpush1.msra.mxu0 0.0
  %1157 = vmatprep.subr.mxu0 0.0
  %1158 = vmatpush1.msra.mxu0 0.0
  %1159 = vmatprep.subr.mxu0 0.0
  %1160 = vmatpush1.msra.mxu0 0.0
  %1161 = vmatprep.subr.mxu0 0.0
  %1162 = vmatpush1.msra.mxu0 0.0
  %1163 = vmatprep.subr.mxu0 0.0
  %1164 = vmatpush1.msra.mxu0 0.0
  %1165 = vmatprep.subr.mxu0 0.0
  %1166 = vmatpush1.msra.mxu0 0.0
  %1167 = vmatprep.subr.mxu0 0.0
  %1168 = vmatpush1.msra.mxu0 0.0
  %1169 = vmatprep.mubr.f32.mxu0 0.0
  %1170 = vmatmul.mubr.f32.gmra.mrb[0].mxu0 %v1100
  %v1171 = vpop.f32.mrb[0].mxu0
  %v1172 = vadd.f32 0.0, %v1171
  %v1173 = vpop.f32.mrb[0].mxu0
  %1174 = vmatprep.mubr.f32.mxu0 0.0
  %1175 = vmatmul.mubr.f32.gmra.mrb[0].mxu0 %v1103
  %v1176 = vpop.f32.mrb[0].mxu0
  %v1177 = vadd.f32 0.0, %v1176
  %v1178 = vpop.f32.mrb[0].mxu0
  %1179 = vdwg.mxu0
  %v1180 = vrcp.pop %v810
  %v1181 = vmul.f32 %v911, %v1180
  %v1182 = vrcp.pop %v813
  %v1183 = vmul.f32 %v916, %v1182
  %v1184 = vrcp.pop %v816
  %v1185 = vmul.f32 %v998, %v1184
  %v1186 = vrcp.pop %v819
  %v1187 = vmul.f32 %v1003, %v1186
  %v1188 = vrcp.pop %v822
  %v1189 = vmul.f32 %v1085, %v1188
  %v1190 = vrcp.pop %v825
  %v1191 = vmul.f32 %v1090, %v1190
  %v1192 = vrcp.pop %v828
  %v1193 = vmul.f32 %v1172, %v1192
  %v1194 = vrcp.pop %v831
  %v1195 = vmul.f32 %v1177, %v1194
  %1198 = vrot.lane.b32.xlu0 %v1185, 8
  %v1199 = vpop.permute.xlu0 %1198
  %1200 = vrot.lane.b32.xlu0 %v1187, 8
  %v1201 = vpop.permute.xlu0 %1200
  %1206 = vrot.lane.b32.xlu0 %v1189, 16
  %v1207 = vpop.permute.xlu0 %1206
  %1208 = vrot.lane.b32.xlu0 %v1191, 16
  %v1209 = vpop.permute.xlu0 %1208
  %1214 = vrot.lane.b32.xlu0 %v1193, 24
  %v1215 = vpop.permute.xlu0 %1214
  %1216 = vrot.lane.b32.xlu0 %v1195, 24
  %v1217 = vpop.permute.xlu0 %1216
  %v1220 = vsel %vm415, %v1181, %v1199
  %v1221 = vsel %vm415, %v1183, %v1201
  %v1222 = vsel %vm217, %v1220, %v1207
  %v1223 = vsel %vm217, %v1221, %v1209
  %vm1224 = vcmask 195584
  %v1225 = vsel %vm1224, %v1222, %v1215
  %v1226 = vsel %vm1224, %v1223, %v1217
  %v1227 = vlaneseq
  %v1228 = vshrl.u32 %v1227, 7
  %v1229 = vsub.s32 0, %v1228
  %v1230 = vrot.slane %v73, %v1229
  %v1232 = vsel %vm208, %v1225, 0
  %v1235 = vsel %vm208, %v1226, 0
  %1237 = vmatprep.subr.mxu0 0.0
  %1238 = vmatpush1.msra.mxu0 %v69
  %1239 = vmatprep.subr.mxu0 0.0
  %1240 = vmatpush1.msra.mxu0 %v70
  %1241 = vmatprep.subr.mxu0 0.0
  %1242 = vmatpush1.msra.mxu0 %v71
  %1243 = vmatprep.subr.mxu0 0.0
  %1244 = vmatpush1.msra.mxu0 %v72
  %1245 = vmatprep.subr.mxu0 0.0
  %1246 = vmatpush1.msra.mxu0 0.0
  %1247 = vmatprep.subr.mxu0 0.0
  %1248 = vmatpush1.msra.mxu0 0.0
  %1249 = vmatprep.subr.mxu0 0.0
  %1250 = vmatpush1.msra.mxu0 0.0
  %1251 = vmatprep.subr.mxu0 0.0
  %1252 = vmatpush1.msra.mxu0 0.0
  %1253 = vmatprep.subr.mxu0 0.0
  %1254 = vmatpush1.msra.mxu0 0.0
  %1255 = vmatprep.subr.mxu0 0.0
  %1256 = vmatpush1.msra.mxu0 0.0
  %1257 = vmatprep.subr.mxu0 0.0
  %1258 = vmatpush1.msra.mxu0 0.0
  %1259 = vmatprep.subr.mxu0 0.0
  %1260 = vmatpush1.msra.mxu0 0.0
  %1261 = vmatprep.subr.mxu0 0.0
  %1262 = vmatpush1.msra.mxu0 0.0
  %1263 = vmatprep.subr.mxu0 0.0
  %1264 = vmatpush1.msra.mxu0 0.0
  %1265 = vmatprep.subr.mxu0 0.0
  %1266 = vmatpush1.msra.mxu0 0.0
  %1267 = vmatprep.subr.mxu0 0.0
  %1268 = vmatpush1.msra.mxu0 0.0
  %1269 = vmatprep.subr.mxu0 0.0
  %1270 = vmatpush1.msra.mxu0 0.0
  %1271 = vmatprep.subr.mxu0 0.0
  %1272 = vmatpush1.msra.mxu0 0.0
  %1273 = vmatprep.subr.mxu0 0.0
  %1274 = vmatpush1.msra.mxu0 0.0
  %1275 = vmatprep.subr.mxu0 0.0
  %1276 = vmatpush1.msra.mxu0 0.0
  %1277 = vmatprep.subr.mxu0 0.0
  %1278 = vmatpush1.msra.mxu0 0.0
  %1279 = vmatprep.subr.mxu0 0.0
  %1280 = vmatpush1.msra.mxu0 0.0
  %1281 = vmatprep.subr.mxu0 0.0
  %1282 = vmatpush1.msra.mxu0 0.0
  %1283 = vmatprep.subr.mxu0 0.0
  %1284 = vmatpush1.msra.mxu0 0.0
  %1285 = vmatprep.subr.mxu0 0.0
  %1286 = vmatpush1.msra.mxu0 0.0
  %1287 = vmatprep.subr.mxu0 0.0
  %1288 = vmatpush1.msra.mxu0 0.0
  %1289 = vmatprep.subr.mxu0 0.0
  %1290 = vmatpush1.msra.mxu0 0.0
  %1291 = vmatprep.subr.mxu0 0.0
  %1292 = vmatpush1.msra.mxu0 0.0
  %1293 = vmatprep.subr.mxu0 0.0
  %1294 = vmatpush1.msra.mxu0 0.0
  %1295 = vmatprep.subr.mxu0 0.0
  %1296 = vmatpush1.msra.mxu0 0.0
  %1297 = vmatprep.subr.mxu0 0.0
  %1298 = vmatpush1.msra.mxu0 0.0
  %1299 = vmatprep.subr.mxu0 0.0
  %1300 = vmatpush1.msra.mxu0 0.0
  %1301 = vmatprep.mubr.f32.mxu0 0.0
  %1302 = vmatmul.mubr.f32.gmra.mrb[0].mxu0 %v1232
  %v1303 = vpop.f32.mrb[0].mxu0
  %v1304 = vadd.f32 %v1230, %v1303
  %v1305 = vpop.f32.mrb[0].mxu0
  %1306 = vmatprep.mubr.f32.mxu0 0.0
  %1307 = vmatmul.mubr.f32.gmra.mrb[0].mxu0 %v1235
  %v1308 = vpop.f32.mrb[0].mxu0
  %v1309 = vadd.f32 %v1230, %v1308
  %v1310 = vpop.f32.mrb[0].mxu0
  %1311 = vdwg.mxu0
  %1314 = vrot.lane.b32.xlu0 %v1304, 32
  %v1315 = vpop.permute.xlu0 %1314
  %1316 = vrot.lane.b32.xlu0 %v1309, 32
  %v1317 = vpop.permute.xlu0 %1316
  %v1320 = vadd.f32 %v302, %v1315
  %v1321 = vadd.f32 %v307, %v1317
  %1324 = vrot.lane.b32.xlu0 %v1320, 96
  %v1325 = vpop.permute.xlu0 %1324
  %1326 = vrot.lane.b32.xlu0 %v1321, 96
  %v1327 = vpop.permute.xlu0 %1326
  %v1330 = vsel %vm208, %v1325, 0.0
  %1331 = vadd.xlane.f32.xlu0 %v1330
  %v1332 = vpop.xlane.xlu0 %1331
  %v1333 = vsel %vm208, %v1327, 0.0
  %1334 = vadd.xlane.f32.xlu0 %v1333
  %v1335 = vpop.xlane.xlu0 %1334
  %v1336 = vrcp.pop 32.0
  %v1337 = vmul.f32 %v1332, %v1336
  %v1338 = vmul.f32 %v1335, %v1336
  %v1339 = vsub.f32 %v1320, %v1337
  %v1340 = vsub.f32 %v1321, %v1338
  %v1341 = vmul.f32 %v1339, %v1339
  %v1342 = vmul.f32 %v1340, %v1340
  %1345 = vrot.lane.b32.xlu0 %v1341, 96
  %v1346 = vpop.permute.xlu0 %1345
  %1347 = vrot.lane.b32.xlu0 %v1342, 96
  %v1348 = vpop.permute.xlu0 %1347
  %v1351 = vsel %vm208, %v1346, 0.0
  %1352 = vadd.xlane.f32.xlu0 %v1351
  %v1353 = vpop.xlane.xlu0 %1352
  %v1354 = vsel %vm208, %v1348, 0.0
  %1355 = vadd.xlane.f32.xlu0 %v1354
  %v1356 = vpop.xlane.xlu0 %1355
  %v1357 = vmul.f32 %v1353, %v1336
  %v1358 = vmul.f32 %v1356, %v1336
  %v1359 = vadd.f32 %v1357, 1e-05
  %v1360 = vadd.f32 %v1358, 1e-05
  %v1361 = vrsqrt.pop %v1359
  %v1362 = vrsqrt.pop %v1360
  %v1363 = vmul.f32 %v1339, %v1361
  %v1364 = vmul.f32 %v1340, %v1362
  %v1365 = vlaneseq
  %v1366 = vshrl.u32 %v1365, 7
  %v1367 = vsub.s32 1, %v1366
  %v1368 = vrot.slane %v73, %v1367
  %1370 = vrot.lane.b32.xlu0 %v1368, 32
  %v1371 = vpop.permute.xlu0 %1370
  %v1373 = vmul.f32 %v1363, %v1371
  %v1374 = vmul.f32 %v1364, %v1371
  %v1375 = vlaneseq
  %v1376 = vshrl.u32 %v1375, 7
  %v1377 = vsub.s32 2, %v1376
  %v1378 = vrot.slane %v73, %v1377
  %1380 = vrot.lane.b32.xlu0 %v1378, 32
  %v1381 = vpop.permute.xlu0 %1380
  %v1383 = vadd.f32 %v1373, %v1381
  %v1384 = vadd.f32 %v1374, %v1381
  %1387 = vrot.lane.b32.xlu0 %v1383, 96
  %v1388 = vpop.permute.xlu0 %1387
  %1389 = vrot.lane.b32.xlu0 %v1384, 96
  %v1390 = vpop.permute.xlu0 %1389
  %1393 = vxpose.xlu0.b32.start [1/16] %v1388, 128
  %1394 = vxpose.xlu0.b32.cont [2/16] %v1390, 128
  %1395 = vxpose.xlu0.b32.cont [3/16] 0.0, 128
  %1396 = vxpose.xlu0.b32.cont [4/16] 0.0, 128
  %1397 = vxpose.xlu0.b32.cont [5/16] 0.0, 128
  %1398 = vxpose.xlu0.b32.cont [6/16] 0.0, 128
  %1399 = vxpose.xlu0.b32.cont [7/16] 0.0, 128
  %1400 = vxpose.xlu0.b32.cont [8/16] 0.0, 128
  %1401 = vxpose.xlu0.b32.cont [9/16] 0.0, 128
  %1402 = vxpose.xlu0.b32.cont [10/16] 0.0, 128
  %1403 = vxpose.xlu0.b32.cont [11/16] 0.0, 128
  %1404 = vxpose.xlu0.b32.cont [12/16] 0.0, 128
  %1405 = vxpose.xlu0.b32.cont [13/16] 0.0, 128
  %1406 = vxpose.xlu0.b32.cont [14/16] 0.0, 128
  %1407 = vxpose.xlu0.b32.cont [15/16] 0.0, 128
  %1408 = vxpose.xlu0.b32.end [16/16] 0.0, 128
  %v1409 = vpop.trf.xlu0
  %v1410 = vpop.trf.xlu0
  %v1411 = vpop.trf.xlu0
  %v1412 = vpop.trf.xlu0
  %v1413 = vpop.trf.xlu0
  %v1414 = vpop.trf.xlu0
  %v1415 = vpop.trf.xlu0
  %v1416 = vpop.trf.xlu0
  %v1417 = vpop.trf.xlu0
  %v1418 = vpop.trf.xlu0
  %v1419 = vpop.trf.xlu0
  %v1420 = vpop.trf.xlu0
  %v1421 = vpop.trf.xlu0
  %v1422 = vpop.trf.xlu0
  %v1423 = vpop.trf.xlu0
  %v1424 = vpop.trf.xlu0
  %1425 = vst.msk [vmem:[%s8] sm:$0xff] %vm217, %v1409
  %1426 = vst.msk [vmem:[%s8 + $0x8] sm:$0xff] %vm217, %v1410
  %1427 = vst.msk [vmem:[%s8 + $0x10] sm:$0xff] %vm217, %v1411
  %1428 = vst.msk [vmem:[%s8 + $0x18] sm:$0xff] %vm217, %v1412
  %s1429 = scalar_lea.vmem %s0, 32
  %v1430 = vld [vmem:[%s1429] sm:$0xff]
  %v1431 = vld [vmem:[%s1429 + $0x8] sm:$0xff]
  %v1432 = vld [vmem:[%s1429 + $0x10] sm:$0xff]
  %v1433 = vld [vmem:[%s1429 + $0x18] sm:$0xff]
  %1434 = vxpose.xlu0.b32.start [1/16] %v1430, 128
  %1435 = vxpose.xlu0.b32.cont [2/16] %v1431, 128
  %1436 = vxpose.xlu0.b32.cont [3/16] %v1432, 128
  %1437 = vxpose.xlu0.b32.cont [4/16] %v1433, 128
  %1438 = vxpose.xlu0.b32.cont [5/16] 0.0, 128
  %1439 = vxpose.xlu0.b32.cont [6/16] 0.0, 128
  %1440 = vxpose.xlu0.b32.cont [7/16] 0.0, 128
  %1441 = vxpose.xlu0.b32.cont [8/16] 0.0, 128
  %1442 = vxpose.xlu0.b32.cont [9/16] 0.0, 128
  %1443 = vxpose.xlu0.b32.cont [10/16] 0.0, 128
  %1444 = vxpose.xlu0.b32.cont [11/16] 0.0, 128
  %1445 = vxpose.xlu0.b32.cont [12/16] 0.0, 128
  %1446 = vxpose.xlu0.b32.cont [13/16] 0.0, 128
  %1447 = vxpose.xlu0.b32.cont [14/16] 0.0, 128
  %1448 = vxpose.xlu0.b32.cont [15/16] 0.0, 128
  %1449 = vxpose.xlu0.b32.end [16/16] 0.0, 128
  %v1450 = vpop.trf.xlu0
  %v1451 = vpop.trf.xlu0
  %v1452 = vpop.trf.xlu0
  %v1453 = vpop.trf.xlu0
  %v1454 = vpop.trf.xlu0
  %v1455 = vpop.trf.xlu0
  %v1456 = vpop.trf.xlu0
  %v1457 = vpop.trf.xlu0
  %v1458 = vpop.trf.xlu0
  %v1459 = vpop.trf.xlu0
  %v1460 = vpop.trf.xlu0
  %v1461 = vpop.trf.xlu0
  %v1462 = vpop.trf.xlu0
  %v1463 = vpop.trf.xlu0
  %v1464 = vpop.trf.xlu0
  %v1465 = vpop.trf.xlu0
  %s1466 = scalar_lea.vmem %s1, 48
  %v1467 = vld [vmem:[%s1466] sm:$0xff]
  %v1468 = vld [vmem:[%s1466 + $0x8] sm:$0xff]
  %v1469 = vld [vmem:[%s1466 + $0x10] sm:$0xff]
  %v1470 = vld [vmem:[%s1466 + $0x18] sm:$0xff]
  %v1471 = vld [vmem:[%s1466 + $0x20] sm:$0xff]
  %v1472 = vld [vmem:[%s1466 + $0x28] sm:$0xff]
  %1473 = vxpose.xlu0.b32.start [1/16] %v1467, 128
  %1474 = vxpose.xlu0.b32.cont [2/16] %v1468, 128
  %1475 = vxpose.xlu0.b32.cont [3/16] %v1469, 128
  %1476 = vxpose.xlu0.b32.cont [4/16] %v1470, 128
  %1477 = vxpose.xlu0.b32.cont [5/16] %v1471, 128
  %1478 = vxpose.xlu0.b32.cont [6/16] %v1472, 128
  %1479 = vxpose.xlu0.b32.cont [7/16] 0.0, 128
  %1480 = vxpose.xlu0.b32.cont [8/16] 0.0, 128
  %1481 = vxpose.xlu0.b32.cont [9/16] 0.0, 128
  %1482 = vxpose.xlu0.b32.cont [10/16] 0.0, 128
  %1483 = vxpose.xlu0.b32.cont [11/16] 0.0, 128
  %1484 = vxpose.xlu0.b32.cont [12/16] 0.0, 128
  %1485 = vxpose.xlu0.b32.cont [13/16] 0.0, 128
  %1486 = vxpose.xlu0.b32.cont [14/16] 0.0, 128
  %1487 = vxpose.xlu0.b32.cont [15/16] 0.0, 128
  %1488 = vxpose.xlu0.b32.end [16/16] 0.0, 128
  %v1489 = vpop.trf.xlu0
  %v1490 = vpop.trf.xlu0
  %v1491 = vpop.trf.xlu0
  %v1492 = vpop.trf.xlu0
  %v1493 = vpop.trf.xlu0
  %v1494 = vpop.trf.xlu0
  %v1495 = vpop.trf.xlu0
  %v1496 = vpop.trf.xlu0
  %v1497 = vpop.trf.xlu0
  %v1498 = vpop.trf.xlu0
  %v1499 = vpop.trf.xlu0
  %v1500 = vpop.trf.xlu0
  %v1501 = vpop.trf.xlu0
  %v1502 = vpop.trf.xlu0
  %v1503 = vpop.trf.xlu0
  %v1504 = vpop.trf.xlu0
  %v1507 = vrot.slane %v1450, 7
  %v1508 = vrot.slane %v1451, 7
  %v1509 = vsel %vm150, %v1507, %v1508
  %v1512 = vsel %vm150, 0.0, %v1507
  %v1513 = vrot.slane %v1450, 1
  %v1514 = vrot.slane %v1451, 1
  %v1515 = vsel %vm157, %v1513, %v1514
  %v1517 = vsel %vm157, %v1514, 0.0
  %v1520 = vrot.slane %v1489, 7
  %v1521 = vrot.slane %v1490, 7
  %v1522 = vsel %vm150, %v1520, %v1521
  %v1524 = vsel %vm150, 0.0, %v1520
  %v1525 = vrot.slane %v1489, 1
  %v1526 = vrot.slane %v1490, 1
  %v1527 = vsel %vm157, %v1525, %v1526
  %v1529 = vsel %vm157, %v1526, 0.0
  %1530 = vrot.lane.b32.xlu0 %v1450, 32
  %v1531 = vpop.permute.xlu0 %1530
  %1532 = vrot.lane.b32.xlu0 %v1451, 32
  %v1533 = vpop.permute.xlu0 %1532
  %1537 = vrot.lane.b32.xlu0 %v1515, 64
  %v1538 = vpop.permute.xlu0 %1537
  %1539 = vrot.lane.b32.xlu0 %v1517, 64
  %v1540 = vpop.permute.xlu0 %1539
  %1544 = vrot.lane.b32.xlu0 %v1524, 96
  %v1545 = vpop.permute.xlu0 %1544
  %1546 = vrot.lane.b32.xlu0 %v1522, 96
  %v1547 = vpop.permute.xlu0 %1546
  %1550 = vrot.lane.b32.xlu0 %v1489, 16
  %v1551 = vpop.permute.xlu0 %1550
  %1552 = vrot.lane.b32.xlu0 %v1490, 16
  %v1553 = vpop.permute.xlu0 %1552
  %1557 = vrot.lane.b32.xlu0 %v1527, 64
  %v1558 = vpop.permute.xlu0 %1557
  %1559 = vrot.lane.b32.xlu0 %v1529, 64
  %v1560 = vpop.permute.xlu0 %1559
  %v1563 = vsel %vm208, %v1512, %v1531
  %v1564 = vsel %vm208, %v1509, %v1533
  %v1565 = vsel %vm211, %v1563, %v1538
  %v1566 = vsel %vm211, %v1564, %v1540
  %v1567 = vsel %vm214, %v1565, %v1545
  %v1568 = vsel %vm214, %v1566, %v1547
  %v1569 = vsel %vm217, %v1545, %v1551
  %v1570 = vsel %vm217, %v1547, %v1553
  %v1571 = vsel %vm211, %v1569, %v1558
  %v1572 = vsel %vm211, %v1570, %v1560
  %v1574 = vsel %vm228, %v1571, 0
  %v1577 = vsel %vm228, %v1572, 0
  %1579 = vmatprep.subr.mxu0 0.0
  %1580 = vmatpush1.msra.mxu0 %v29
  %1581 = vmatprep.subr.mxu0 0.0
  %1582 = vmatpush1.msra.mxu0 %v30
  %1583 = vmatprep.subr.mxu0 0.0
  %1584 = vmatpush1.msra.mxu0 %v31
  %1585 = vmatprep.subr.mxu0 0.0
  %1586 = vmatpush1.msra.mxu0 %v32
  %1587 = vmatprep.subr.mxu0 0.0
  %1588 = vmatpush1.msra.mxu0 %v33
  %1589 = vmatprep.subr.mxu0 0.0
  %1590 = vmatpush1.msra.mxu0 %v34
  %1591 = vmatprep.subr.mxu0 0.0
  %1592 = vmatpush1.msra.mxu0 %v35
  %1593 = vmatprep.subr.mxu0 0.0
  %1594 = vmatpush1.msra.mxu0 %v36
  %1595 = vmatprep.subr.mxu0 0.0
  %1596 = vmatpush1.msra.mxu0 %v37
  %1597 = vmatprep.subr.mxu0 0.0
  %1598 = vmatpush1.msra.mxu0 %v38
  %1599 = vmatprep.subr.mxu0 0.0
  %1600 = vmatpush1.msra.mxu0 %v39
  %1601 = vmatprep.subr.mxu0 0.0
  %1602 = vmatpush1.msra.mxu0 %v40
  %1603 = vmatprep.subr.mxu0 0.0
  %1604 = vmatpush1.msra.mxu0 %v41
  %1605 = vmatprep.subr.mxu0 0.0
  %1606 = vmatpush1.msra.mxu0 %v42
  %1607 = vmatprep.subr.mxu0 0.0
  %1608 = vmatpush1.msra.mxu0 %v43
  %1609 = vmatprep.subr.mxu0 0.0
  %1610 = vmatpush1.msra.mxu0 %v44
  %1611 = vmatprep.subr.mxu0 0.0
  %1612 = vmatpush1.msra.mxu0 %v45
  %1613 = vmatprep.subr.mxu0 0.0
  %1614 = vmatpush1.msra.mxu0 %v46
  %1615 = vmatprep.subr.mxu0 0.0
  %1616 = vmatpush1.msra.mxu0 %v47
  %1617 = vmatprep.subr.mxu0 0.0
  %1618 = vmatpush1.msra.mxu0 %v48
  %1619 = vmatprep.subr.mxu0 0.0
  %1620 = vmatpush1.msra.mxu0 %v49
  %1621 = vmatprep.subr.mxu0 0.0
  %1622 = vmatpush1.msra.mxu0 %v50
  %1623 = vmatprep.subr.mxu0 0.0
  %1624 = vmatpush1.msra.mxu0 %v51
  %1625 = vmatprep.subr.mxu0 0.0
  %1626 = vmatpush1.msra.mxu0 %v52
  %1627 = vmatprep.subr.mxu0 0.0
  %1628 = vmatpush1.msra.mxu0 %v53
  %1629 = vmatprep.subr.mxu0 0.0
  %1630 = vmatpush1.msra.mxu0 %v54
  %1631 = vmatprep.subr.mxu0 0.0
  %1632 = vmatpush1.msra.mxu0 %v55
  %1633 = vmatprep.subr.mxu0 0.0
  %1634 = vmatpush1.msra.mxu0 %v56
  %1635 = vmatprep.subr.mxu0 0.0
  %1636 = vmatpush1.msra.mxu0 %v57
  %1637 = vmatprep.subr.mxu0 0.0
  %1638 = vmatpush1.msra.mxu0 %v58
  %1639 = vmatprep.subr.mxu0 0.0
  %1640 = vmatpush1.msra.mxu0 0.0
  %1641 = vmatprep.subr.mxu0 0.0
  %1642 = vmatpush1.msra.mxu0 0.0
  %1643 = vmatprep.mubr.f32.mxu0 %v1574
  %1644 = vmatmul.mubr.f32.gmra.mrb[0].mxu0 %v1567
  %v1645 = vpop.f32.mrb[0].mxu0
  %v1646 = vadd.f32 %v226, %v1645
  %v1647 = vpop.f32.mrb[0].mxu0
  %1648 = vmatprep.mubr.f32.mxu0 %v1577
  %1649 = vmatmul.mubr.f32.gmra.mrb[0].mxu0 %v1568
  %v1650 = vpop.f32.mrb[0].mxu0
  %v1651 = vadd.f32 %v226, %v1650
  %v1652 = vpop.f32.mrb[0].mxu0
  %1653 = vdwg.mxu0
  %v1655 = vsel %vm211, %v1646, 0
  %v1658 = vsel %vm211, %v1651, 0
  %1660 = vmatprep.subr.mxu0 0.0
  %1661 = vmatpush1.msra.mxu0 %v60
  %1662 = vmatprep.subr.mxu0 0.0
  %1663 = vmatpush1.msra.mxu0 %v61
  %1664 = vmatprep.subr.mxu0 0.0
  %1665 = vmatpush1.msra.mxu0 %v62
  %1666 = vmatprep.subr.mxu0 0.0
  %1667 = vmatpush1.msra.mxu0 %v63
  %1668 = vmatprep.subr.mxu0 0.0
  %1669 = vmatpush1.msra.mxu0 %v64
  %1670 = vmatprep.subr.mxu0 0.0
  %1671 = vmatpush1.msra.mxu0 %v65
  %1672 = vmatprep.subr.mxu0 0.0
  %1673 = vmatpush1.msra.mxu0 %v66
  %1674 = vmatprep.subr.mxu0 0.0
  %1675 = vmatpush1.msra.mxu0 %v67
  %1676 = vmatprep.subr.mxu0 0.0
  %1677 = vmatpush1.msra.mxu0 0.0
  %1678 = vmatprep.subr.mxu0 0.0
  %1679 = vmatpush1.msra.mxu0 0.0
  %1680 = vmatprep.subr.mxu0 0.0
  %1681 = vmatpush1.msra.mxu0 0.0
  %1682 = vmatprep.subr.mxu0 0.0
  %1683 = vmatpush1.msra.mxu0 0.0
  %1684 = vmatprep.subr.mxu0 0.0
  %1685 = vmatpush1.msra.mxu0 0.0
  %1686 = vmatprep.subr.mxu0 0.0
  %1687 = vmatpush1.msra.mxu0 0.0
  %1688 = vmatprep.subr.mxu0 0.0
  %1689 = vmatpush1.msra.mxu0 0.0
  %1690 = vmatprep.subr.mxu0 0.0
  %1691 = vmatpush1.msra.mxu0 0.0
  %1692 = vmatprep.subr.mxu0 0.0
  %1693 = vmatpush1.msra.mxu0 0.0
  %1694 = vmatprep.subr.mxu0 0.0
  %1695 = vmatpush1.msra.mxu0 0.0
  %1696 = vmatprep.subr.mxu0 0.0
  %1697 = vmatpush1.msra.mxu0 0.0
  %1698 = vmatprep.subr.mxu0 0.0
  %1699 = vmatpush1.msra.mxu0 0.0
  %1700 = vmatprep.subr.mxu0 0.0
  %1701 = vmatpush1.msra.mxu0 0.0
  %1702 = vmatprep.subr.mxu0 0.0
  %1703 = vmatpush1.msra.mxu0 0.0
  %1704 = vmatprep.subr.mxu0 0.0
  %1705 = vmatpush1.msra.mxu0 0.0
  %1706 = vmatprep.subr.mxu0 0.0
  %1707 = vmatpush1.msra.mxu0 0.0
  %1708 = vmatprep.subr.mxu0 0.0
  %1709 = vmatpush1.msra.mxu0 0.0
  %1710 = vmatprep.subr.mxu0 0.0
  %1711 = vmatpush1.msra.mxu0 0.0
  %1712 = vmatprep.subr.mxu0 0.0
  %1713 = vmatpush1.msra.mxu0 0.0
  %1714 = vmatprep.subr.mxu0 0.0
  %1715 = vmatpush1.msra.mxu0 0.0
  %1716 = vmatprep.subr.mxu0 0.0
  %1717 = vmatpush1.msra.mxu0 0.0
  %1718 = vmatprep.subr.mxu0 0.0
  %1719 = vmatpush1.msra.mxu0 0.0
  %1720 = vmatprep.subr.mxu0 0.0
  %1721 = vmatpush1.msra.mxu0 0.0
  %1722 = vmatprep.subr.mxu0 0.0
  %1723 = vmatpush1.msra.mxu0 0.0
  %1724 = vmatprep.mubr.f32.mxu0 0.0
  %1725 = vmatmul.mubr.f32.gmra.mrb[0].mxu0 %v1655
  %v1726 = vpop.f32.mrb[0].mxu0
  %v1727 = vadd.f32 %v314, %v1726
  %v1728 = vpop.f32.mrb[0].mxu0
  %1729 = vmatprep.mubr.f32.mxu0 0.0
  %1730 = vmatmul.mubr.f32.gmra.mrb[0].mxu0 %v1658
  %v1731 = vpop.f32.mrb[0].mxu0
  %v1732 = vadd.f32 %v314, %v1731
  %v1733 = vpop.f32.mrb[0].mxu0
  %1734 = vdwg.mxu0
  %1737 = vrot.lane.b32.xlu0 %v1727, 120
  %v1738 = vpop.permute.xlu0 %1737
  %1739 = vrot.lane.b32.xlu0 %v1732, 120
  %v1740 = vpop.permute.xlu0 %1739
  %1741 = vrot.lane.b32.xlu0 %v1727, 112
  %v1742 = vpop.permute.xlu0 %1741
  %1743 = vrot.lane.b32.xlu0 %v1732, 112
  %v1744 = vpop.permute.xlu0 %1743
  %1745 = vrot.lane.b32.xlu0 %v1727, 104
  %v1746 = vpop.permute.xlu0 %1745
  %1747 = vrot.lane.b32.xlu0 %v1732, 104
  %v1748 = vpop.permute.xlu0 %1747
  %1749 = vrot.lane.b32.xlu0 %v1727, 96
  %v1750 = vpop.permute.xlu0 %1749
  %1751 = vrot.lane.b32.xlu0 %v1732, 96
  %v1752 = vpop.permute.xlu0 %1751
  %v1753 = vsel %vm415, %v1727, 0
  %v1755 = vsel %vm415, %v1732, 0
  %v1757 = vsel %vm415, %v1750, 0
  %v1759 = vsel %vm415, %v1752, 0
  %1761 = vmatprep.subr.mxu0 0.0
  %1762 = vmatpush1.xpose.msra.mxu0 %v1757
  %1763 = vmatprep.subr.mxu0 0.0
  %1764 = vmatpush1.xpose.msra.mxu0 %v1759
  %1765 = vmatprep.subr.mxu0 0.0
  %1766 = vmatpush1.xpose.msra.mxu0 0.0
  %1767 = vmatprep.subr.mxu0 0.0
  %1768 = vmatpush1.xpose.msra.mxu0 0.0
  %1769 = vmatprep.subr.mxu0 0.0
  %1770 = vmatpush1.xpose.msra.mxu0 0.0
  %1771 = vmatprep.subr.mxu0 0.0
  %1772 = vmatpush1.xpose.msra.mxu0 0.0
  %1773 = vmatprep.subr.mxu0 0.0
  %1774 = vmatpush1.xpose.msra.mxu0 0.0
  %1775 = vmatprep.subr.mxu0 0.0
  %1776 = vmatpush1.xpose.msra.mxu0 0.0
  %1777 = vmatprep.subr.mxu0 0.0
  %1778 = vmatpush1.xpose.msra.mxu0 0.0
  %1779 = vmatprep.subr.mxu0 0.0
  %1780 = vmatpush1.xpose.msra.mxu0 0.0
  %1781 = vmatprep.subr.mxu0 0.0
  %1782 = vmatpush1.xpose.msra.mxu0 0.0
  %1783 = vmatprep.subr.mxu0 0.0
  %1784 = vmatpush1.xpose.msra.mxu0 0.0
  %1785 = vmatprep.subr.mxu0 0.0
  %1786 = vmatpush1.xpose.msra.mxu0 0.0
  %1787 = vmatprep.subr.mxu0 0.0
  %1788 = vmatpush1.xpose.msra.mxu0 0.0
  %1789 = vmatprep.subr.mxu0 0.0
  %1790 = vmatpush1.xpose.msra.mxu0 0.0
  %1791 = vmatprep.subr.mxu0 0.0
  %1792 = vmatpush1.xpose.msra.mxu0 0.0
  %1793 = vmatprep.subr.mxu0 0.0
  %1794 = vmatpush1.xpose.msra.mxu0 0.0
  %1795 = vmatprep.subr.mxu0 0.0
  %1796 = vmatpush1.xpose.msra.mxu0 0.0
  %1797 = vmatprep.subr.mxu0 0.0
  %1798 = vmatpush1.xpose.msra.mxu0 0.0
  %1799 = vmatprep.subr.mxu0 0.0
  %1800 = vmatpush1.xpose.msra.mxu0 0.0
  %1801 = vmatprep.subr.mxu0 0.0
  %1802 = vmatpush1.xpose.msra.mxu0 0.0
  %1803 = vmatprep.subr.mxu0 0.0
  %1804 = vmatpush1.xpose.msra.mxu0 0.0
  %1805 = vmatprep.subr.mxu0 0.0
  %1806 = vmatpush1.xpose.msra.mxu0 0.0
  %1807 = vmatprep.subr.mxu0 0.0
  %1808 = vmatpush1.xpose.msra.mxu0 0.0
  %1809 = vmatprep.subr.mxu0 0.0
  %1810 = vmatpush1.xpose.msra.mxu0 0.0
  %1811 = vmatprep.subr.mxu0 0.0
  %1812 = vmatpush1.xpose.msra.mxu0 0.0
  %1813 = vmatprep.subr.mxu0 0.0
  %1814 = vmatpush1.xpose.msra.mxu0 0.0
  %1815 = vmatprep.subr.mxu0 0.0
  %1816 = vmatpush1.xpose.msra.mxu0 0.0
  %1817 = vmatprep.subr.mxu0 0.0
  %1818 = vmatpush1.xpose.msra.mxu0 0.0
  %1819 = vmatprep.subr.mxu0 0.0
  %1820 = vmatpush1.xpose.msra.mxu0 0.0
  %1821 = vmatprep.subr.mxu0 0.0
  %1822 = vmatpush1.xpose.msra.mxu0 0.0
  %1823 = vmatprep.subr.mxu0 0.0
  %1824 = vmatpush1.xpose.msra.mxu0 0.0
  %1825 = vmatprep.mubr.f32.mxu0 0.0
  %1826 = vmatmul.mubr.f32.gmra.mrb[0].mxu0 %v1753
  %v1827 = vpop.f32.mrb[0].mxu0
  %v1828 = vadd.f32 0.0, %v1827
  %v1829 = vpop.f32.mrb[0].mxu0
  %1830 = vmatprep.mubr.f32.mxu0 0.0
  %1831 = vmatmul.mubr.f32.gmra.mrb[0].mxu0 %v1755
  %v1832 = vpop.f32.mrb[0].mxu0
  %v1833 = vadd.f32 0.0, %v1832
  %v1834 = vpop.f32.mrb[0].mxu0
  %1835 = vdwg.mxu0
  %1836 = vrot.lane.b32.xlu0 %v1738, 96
  %v1837 = vpop.permute.xlu0 %1836
  %1838 = vrot.lane.b32.xlu0 %v1740, 96
  %v1839 = vpop.permute.xlu0 %1838
  %v1840 = vsel %vm415, %v1738, 0
  %v1842 = vsel %vm415, %v1740, 0
  %v1844 = vsel %vm415, %v1837, 0
  %v1846 = vsel %vm415, %v1839, 0
  %1848 = vmatprep.subr.mxu0 0.0
  %1849 = vmatpush1.xpose.msra.mxu0 %v1844
  %1850 = vmatprep.subr.mxu0 0.0
  %1851 = vmatpush1.xpose.msra.mxu0 %v1846
  %1852 = vmatprep.subr.mxu0 0.0
  %1853 = vmatpush1.xpose.msra.mxu0 0.0
  %1854 = vmatprep.subr.mxu0 0.0
  %1855 = vmatpush1.xpose.msra.mxu0 0.0
  %1856 = vmatprep.subr.mxu0 0.0
  %1857 = vmatpush1.xpose.msra.mxu0 0.0
  %1858 = vmatprep.subr.mxu0 0.0
  %1859 = vmatpush1.xpose.msra.mxu0 0.0
  %1860 = vmatprep.subr.mxu0 0.0
  %1861 = vmatpush1.xpose.msra.mxu0 0.0
  %1862 = vmatprep.subr.mxu0 0.0
  %1863 = vmatpush1.xpose.msra.mxu0 0.0
  %1864 = vmatprep.subr.mxu0 0.0
  %1865 = vmatpush1.xpose.msra.mxu0 0.0
  %1866 = vmatprep.subr.mxu0 0.0
  %1867 = vmatpush1.xpose.msra.mxu0 0.0
  %1868 = vmatprep.subr.mxu0 0.0
  %1869 = vmatpush1.xpose.msra.mxu0 0.0
  %1870 = vmatprep.subr.mxu0 0.0
  %1871 = vmatpush1.xpose.msra.mxu0 0.0
  %1872 = vmatprep.subr.mxu0 0.0
  %1873 = vmatpush1.xpose.msra.mxu0 0.0
  %1874 = vmatprep.subr.mxu0 0.0
  %1875 = vmatpush1.xpose.msra.mxu0 0.0
  %1876 = vmatprep.subr.mxu0 0.0
  %1877 = vmatpush1.xpose.msra.mxu0 0.0
  %1878 = vmatprep.subr.mxu0 0.0
  %1879 = vmatpush1.xpose.msra.mxu0 0.0
  %1880 = vmatprep.subr.mxu0 0.0
  %1881 = vmatpush1.xpose.msra.mxu0 0.0
  %1882 = vmatprep.subr.mxu0 0.0
  %1883 = vmatpush1.xpose.msra.mxu0 0.0
  %1884 = vmatprep.subr.mxu0 0.0
  %1885 = vmatpush1.xpose.msra.mxu0 0.0
  %1886 = vmatprep.subr.mxu0 0.0
  %1887 = vmatpush1.xpose.msra.mxu0 0.0
  %1888 = vmatprep.subr.mxu0 0.0
  %1889 = vmatpush1.xpose.msra.mxu0 0.0
  %1890 = vmatprep.subr.mxu0 0.0
  %1891 = vmatpush1.xpose.msra.mxu0 0.0
  %1892 = vmatprep.subr.mxu0 0.0
  %1893 = vmatpush1.xpose.msra.mxu0 0.0
  %1894 = vmatprep.subr.mxu0 0.0
  %1895 = vmatpush1.xpose.msra.mxu0 0.0
  %1896 = vmatprep.subr.mxu0 0.0
  %1897 = vmatpush1.xpose.msra.mxu0 0.0
  %1898 = vmatprep.subr.mxu0 0.0
  %1899 = vmatpush1.xpose.msra.mxu0 0.0
  %1900 = vmatprep.subr.mxu0 0.0
  %1901 = vmatpush1.xpose.msra.mxu0 0.0
  %1902 = vmatprep.subr.mxu0 0.0
  %1903 = vmatpush1.xpose.msra.mxu0 0.0
  %1904 = vmatprep.subr.mxu0 0.0
  %1905 = vmatpush1.xpose.msra.mxu0 0.0
  %1906 = vmatprep.subr.mxu0 0.0
  %1907 = vmatpush1.xpose.msra.mxu0 0.0
  %1908 = vmatprep.subr.mxu0 0.0
  %1909 = vmatpush1.xpose.msra.mxu0 0.0
  %1910 = vmatprep.subr.mxu0 0.0
  %1911 = vmatpush1.xpose.msra.mxu0 0.0
  %1912 = vmatprep.mubr.f32.mxu0 0.0
  %1913 = vmatmul.mubr.f32.gmra.mrb[0].mxu0 %v1840
  %v1914 = vpop.f32.mrb[0].mxu0
  %v1915 = vadd.f32 0.0, %v1914
  %v1916 = vpop.f32.mrb[0].mxu0
  %1917 = vmatprep.mubr.f32.mxu0 0.0
  %1918 = vmatmul.mubr.f32.gmra.mrb[0].mxu0 %v1842
  %v1919 = vpop.f32.mrb[0].mxu0
  %v1920 = vadd.f32 0.0, %v1919
  %v1921 = vpop.f32.mrb[0].mxu0
  %1922 = vdwg.mxu0
  %1923 = vrot.lane.b32.xlu0 %v1742, 96
  %v1924 = vpop.permute.xlu0 %1923
  %1925 = vrot.lane.b32.xlu0 %v1744, 96
  %v1926 = vpop.permute.xlu0 %1925
  %v1927 = vsel %vm415, %v1742, 0
  %v1929 = vsel %vm415, %v1744, 0
  %v1931 = vsel %vm415, %v1924, 0
  %v1933 = vsel %vm415, %v1926, 0
  %1935 = vmatprep.subr.mxu0 0.0
  %1936 = vmatpush1.xpose.msra.mxu0 %v1931
  %1937 = vmatprep.subr.mxu0 0.0
  %1938 = vmatpush1.xpose.msra.mxu0 %v1933
  %1939 = vmatprep.subr.mxu0 0.0
  %1940 = vmatpush1.xpose.msra.mxu0 0.0
  %1941 = vmatprep.subr.mxu0 0.0
  %1942 = vmatpush1.xpose.msra.mxu0 0.0
  %1943 = vmatprep.subr.mxu0 0.0
  %1944 = vmatpush1.xpose.msra.mxu0 0.0
  %1945 = vmatprep.subr.mxu0 0.0
  %1946 = vmatpush1.xpose.msra.mxu0 0.0
  %1947 = vmatprep.subr.mxu0 0.0
  %1948 = vmatpush1.xpose.msra.mxu0 0.0
  %1949 = vmatprep.subr.mxu0 0.0
  %1950 = vmatpush1.xpose.msra.mxu0 0.0
  %1951 = vmatprep.subr.mxu0 0.0
  %1952 = vmatpush1.xpose.msra.mxu0 0.0
  %1953 = vmatprep.subr.mxu0 0.0
  %1954 = vmatpush1.xpose.msra.mxu0 0.0
  %1955 = vmatprep.subr.mxu0 0.0
  %1956 = vmatpush1.xpose.msra.mxu0 0.0
  %1957 = vmatprep.subr.mxu0 0.0
  %1958 = vmatpush1.xpose.msra.mxu0 0.0
  %1959 = vmatprep.subr.mxu0 0.0
  %1960 = vmatpush1.xpose.msra.mxu0 0.0
  %1961 = vmatprep.subr.mxu0 0.0
  %1962 = vmatpush1.xpose.msra.mxu0 0.0
  %1963 = vmatprep.subr.mxu0 0.0
  %1964 = vmatpush1.xpose.msra.mxu0 0.0
  %1965 = vmatprep.subr.mxu0 0.0
  %1966 = vmatpush1.xpose.msra.mxu0 0.0
  %1967 = vmatprep.subr.mxu0 0.0
  %1968 = vmatpush1.xpose.msra.mxu0 0.0
  %1969 = vmatprep.subr.mxu0 0.0
  %1970 = vmatpush1.xpose.msra.mxu0 0.0
  %1971 = vmatprep.subr.mxu0 0.0
  %1972 = vmatpush1.xpose.msra.mxu0 0.0
  %1973 = vmatprep.subr.mxu0 0.0
  %1974 = vmatpush1.xpose.msra.mxu0 0.0
  %1975 = vmatprep.subr.mxu0 0.0
  %1976 = vmatpush1.xpose.msra.mxu0 0.0
  %1977 = vmatprep.subr.mxu0 0.0
  %1978 = vmatpush1.xpose.msra.mxu0 0.0
  %1979 = vmatprep.subr.mxu0 0.0
  %1980 = vmatpush1.xpose.msra.mxu0 0.0
  %1981 = vmatprep.subr.mxu0 0.0
  %1982 = vmatpush1.xpose.msra.mxu0 0.0
  %1983 = vmatprep.subr.mxu0 0.0
  %1984 = vmatpush1.xpose.msra.mxu0 0.0
  %1985 = vmatprep.subr.mxu0 0.0
  %1986 = vmatpush1.xpose.msra.mxu0 0.0
  %1987 = vmatprep.subr.mxu0 0.0
  %1988 = vmatpush1.xpose.msra.mxu0 0.0
  %1989 = vmatprep.subr.mxu0 0.0
  %1990 = vmatpush1.xpose.msra.mxu0 0.0
  %1991 = vmatprep.subr.mxu0 0.0
  %1992 = vmatpush1.xpose.msra.mxu0 0.0
  %1993 = vmatprep.subr.mxu0 0.0
  %1994 = vmatpush1.xpose.msra.mxu0 0.0
  %1995 = vmatprep.subr.mxu0 0.0
  %1996 = vmatpush1.xpose.msra.mxu0 0.0
  %1997 = vmatprep.subr.mxu0 0.0
  %1998 = vmatpush1.xpose.msra.mxu0 0.0
  %1999 = vmatprep.mubr.f32.mxu0 0.0
  %2000 = vmatmul.mubr.f32.gmra.mrb[0].mxu0 %v1927
  %v2001 = vpop.f32.mrb[0].mxu0
  %v2002 = vadd.f32 0.0, %v2001
  %v2003 = vpop.f32.mrb[0].mxu0
  %2004 = vmatprep.mubr.f32.mxu0 0.0
  %2005 = vmatmul.mubr.f32.gmra.mrb[0].mxu0 %v1929
  %v2006 = vpop.f32.mrb[0].mxu0
  %v2007 = vadd.f32 0.0, %v2006
  %v2008 = vpop.f32.mrb[0].mxu0
  %2009 = vdwg.mxu0
  %2010 = vrot.lane.b32.xlu0 %v1746, 96
  %v2011 = vpop.permute.xlu0 %2010
  %2012 = vrot.lane.b32.xlu0 %v1748, 96
  %v2013 = vpop.permute.xlu0 %2012
  %v2014 = vsel %vm415, %v1746, 0
  %v2016 = vsel %vm415, %v1748, 0
  %v2018 = vsel %vm415, %v2011, 0
  %v2020 = vsel %vm415, %v2013, 0
  %2022 = vmatprep.subr.mxu0 0.0
  %2023 = vmatpush1.xpose.msra.mxu0 %v2018
  %2024 = vmatprep.subr.mxu0 0.0
  %2025 = vmatpush1.xpose.msra.mxu0 %v2020
  %2026 = vmatprep.subr.mxu0 0.0
  %2027 = vmatpush1.xpose.msra.mxu0 0.0
  %2028 = vmatprep.subr.mxu0 0.0
  %2029 = vmatpush1.xpose.msra.mxu0 0.0
  %2030 = vmatprep.subr.mxu0 0.0
  %2031 = vmatpush1.xpose.msra.mxu0 0.0
  %2032 = vmatprep.subr.mxu0 0.0
  %2033 = vmatpush1.xpose.msra.mxu0 0.0
  %2034 = vmatprep.subr.mxu0 0.0
  %2035 = vmatpush1.xpose.msra.mxu0 0.0
  %2036 = vmatprep.subr.mxu0 0.0
  %2037 = vmatpush1.xpose.msra.mxu0 0.0
  %2038 = vmatprep.subr.mxu0 0.0
  %2039 = vmatpush1.xpose.msra.mxu0 0.0
  %2040 = vmatprep.subr.mxu0 0.0
  %2041 = vmatpush1.xpose.msra.mxu0 0.0
  %2042 = vmatprep.subr.mxu0 0.0
  %2043 = vmatpush1.xpose.msra.mxu0 0.0
  %2044 = vmatprep.subr.mxu0 0.0
  %2045 = vmatpush1.xpose.msra.mxu0 0.0
  %2046 = vmatprep.subr.mxu0 0.0
  %2047 = vmatpush1.xpose.msra.mxu0 0.0
  %2048 = vmatprep.subr.mxu0 0.0
  %2049 = vmatpush1.xpose.msra.mxu0 0.0
  %2050 = vmatprep.subr.mxu0 0.0
  %2051 = vmatpush1.xpose.msra.mxu0 0.0
  %2052 = vmatprep.subr.mxu0 0.0
  %2053 = vmatpush1.xpose.msra.mxu0 0.0
  %2054 = vmatprep.subr.mxu0 0.0
  %2055 = vmatpush1.xpose.msra.mxu0 0.0
  %2056 = vmatprep.subr.mxu0 0.0
  %2057 = vmatpush1.xpose.msra.mxu0 0.0
  %2058 = vmatprep.subr.mxu0 0.0
  %2059 = vmatpush1.xpose.msra.mxu0 0.0
  %2060 = vmatprep.subr.mxu0 0.0
  %2061 = vmatpush1.xpose.msra.mxu0 0.0
  %2062 = vmatprep.subr.mxu0 0.0
  %2063 = vmatpush1.xpose.msra.mxu0 0.0
  %2064 = vmatprep.subr.mxu0 0.0
  %2065 = vmatpush1.xpose.msra.mxu0 0.0
  %2066 = vmatprep.subr.mxu0 0.0
  %2067 = vmatpush1.xpose.msra.mxu0 0.0
  %2068 = vmatprep.subr.mxu0 0.0
  %2069 = vmatpush1.xpose.msra.mxu0 0.0
  %2070 = vmatprep.subr.mxu0 0.0
  %2071 = vmatpush1.xpose.msra.mxu0 0.0
  %2072 = vmatprep.subr.mxu0 0.0
  %2073 = vmatpush1.xpose.msra.mxu0 0.0
  %2074 = vmatprep.subr.mxu0 0.0
  %2075 = vmatpush1.xpose.msra.mxu0 0.0
  %2076 = vmatprep.subr.mxu0 0.0
  %2077 = vmatpush1.xpose.msra.mxu0 0.0
  %2078 = vmatprep.subr.mxu0 0.0
  %2079 = vmatpush1.xpose.msra.mxu0 0.0
  %2080 = vmatprep.subr.mxu0 0.0
  %2081 = vmatpush1.xpose.msra.mxu0 0.0
  %2082 = vmatprep.subr.mxu0 0.0
  %2083 = vmatpush1.xpose.msra.mxu0 0.0
  %2084 = vmatprep.subr.mxu0 0.0
  %2085 = vmatpush1.xpose.msra.mxu0 0.0
  %2086 = vmatprep.mubr.f32.mxu0 0.0
  %2087 = vmatmul.mubr.f32.gmra.mrb[0].mxu0 %v2014
  %v2088 = vpop.f32.mrb[0].mxu0
  %v2089 = vadd.f32 0.0, %v2088
  %v2090 = vpop.f32.mrb[0].mxu0
  %2091 = vmatprep.mubr.f32.mxu0 0.0
  %2092 = vmatmul.mubr.f32.gmra.mrb[0].mxu0 %v2016
  %v2093 = vpop.f32.mrb[0].mxu0
  %v2094 = vadd.f32 0.0, %v2093
  %v2095 = vpop.f32.mrb[0].mxu0
  %2096 = vdwg.mxu0
  %v2097 = vsel %vm217, %v1828, -inf
  %2098 = vmax.xlane.f32.xlu0 %v2097
  %v2099 = vpop.xlane.xlu0 %2098
  %v2100 = vsel %vm217, %v1833, -inf
  %2101 = vmax.xlane.f32.xlu0 %v2100
  %v2102 = vpop.xlane.xlu0 %2101
  %v2103 = vsel %vm217, %v1915, -inf
  %2104 = vmax.xlane.f32.xlu0 %v2103
  %v2105 = vpop.xlane.xlu0 %2104
  %v2106 = vsel %vm217, %v1920, -inf
  %2107 = vmax.xlane.f32.xlu0 %v2106
  %v2108 = vpop.xlane.xlu0 %2107
  %v2109 = vsel %vm217, %v2002, -inf
  %2110 = vmax.xlane.f32.xlu0 %v2109
  %v2111 = vpop.xlane.xlu0 %2110
  %v2112 = vsel %vm217, %v2007, -inf
  %2113 = vmax.xlane.f32.xlu0 %v2112
  %v2114 = vpop.xlane.xlu0 %2113
  %v2115 = vsel %vm217, %v2089, -inf
  %2116 = vmax.xlane.f32.xlu0 %v2115
  %v2117 = vpop.xlane.xlu0 %2116
  %v2118 = vsel %vm217, %v2094, -inf
  %2119 = vmax.xlane.f32.xlu0 %v2118
  %v2120 = vpop.xlane.xlu0 %2119
  %v2121 = vsub.f32 %v1828, %v2099
  %v2122 = vsub.f32 %v1833, %v2102
  %v2123 = vsub.f32 %v1915, %v2105
  %v2124 = vsub.f32 %v1920, %v2108
  %v2125 = vsub.f32 %v2002, %v2111
  %v2126 = vsub.f32 %v2007, %v2114
  %v2127 = vsub.f32 %v2089, %v2117
  %v2128 = vsub.f32 %v2094, %v2120
  %v2129 = vmul.f32 %v2121, 1.442695
  %v2130 = vpow.pop %v2129
  %v2131 = vmul.f32 %v2122, 1.442695
  %v2132 = vpow.pop %v2131
  %v2133 = vmul.f32 %v2123, 1.442695
  %v2134 = vpow.pop %v2133
  %v2135 = vmul.f32 %v2124, 1.442695
  %v2136 = vpow.pop %v2135
  %v2137 = vmul.f32 %v2125, 1.442695
  %v2138 = vpow.pop %v2137
  %v2139 = vmul.f32 %v2126, 1.442695
  %v2140 = vpow.pop %v2139
  %v2141 = vmul.f32 %v2127, 1.442695
  %v2142 = vpow.pop %v2141
  %v2143 = vmul.f32 %v2128, 1.442695
  %v2144 = vpow.pop %v2143
  %v2145 = vsel %vm217, %v2130, 0.0
  %2146 = vadd.xlane.f32.xlu0 %v2145
  %v2147 = vpop.xlane.xlu0 %2146
  %v2148 = vsel %vm217, %v2132, 0.0
  %2149 = vadd.xlane.f32.xlu0 %v2148
  %v2150 = vpop.xlane.xlu0 %2149
  %v2151 = vsel %vm217, %v2134, 0.0
  %2152 = vadd.xlane.f32.xlu0 %v2151
  %v2153 = vpop.xlane.xlu0 %2152
  %v2154 = vsel %vm217, %v2136, 0.0
  %2155 = vadd.xlane.f32.xlu0 %v2154
  %v2156 = vpop.xlane.xlu0 %2155
  %v2157 = vsel %vm217, %v2138, 0.0
  %2158 = vadd.xlane.f32.xlu0 %v2157
  %v2159 = vpop.xlane.xlu0 %2158
  %v2160 = vsel %vm217, %v2140, 0.0
  %2161 = vadd.xlane.f32.xlu0 %v2160
  %v2162 = vpop.xlane.xlu0 %2161
  %v2163 = vsel %vm217, %v2142, 0.0
  %2164 = vadd.xlane.f32.xlu0 %v2163
  %v2165 = vpop.xlane.xlu0 %2164
  %v2166 = vsel %vm217, %v2144, 0.0
  %2167 = vadd.xlane.f32.xlu0 %v2166
  %v2168 = vpop.xlane.xlu0 %2167
  %2169 = vrot.lane.b32.xlu0 %v1727, 64
  %v2170 = vpop.permute.xlu0 %2169
  %2171 = vrot.lane.b32.xlu0 %v1732, 64
  %v2172 = vpop.permute.xlu0 %2171
  %v2176 = vsel %vm217, %v2130, 0
  %v2179 = vsel %vm217, %v2132, 0
  %2181 = vmatprep.subr.mxu0 0.0
  %2182 = vmatpush1.msra.mxu0 %v2170
  %2183 = vmatprep.subr.mxu0 0.0
  %2184 = vmatpush1.msra.mxu0 %v2172
  %2185 = vmatprep.subr.mxu0 0.0
  %2186 = vmatpush1.msra.mxu0 0.0
  %2187 = vmatprep.subr.mxu0 0.0
  %2188 = vmatpush1.msra.mxu0 0.0
  %2189 = vmatprep.subr.mxu0 0.0
  %2190 = vmatpush1.msra.mxu0 0.0
  %2191 = vmatprep.subr.mxu0 0.0
  %2192 = vmatpush1.msra.mxu0 0.0
  %2193 = vmatprep.subr.mxu0 0.0
  %2194 = vmatpush1.msra.mxu0 0.0
  %2195 = vmatprep.subr.mxu0 0.0
  %2196 = vmatpush1.msra.mxu0 0.0
  %2197 = vmatprep.subr.mxu0 0.0
  %2198 = vmatpush1.msra.mxu0 0.0
  %2199 = vmatprep.subr.mxu0 0.0
  %2200 = vmatpush1.msra.mxu0 0.0
  %2201 = vmatprep.subr.mxu0 0.0
  %2202 = vmatpush1.msra.mxu0 0.0
  %2203 = vmatprep.subr.mxu0 0.0
  %2204 = vmatpush1.msra.mxu0 0.0
  %2205 = vmatprep.subr.mxu0 0.0
  %2206 = vmatpush1.msra.mxu0 0.0
  %2207 = vmatprep.subr.mxu0 0.0
  %2208 = vmatpush1.msra.mxu0 0.0
  %2209 = vmatprep.subr.mxu0 0.0
  %2210 = vmatpush1.msra.mxu0 0.0
  %2211 = vmatprep.subr.mxu0 0.0
  %2212 = vmatpush1.msra.mxu0 0.0
  %2213 = vmatprep.subr.mxu0 0.0
  %2214 = vmatpush1.msra.mxu0 0.0
  %2215 = vmatprep.subr.mxu0 0.0
  %2216 = vmatpush1.msra.mxu0 0.0
  %2217 = vmatprep.subr.mxu0 0.0
  %2218 = vmatpush1.msra.mxu0 0.0
  %2219 = vmatprep.subr.mxu0 0.0
  %2220 = vmatpush1.msra.mxu0 0.0
  %2221 = vmatprep.subr.mxu0 0.0
  %2222 = vmatpush1.msra.mxu0 0.0
  %2223 = vmatprep.subr.mxu0 0.0
  %2224 = vmatpush1.msra.mxu0 0.0
  %2225 = vmatprep.subr.mxu0 0.0
  %2226 = vmatpush1.msra.mxu0 0.0
  %2227 = vmatprep.subr.mxu0 0.0
  %2228 = vmatpush1.msra.mxu0 0.0
  %2229 = vmatprep.subr.mxu0 0.0
  %2230 = vmatpush1.msra.mxu0 0.0
  %2231 = vmatprep.subr.mxu0 0.0
  %2232 = vmatpush1.msra.mxu0 0.0
  %2233 = vmatprep.subr.mxu0 0.0
  %2234 = vmatpush1.msra.mxu0 0.0
  %2235 = vmatprep.subr.mxu0 0.0
  %2236 = vmatpush1.msra.mxu0 0.0
  %2237 = vmatprep.subr.mxu0 0.0
  %2238 = vmatpush1.msra.mxu0 0.0
  %2239 = vmatprep.subr.mxu0 0.0
  %2240 = vmatpush1.msra.mxu0 0.0
  %2241 = vmatprep.subr.mxu0 0.0
  %2242 = vmatpush1.msra.mxu0 0.0
  %2243 = vmatprep.subr.mxu0 0.0
  %2244 = vmatpush1.msra.mxu0 0.0
  %2245 = vmatprep.mubr.f32.mxu0 0.0
  %2246 = vmatmul.mubr.f32.gmra.mrb[0].mxu0 %v2176
  %v2247 = vpop.f32.mrb[0].mxu0
  %v2248 = vadd.f32 0.0, %v2247
  %v2249 = vpop.f32.mrb[0].mxu0
  %2250 = vmatprep.mubr.f32.mxu0 0.0
  %2251 = vmatmul.mubr.f32.gmra.mrb[0].mxu0 %v2179
  %v2252 = vpop.f32.mrb[0].mxu0
  %v2253 = vadd.f32 0.0, %v2252
  %v2254 = vpop.f32.mrb[0].mxu0
  %2255 = vdwg.mxu0
  %2256 = vrot.lane.b32.xlu0 %v1738, 64
  %v2257 = vpop.permute.xlu0 %2256
  %2258 = vrot.lane.b32.xlu0 %v1740, 64
  %v2259 = vpop.permute.xlu0 %2258
  %v2263 = vsel %vm217, %v2134, 0
  %v2266 = vsel %vm217, %v2136, 0
  %2268 = vmatprep.subr.mxu0 0.0
  %2269 = vmatpush1.msra.mxu0 %v2257
  %2270 = vmatprep.subr.mxu0 0.0
  %2271 = vmatpush1.msra.mxu0 %v2259
  %2272 = vmatprep.subr.mxu0 0.0
  %2273 = vmatpush1.msra.mxu0 0.0
  %2274 = vmatprep.subr.mxu0 0.0
  %2275 = vmatpush1.msra.mxu0 0.0
  %2276 = vmatprep.subr.mxu0 0.0
  %2277 = vmatpush1.msra.mxu0 0.0
  %2278 = vmatprep.subr.mxu0 0.0
  %2279 = vmatpush1.msra.mxu0 0.0
  %2280 = vmatprep.subr.mxu0 0.0
  %2281 = vmatpush1.msra.mxu0 0.0
  %2282 = vmatprep.subr.mxu0 0.0
  %2283 = vmatpush1.msra.mxu0 0.0
  %2284 = vmatprep.subr.mxu0 0.0
  %2285 = vmatpush1.msra.mxu0 0.0
  %2286 = vmatprep.subr.mxu0 0.0
  %2287 = vmatpush1.msra.mxu0 0.0
  %2288 = vmatprep.subr.mxu0 0.0
  %2289 = vmatpush1.msra.mxu0 0.0
  %2290 = vmatprep.subr.mxu0 0.0
  %2291 = vmatpush1.msra.mxu0 0.0
  %2292 = vmatprep.subr.mxu0 0.0
  %2293 = vmatpush1.msra.mxu0 0.0
  %2294 = vmatprep.subr.mxu0 0.0
  %2295 = vmatpush1.msra.mxu0 0.0
  %2296 = vmatprep.subr.mxu0 0.0
  %2297 = vmatpush1.msra.mxu0 0.0
  %2298 = vmatprep.subr.mxu0 0.0
  %2299 = vmatpush1.msra.mxu0 0.0
  %2300 = vmatprep.subr.mxu0 0.0
  %2301 = vmatpush1.msra.mxu0 0.0
  %2302 = vmatprep.subr.mxu0 0.0
  %2303 = vmatpush1.msra.mxu0 0.0
  %2304 = vmatprep.subr.mxu0 0.0
  %2305 = vmatpush1.msra.mxu0 0.0
  %2306 = vmatprep.subr.mxu0 0.0
  %2307 = vmatpush1.msra.mxu0 0.0
  %2308 = vmatprep.subr.mxu0 0.0
  %2309 = vmatpush1.msra.mxu0 0.0
  %2310 = vmatprep.subr.mxu0 0.0
  %2311 = vmatpush1.msra.mxu0 0.0
  %2312 = vmatprep.subr.mxu0 0.0
  %2313 = vmatpush1.msra.mxu0 0.0
  %2314 = vmatprep.subr.mxu0 0.0
  %2315 = vmatpush1.msra.mxu0 0.0
  %2316 = vmatprep.subr.mxu0 0.0
  %2317 = vmatpush1.msra.mxu0 0.0
  %2318 = vmatprep.subr.mxu0 0.0
  %2319 = vmatpush1.msra.mxu0 0.0
  %2320 = vmatprep.subr.mxu0 0.0
  %2321 = vmatpush1.msra.mxu0 0.0
  %2322 = vmatprep.subr.mxu0 0.0
  %2323 = vmatpush1.msra.mxu0 0.0
  %2324 = vmatprep.subr.mxu0 0.0
  %2325 = vmatpush1.msra.mxu0 0.0
  %2326 = vmatprep.subr.mxu0 0.0
  %2327 = vmatpush1.msra.mxu0 0.0
  %2328 = vmatprep.subr.mxu0 0.0
  %2329 = vmatpush1.msra.mxu0 0.0
  %2330 = vmatprep.subr.mxu0 0.0
  %2331 = vmatpush1.msra.mxu0 0.0
  %2332 = vmatprep.mubr.f32.mxu0 0.0
  %2333 = vmatmul.mubr.f32.gmra.mrb[0].mxu0 %v2263
  %v2334 = vpop.f32.mrb[0].mxu0
  %v2335 = vadd.f32 0.0, %v2334
  %v2336 = vpop.f32.mrb[0].mxu0
  %2337 = vmatprep.mubr.f32.mxu0 0.0
  %2338 = vmatmul.mubr.f32.gmra.mrb[0].mxu0 %v2266
  %v2339 = vpop.f32.mrb[0].mxu0
  %v2340 = vadd.f32 0.0, %v2339
  %v2341 = vpop.f32.mrb[0].mxu0
  %2342 = vdwg.mxu0
  %2343 = vrot.lane.b32.xlu0 %v1742, 64
  %v2344 = vpop.permute.xlu0 %2343
  %2345 = vrot.lane.b32.xlu0 %v1744, 64
  %v2346 = vpop.permute.xlu0 %2345
  %v2350 = vsel %vm217, %v2138, 0
  %v2353 = vsel %vm217, %v2140, 0
  %2355 = vmatprep.subr.mxu0 0.0
  %2356 = vmatpush1.msra.mxu0 %v2344
  %2357 = vmatprep.subr.mxu0 0.0
  %2358 = vmatpush1.msra.mxu0 %v2346
  %2359 = vmatprep.subr.mxu0 0.0
  %2360 = vmatpush1.msra.mxu0 0.0
  %2361 = vmatprep.subr.mxu0 0.0
  %2362 = vmatpush1.msra.mxu0 0.0
  %2363 = vmatprep.subr.mxu0 0.0
  %2364 = vmatpush1.msra.mxu0 0.0
  %2365 = vmatprep.subr.mxu0 0.0
  %2366 = vmatpush1.msra.mxu0 0.0
  %2367 = vmatprep.subr.mxu0 0.0
  %2368 = vmatpush1.msra.mxu0 0.0
  %2369 = vmatprep.subr.mxu0 0.0
  %2370 = vmatpush1.msra.mxu0 0.0
  %2371 = vmatprep.subr.mxu0 0.0
  %2372 = vmatpush1.msra.mxu0 0.0
  %2373 = vmatprep.subr.mxu0 0.0
  %2374 = vmatpush1.msra.mxu0 0.0
  %2375 = vmatprep.subr.mxu0 0.0
  %2376 = vmatpush1.msra.mxu0 0.0
  %2377 = vmatprep.subr.mxu0 0.0
  %2378 = vmatpush1.msra.mxu0 0.0
  %2379 = vmatprep.subr.mxu0 0.0
  %2380 = vmatpush1.msra.mxu0 0.0
  %2381 = vmatprep.subr.mxu0 0.0
  %2382 = vmatpush1.msra.mxu0 0.0
  %2383 = vmatprep.subr.mxu0 0.0
  %2384 = vmatpush1.msra.mxu0 0.0
  %2385 = vmatprep.subr.mxu0 0.0
  %2386 = vmatpush1.msra.mxu0 0.0
  %2387 = vmatprep.subr.mxu0 0.0
  %2388 = vmatpush1.msra.mxu0 0.0
  %2389 = vmatprep.subr.mxu0 0.0
  %2390 = vmatpush1.msra.mxu0 0.0
  %2391 = vmatprep.subr.mxu0 0.0
  %2392 = vmatpush1.msra.mxu0 0.0
  %2393 = vmatprep.subr.mxu0 0.0
  %2394 = vmatpush1.msra.mxu0 0.0
  %2395 = vmatprep.subr.mxu0 0.0
  %2396 = vmatpush1.msra.mxu0 0.0
  %2397 = vmatprep.subr.mxu0 0.0
  %2398 = vmatpush1.msra.mxu0 0.0
  %2399 = vmatprep.subr.mxu0 0.0
  %2400 = vmatpush1.msra.mxu0 0.0
  %2401 = vmatprep.subr.mxu0 0.0
  %2402 = vmatpush1.msra.mxu0 0.0
  %2403 = vmatprep.subr.mxu0 0.0
  %2404 = vmatpush1.msra.mxu0 0.0
  %2405 = vmatprep.subr.mxu0 0.0
  %2406 = vmatpush1.msra.mxu0 0.0
  %2407 = vmatprep.subr.mxu0 0.0
  %2408 = vmatpush1.msra.mxu0 0.0
  %2409 = vmatprep.subr.mxu0 0.0
  %2410 = vmatpush1.msra.mxu0 0.0
  %2411 = vmatprep.subr.mxu0 0.0
  %2412 = vmatpush1.msra.mxu0 0.0
  %2413 = vmatprep.subr.mxu0 0.0
  %2414 = vmatpush1.msra.mxu0 0.0
  %2415 = vmatprep.subr.mxu0 0.0
  %2416 = vmatpush1.msra.mxu0 0.0
  %2417 = vmatprep.subr.mxu0 0.0
  %2418 = vmatpush1.msra.mxu0 0.0
  %2419 = vmatprep.mubr.f32.mxu0 0.0
  %2420 = vmatmul.mubr.f32.gmra.mrb[0].mxu0 %v2350
  %v2421 = vpop.f32.mrb[0].mxu0
  %v2422 = vadd.f32 0.0, %v2421
  %v2423 = vpop.f32.mrb[0].mxu0
  %2424 = vmatprep.mubr.f32.mxu0 0.0
  %2425 = vmatmul.mubr.f32.gmra.mrb[0].mxu0 %v2353
  %v2426 = vpop.f32.mrb[0].mxu0
  %v2427 = vadd.f32 0.0, %v2426
  %v2428 = vpop.f32.mrb[0].mxu0
  %2429 = vdwg.mxu0
  %2430 = vrot.lane.b32.xlu0 %v1746, 64
  %v2431 = vpop.permute.xlu0 %2430
  %2432 = vrot.lane.b32.xlu0 %v1748, 64
  %v2433 = vpop.permute.xlu0 %2432
  %v2437 = vsel %vm217, %v2142, 0
  %v2440 = vsel %vm217, %v2144, 0
  %2442 = vmatprep.subr.mxu0 0.0
  %2443 = vmatpush1.msra.mxu0 %v2431
  %2444 = vmatprep.subr.mxu0 0.0
  %2445 = vmatpush1.msra.mxu0 %v2433
  %2446 = vmatprep.subr.mxu0 0.0
  %2447 = vmatpush1.msra.mxu0 0.0
  %2448 = vmatprep.subr.mxu0 0.0
  %2449 = vmatpush1.msra.mxu0 0.0
  %2450 = vmatprep.subr.mxu0 0.0
  %2451 = vmatpush1.msra.mxu0 0.0
  %2452 = vmatprep.subr.mxu0 0.0
  %2453 = vmatpush1.msra.mxu0 0.0
  %2454 = vmatprep.subr.mxu0 0.0
  %2455 = vmatpush1.msra.mxu0 0.0
  %2456 = vmatprep.subr.mxu0 0.0
  %2457 = vmatpush1.msra.mxu0 0.0
  %2458 = vmatprep.subr.mxu0 0.0
  %2459 = vmatpush1.msra.mxu0 0.0
  %2460 = vmatprep.subr.mxu0 0.0
  %2461 = vmatpush1.msra.mxu0 0.0
  %2462 = vmatprep.subr.mxu0 0.0
  %2463 = vmatpush1.msra.mxu0 0.0
  %2464 = vmatprep.subr.mxu0 0.0
  %2465 = vmatpush1.msra.mxu0 0.0
  %2466 = vmatprep.subr.mxu0 0.0
  %2467 = vmatpush1.msra.mxu0 0.0
  %2468 = vmatprep.subr.mxu0 0.0
  %2469 = vmatpush1.msra.mxu0 0.0
  %2470 = vmatprep.subr.mxu0 0.0
  %2471 = vmatpush1.msra.mxu0 0.0
  %2472 = vmatprep.subr.mxu0 0.0
  %2473 = vmatpush1.msra.mxu0 0.0
  %2474 = vmatprep.subr.mxu0 0.0
  %2475 = vmatpush1.msra.mxu0 0.0
  %2476 = vmatprep.subr.mxu0 0.0
  %2477 = vmatpush1.msra.mxu0 0.0
  %2478 = vmatprep.subr.mxu0 0.0
  %2479 = vmatpush1.msra.mxu0 0.0
  %2480 = vmatprep.subr.mxu0 0.0
  %2481 = vmatpush1.msra.mxu0 0.0
  %2482 = vmatprep.subr.mxu0 0.0
  %2483 = vmatpush1.msra.mxu0 0.0
  %2484 = vmatprep.subr.mxu0 0.0
  %2485 = vmatpush1.msra.mxu0 0.0
  %2486 = vmatprep.subr.mxu0 0.0
  %2487 = vmatpush1.msra.mxu0 0.0
  %2488 = vmatprep.subr.mxu0 0.0
  %2489 = vmatpush1.msra.mxu0 0.0
  %2490 = vmatprep.subr.mxu0 0.0
  %2491 = vmatpush1.msra.mxu0 0.0
  %2492 = vmatprep.subr.mxu0 0.0
  %2493 = vmatpush1.msra.mxu0 0.0
  %2494 = vmatprep.subr.mxu0 0.0
  %2495 = vmatpush1.msra.mxu0 0.0
  %2496 = vmatprep.subr.mxu0 0.0
  %2497 = vmatpush1.msra.mxu0 0.0
  %2498 = vmatprep.subr.mxu0 0.0
  %2499 = vmatpush1.msra.mxu0 0.0
  %2500 = vmatprep.subr.mxu0 0.0
  %2501 = vmatpush1.msra.mxu0 0.0
  %2502 = vmatprep.subr.mxu0 0.0
  %2503 = vmatpush1.msra.mxu0 0.0
  %2504 = vmatprep.subr.mxu0 0.0
  %2505 = vmatpush1.msra.mxu0 0.0
  %2506 = vmatprep.mubr.f32.mxu0 0.0
  %2507 = vmatmul.mubr.f32.gmra.mrb[0].mxu0 %v2437
  %v2508 = vpop.f32.mrb[0].mxu0
  %v2509 = vadd.f32 0.0, %v2508
  %v2510 = vpop.f32.mrb[0].mxu0
  %2511 = vmatprep.mubr.f32.mxu0 0.0
  %2512 = vmatmul.mubr.f32.gmra.mrb[0].mxu0 %v2440
  %v2513 = vpop.f32.mrb[0].mxu0
  %v2514 = vadd.f32 0.0, %v2513
  %v2515 = vpop.f32.mrb[0].mxu0
  %2516 = vdwg.mxu0
  %v2517 = vrcp.pop %v2147
  %v2518 = vmul.f32 %v2248, %v2517
  %v2519 = vrcp.pop %v2150
  %v2520 = vmul.f32 %v2253, %v2519
  %v2521 = vrcp.pop %v2153
  %v2522 = vmul.f32 %v2335, %v2521
  %v2523 = vrcp.pop %v2156
  %v2524 = vmul.f32 %v2340, %v2523
  %v2525 = vrcp.pop %v2159
  %v2526 = vmul.f32 %v2422, %v2525
  %v2527 = vrcp.pop %v2162
  %v2528 = vmul.f32 %v2427, %v2527
  %v2529 = vrcp.pop %v2165
  %v2530 = vmul.f32 %v2509, %v2529
  %v2531 = vrcp.pop %v2168
  %v2532 = vmul.f32 %v2514, %v2531
  %2535 = vrot.lane.b32.xlu0 %v2522, 8
  %v2536 = vpop.permute.xlu0 %2535
  %2537 = vrot.lane.b32.xlu0 %v2524, 8
  %v2538 = vpop.permute.xlu0 %2537
  %2543 = vrot.lane.b32.xlu0 %v2526, 16
  %v2544 = vpop.permute.xlu0 %2543
  %2545 = vrot.lane.b32.xlu0 %v2528, 16
  %v2546 = vpop.permute.xlu0 %2545
  %2551 = vrot.lane.b32.xlu0 %v2530, 24
  %v2552 = vpop.permute.xlu0 %2551
  %2553 = vrot.lane.b32.xlu0 %v2532, 24
  %v2554 = vpop.permute.xlu0 %2553
  %v2557 = vsel %vm415, %v2518, %v2536
  %v2558 = vsel %vm415, %v2520, %v2538
  %v2559 = vsel %vm217, %v2557, %v2544
  %v2560 = vsel %vm217, %v2558, %v2546
  %v2561 = vsel %vm1224, %v2559, %v2552
  %v2562 = vsel %vm1224, %v2560, %v2554
  %v2564 = vsel %vm208, %v2561, 0
  %v2567 = vsel %vm208, %v2562, 0
  %2569 = vmatprep.subr.mxu0 0.0
  %2570 = vmatpush1.msra.mxu0 %v69
  %2571 = vmatprep.subr.mxu0 0.0
  %2572 = vmatpush1.msra.mxu0 %v70
  %2573 = vmatprep.subr.mxu0 0.0
  %2574 = vmatpush1.msra.mxu0 %v71
  %2575 = vmatprep.subr.mxu0 0.0
  %2576 = vmatpush1.msra.mxu0 %v72
  %2577 = vmatprep.subr.mxu0 0.0
  %2578 = vmatpush1.msra.mxu0 0.0
  %2579 = vmatprep.subr.mxu0 0.0
  %2580 = vmatpush1.msra.mxu0 0.0
  %2581 = vmatprep.subr.mxu0 0.0
  %2582 = vmatpush1.msra.mxu0 0.0
  %2583 = vmatprep.subr.mxu0 0.0
  %2584 = vmatpush1.msra.mxu0 0.0
  %2585 = vmatprep.subr.mxu0 0.0
  %2586 = vmatpush1.msra.mxu0 0.0
  %2587 = vmatprep.subr.mxu0 0.0
  %2588 = vmatpush1.msra.mxu0 0.0
  %2589 = vmatprep.subr.mxu0 0.0
  %2590 = vmatpush1.msra.mxu0 0.0
  %2591 = vmatprep.subr.mxu0 0.0
  %2592 = vmatpush1.msra.mxu0 0.0
  %2593 = vmatprep.subr.mxu0 0.0
  %2594 = vmatpush1.msra.mxu0 0.0
  %2595 = vmatprep.subr.mxu0 0.0
  %2596 = vmatpush1.msra.mxu0 0.0
  %2597 = vmatprep.subr.mxu0 0.0
  %2598 = vmatpush1.msra.mxu0 0.0
  %2599 = vmatprep.subr.mxu0 0.0
  %2600 = vmatpush1.msra.mxu0 0.0
  %2601 = vmatprep.subr.mxu0 0.0
  %2602 = vmatpush1.msra.mxu0 0.0
  %2603 = vmatprep.subr.mxu0 0.0
  %2604 = vmatpush1.msra.mxu0 0.0
  %2605 = vmatprep.subr.mxu0 0.0
  %2606 = vmatpush1.msra.mxu0 0.0
  %2607 = vmatprep.subr.mxu0 0.0
  %2608 = vmatpush1.msra.mxu0 0.0
  %2609 = vmatprep.subr.mxu0 0.0
  %2610 = vmatpush1.msra.mxu0 0.0
  %2611 = vmatprep.subr.mxu0 0.0
  %2612 = vmatpush1.msra.mxu0 0.0
  %2613 = vmatprep.subr.mxu0 0.0
  %2614 = vmatpush1.msra.mxu0 0.0
  %2615 = vmatprep.subr.mxu0 0.0
  %2616 = vmatpush1.msra.mxu0 0.0
  %2617 = vmatprep.subr.mxu0 0.0
  %2618 = vmatpush1.msra.mxu0 0.0
  %2619 = vmatprep.subr.mxu0 0.0
  %2620 = vmatpush1.msra.mxu0 0.0
  %2621 = vmatprep.subr.mxu0 0.0
  %2622 = vmatpush1.msra.mxu0 0.0
  %2623 = vmatprep.subr.mxu0 0.0
  %2624 = vmatpush1.msra.mxu0 0.0
  %2625 = vmatprep.subr.mxu0 0.0
  %2626 = vmatpush1.msra.mxu0 0.0
  %2627 = vmatprep.subr.mxu0 0.0
  %2628 = vmatpush1.msra.mxu0 0.0
  %2629 = vmatprep.subr.mxu0 0.0
  %2630 = vmatpush1.msra.mxu0 0.0
  %2631 = vmatprep.subr.mxu0 0.0
  %2632 = vmatpush1.msra.mxu0 0.0
  %2633 = vmatprep.mubr.f32.mxu0 0.0
  %2634 = vmatmul.mubr.f32.gmra.mrb[0].mxu0 %v2564
  %v2635 = vpop.f32.mrb[0].mxu0
  %v2636 = vadd.f32 %v1230, %v2635
  %v2637 = vpop.f32.mrb[0].mxu0
  %2638 = vmatprep.mubr.f32.mxu0 0.0
  %2639 = vmatmul.mubr.f32.gmra.mrb[0].mxu0 %v2567
  %v2640 = vpop.f32.mrb[0].mxu0
  %v2641 = vadd.f32 %v1230, %v2640
  %v2642 = vpop.f32.mrb[0].mxu0
  %2643 = vdwg.mxu0
  %2646 = vrot.lane.b32.xlu0 %v2636, 32
  %v2647 = vpop.permute.xlu0 %2646
  %2648 = vrot.lane.b32.xlu0 %v2641, 32
  %v2649 = vpop.permute.xlu0 %2648
  %v2652 = vadd.f32 %v1646, %v2647
  %v2653 = vadd.f32 %v1651, %v2649
  %2656 = vrot.lane.b32.xlu0 %v2652, 96
  %v2657 = vpop.permute.xlu0 %2656
  %2658 = vrot.lane.b32.xlu0 %v2653, 96
  %v2659 = vpop.permute.xlu0 %2658
  %v2662 = vsel %vm208, %v2657, 0.0
  %2663 = vadd.xlane.f32.xlu0 %v2662
  %v2664 = vpop.xlane.xlu0 %2663
  %v2665 = vsel %vm208, %v2659, 0.0
  %2666 = vadd.xlane.f32.xlu0 %v2665
  %v2667 = vpop.xlane.xlu0 %2666
  %v2668 = vmul.f32 %v2664, %v1336
  %v2669 = vmul.f32 %v2667, %v1336
  %v2670 = vsub.f32 %v2652, %v2668
  %v2671 = vsub.f32 %v2653, %v2669
  %v2672 = vmul.f32 %v2670, %v2670
  %v2673 = vmul.f32 %v2671, %v2671
  %2676 = vrot.lane.b32.xlu0 %v2672, 96
  %v2677 = vpop.permute.xlu0 %2676
  %2678 = vrot.lane.b32.xlu0 %v2673, 96
  %v2679 = vpop.permute.xlu0 %2678
  %v2682 = vsel %vm208, %v2677, 0.0
  %2683 = vadd.xlane.f32.xlu0 %v2682
  %v2684 = vpop.xlane.xlu0 %2683
  %v2685 = vsel %vm208, %v2679, 0.0
  %2686 = vadd.xlane.f32.xlu0 %v2685
  %v2687 = vpop.xlane.xlu0 %2686
  %v2688 = vmul.f32 %v2684, %v1336
  %v2689 = vmul.f32 %v2687, %v1336
  %v2690 = vadd.f32 %v2688, 1e-05
  %v2691 = vadd.f32 %v2689, 1e-05
  %v2692 = vrsqrt.pop %v2690
  %v2693 = vrsqrt.pop %v2691
  %v2694 = vmul.f32 %v2670, %v2692
  %v2695 = vmul.f32 %v2671, %v2693
  %v2696 = vmul.f32 %v2694, %v1371
  %v2697 = vmul.f32 %v2695, %v1371
  %v2698 = vadd.f32 %v2696, %v1381
  %v2699 = vadd.f32 %v2697, %v1381
  %2702 = vrot.lane.b32.xlu0 %v2698, 96
  %v2703 = vpop.permute.xlu0 %2702
  %2704 = vrot.lane.b32.xlu0 %v2699, 96
  %v2705 = vpop.permute.xlu0 %2704
  %2708 = vxpose.xlu0.b32.start [1/16] %v2703, 128
  %2709 = vxpose.xlu0.b32.cont [2/16] %v2705, 128
  %2710 = vxpose.xlu0.b32.cont [3/16] 0.0, 128
  %2711 = vxpose.xlu0.b32.cont [4/16] 0.0, 128
  %2712 = vxpose.xlu0.b32.cont [5/16] 0.0, 128
  %2713 = vxpose.xlu0.b32.cont [6/16] 0.0, 128
  %2714 = vxpose.xlu0.b32.cont [7/16] 0.0, 128
  %2715 = vxpose.xlu0.b32.cont [8/16] 0.0, 128
  %2716 = vxpose.xlu0.b32.cont [9/16] 0.0, 128
  %2717 = vxpose.xlu0.b32.cont [10/16] 0.0, 128
  %2718 = vxpose.xlu0.b32.cont [11/16] 0.0, 128
  %2719 = vxpose.xlu0.b32.cont [12/16] 0.0, 128
  %2720 = vxpose.xlu0.b32.cont [13/16] 0.0, 128
  %2721 = vxpose.xlu0.b32.cont [14/16] 0.0, 128
  %2722 = vxpose.xlu0.b32.cont [15/16] 0.0, 128
  %2723 = vxpose.xlu0.b32.end [16/16] 0.0, 128
  %v2724 = vpop.trf.xlu0
  %v2725 = vpop.trf.xlu0
  %v2726 = vpop.trf.xlu0
  %v2727 = vpop.trf.xlu0
  %v2728 = vpop.trf.xlu0
  %v2729 = vpop.trf.xlu0
  %v2730 = vpop.trf.xlu0
  %v2731 = vpop.trf.xlu0
  %v2732 = vpop.trf.xlu0
  %v2733 = vpop.trf.xlu0
  %v2734 = vpop.trf.xlu0
  %v2735 = vpop.trf.xlu0
  %v2736 = vpop.trf.xlu0
  %v2737 = vpop.trf.xlu0
  %v2738 = vpop.trf.xlu0
  %v2739 = vpop.trf.xlu0
  %s2740 = scalar_lea.vmem %s8, 32
  %2741 = vst.msk [vmem:[%s2740] sm:$0xff] %vm217, %v2724
  %2742 = vst.msk [vmem:[%s2740 + $0x8] sm:$0xff] %vm217, %v2725
  %2743 = vst.msk [vmem:[%s2740 + $0x10] sm:$0xff] %vm217, %v2726
  %2744 = vst.msk [vmem:[%s2740 + $0x18] sm:$0xff] %vm217, %v2727
  // Predicated region
  $region34: #{tpu_custom_call.1} parent=0 // pred_check
    _
  $region35: #{tpu_custom_call.1} parent=0 // pred_check_branch
    %2746 = sbr.rel (0) target = $region37
  $region36: #{tpu_custom_call.1} parent=0 // pred_region
    _
  $region37: #{tpu_custom_call.1} parent=0 // pred_fallthru
    _
  // Predicated region
  $region38: #{tpu_custom_call.1} parent=0 // pred_check
    _
  $region39: #{tpu_custom_call.1} parent=0 // pred_check_branch
    %2748 = sbr.rel (0) target = $region41
  $region40: #{tpu_custom_call.1} parent=0 // pred_region
    _
  $region41: #{tpu_custom_call.1} parent=0 // pred_fallthru
    _

</llo_original>
